<compile_context>
chip_gen: v7x
topology: tpu7x:2x2x1
jax: 0.10.0
libtpu: 0.0.40
codegen_flags: <defaults>
</compile_context>

<pallas_src>
import enum
import functools
from typing import Dict, List, Tuple

import numpy as np
import jax
import jax.numpy as jnp
from jax.experimental import pallas as pl
from jax.experimental.pallas import tpu as pltpu


# ----------------------------- graph vocabulary -----------------------------
class NodeType(enum.IntEnum):      # IntEnum: orderable -> safe as dict key
    SCENE = 0
    GRIPPER = 1
    AGENT = 2


class EdgeType(enum.IntEnum):
    AGENT_TIME_ACTION_AGENT = 0


# ------------------------------ Pallas kernel -------------------------------
def psinn_kernel(x_ref, mask_ref, srcoh_ref,
                 wd1_ref, wqkv1_ref, bqkv1_ref, wo1_ref, bo1_ref, g1_ref, be1_ref,
                 wd2_ref, wqkv2_ref, bqkv2_ref, wo2_ref, bo2_ref, g2_ref, be2_ref,
                 o_ref, *, num_heads, head_dim, row_blocks):
    """Fused PsiNN forward: 2x (hetero attention + LayerNorm/residual).

    x_ref     : [N, D]      packed node features (type-major, 8-padded blocks)
    mask_ref  : [N, N]      shared additive adjacency mask (0 / -1e9), both layers
    srcoh_ref : [E, N]      one-hot of edge source (key) rows, shared
    wd*_ref   : [H, N, E]   per-layer edge-bias logits * dst one-hot
    wqkv*_ref : [T, D, 3D]  per-type Q|K|V weights (bf16, 1/sqrt(hd) folded in Q)
    bqkv*_ref : [T, 3D]     per-type Q|K|V biases (f32)
    wo*_ref   : [T, D, D]   per-type output-projection weights (bf16)
    bo*_ref   : [T, D]      per-type output-projection biases (f32)
    g*/be*_ref: [T, D]      per-type LayerNorm gamma / beta (f32)
    o_ref     : [N, D]      output (f32)
    row_blocks: static ((type_id, row_start, row_end), ...) 8-aligned blocks
    """
    H, Hd = num_heads, head_dim
    D = H * Hd
    bf16 = jnp.bfloat16

    x = x_ref[...]
    mask = mask_ref[...]
    srcoh = srcoh_ref[...]

    def to_heads(a):                       # [N, D] -> [H, N, Hd]
        return jnp.stack([a[:, h * Hd:(h + 1) * Hd] for h in range(H)], axis=0)

    def from_heads(a3):                    # [H, N, Hd] -> [N, D]
        return jnp.concatenate([a3[h] for h in range(H)], axis=1)

    def attn_layer(inp, wd_ref, wqkv_ref, bqkv_ref, wo_ref, bo_ref):
        # Per-node-type projections as row-sliced bf16 matmuls, f32 accumulation.
        qp, kp, vp = [], [], []
        for t, r0, r1 in row_blocks:
            qkv_t = jnp.dot(inp[r0:r1].astype(bf16), wqkv_ref[t],
                            preferred_element_type=jnp.float32)       # [nt, 3D]
            qkv_t = qkv_t + bqkv_ref[t:t + 1, :]
            qp.append(qkv_t[:, 0:D])
            kp.append(qkv_t[:, D:2 * D])
            vp.append(qkv_t[:, 2 * D:3 * D])
        q3 = to_heads(jnp.concatenate(qp, axis=0)).astype(bf16)       # [H, N, Hd]
        k3 = to_heads(jnp.concatenate(kp, axis=0)).astype(bf16)
        v3 = to_heads(jnp.concatenate(vp, axis=0)).astype(bf16)

        # Dense per-head edge bias rebuilt on-chip from the sparse factorisation.
        eb = jnp.einsum('hne,em->hnm', wd_ref[...], srcoh,
                        preferred_element_type=jnp.float32)           # [H, N, N]

        # Batched-over-heads attention; softmax stays f32 (v5e-safe elementwise).
        s = jnp.einsum('hqd,hkd->hqk', q3, k3,
                       preferred_element_type=jnp.float32)            # [H, N, N]
        s = s + eb + mask[None, :, :]
        s = s - jnp.max(s, axis=-1, keepdims=True)
        p = jnp.exp(s)
        # Exact reciprocal (switch to approx=True for inference-only use).
        p = p * pl.reciprocal(jnp.sum(p, axis=-1, keepdims=True), approx=False)

        ctx3 = jnp.einsum('hqk,hkd->hqd', p.astype(bf16), v3,
                          preferred_element_type=jnp.float32)         # [H, N, Hd]
        ctx = from_heads(ctx3)                                        # [N, D]

        # Single K=D output projection per node type.
        op = []
        for t, r0, r1 in row_blocks:
            ot = jnp.dot(ctx[r0:r1].astype(bf16), wo_ref[t],
                         preferred_element_type=jnp.float32) + bo_ref[t:t + 1, :]
            op.append(ot)
        return jnp.concatenate(op, axis=0)                            # [N, D]

    def ln_residual(z, res, g_ref, b_ref):
        # One-pass statistics: E[z], E[z^2]; single rsqrt per block.
        outs = []
        for t, r0, r1 in row_blocks:
            zt = z[r0:r1]
            mu = jnp.mean(zt, axis=-1, keepdims=True)
            ms = jnp.mean(zt * zt, axis=-1, keepdims=True)
            var = ms - mu * mu
            normed = (zt - mu) * jax.lax.rsqrt(var + 1e-5)
            outs.append(normed * g_ref[t:t + 1, :] + b_ref[t:t + 1, :] + res[r0:r1])
        return jnp.concatenate(outs, axis=0)

    z1 = attn_layer(x, wd1_ref, wqkv1_ref, bqkv1_ref, wo1_ref, bo1_ref)
    h1 = ln_residual(z1, x, g1_ref, be1_ref)    # h1 = LN(z1) + X
    z2 = attn_layer(h1, wd2_ref, wqkv2_ref, bqkv2_ref, wo2_ref, bo2_ref)
    h2 = ln_residual(z2, h1, g2_ref, be2_ref)   # h2 = LN(z2) + h1  (h1 = post-LN block-1 output,
    #                                             matching ResidualBlock(z1_postLN, z2) in PyTorch)
    # TODO(synk): for wide D present a lane-dense output slab ([N*D/128, 128])
    #             to avoid masked partial stores.
    o_ref[...] = h2


# ------------------------------- wrapper glue --------------------------------
def _ceil8(n: int) -> int:
    return (n + 7) // 8 * 8


def psinn_forward(params,
                  X: Dict[NodeType, jnp.ndarray],
                  node_index_dict: Dict[NodeType, List[int]],
                  A: jnp.ndarray,
                  E: Dict[EdgeType, jnp.ndarray],
                  edge_index_dict: Dict[EdgeType, List[Tuple[int, int]]]):
    H, Hd = params["num_heads"], params["head_dim"]
    D = H * Hd

    # ---- pack nodes type-major; each type block padded to a multiple of 8 rows
    types = [nt for nt in NodeType if len(node_index_dict.get(nt, ())) > 0]
    counts, offsets = {}, {}
    off = 0
    for nt in types:
        counts[nt] = len(node_index_dict[nt])
        offsets[nt] = off
        off += _ceil8(counts[nt])
    Npack = off

    Xp = jnp.zeros((Npack, D), jnp.float32)
    g = np.zeros((Npack,), np.int32)          # packed row -> global index
    valid = np.zeros((Npack,), bool)
    row_blocks = []
    inv = {}                                  # global index -> packed row
    for nt in types:
        r0, c = offsets[nt], counts[nt]
        Xp = Xp.at[r0:r0 + c].set(jnp.asarray(X[nt], jnp.float32))
        idx = [int(i) for i in node_index_dict[nt]]
        g[r0:r0 + c] = idx
        valid[r0:r0 + c] = True
        for j, gi in enumerate(idx):
            inv[gi] = r0 + j
        row_blocks.append((int(nt), r0, r0 + _ceil8(c)))
    row_blocks = tuple(row_blocks)

    # ---- one shared additive adjacency mask (pads fully masked), both layers
    g_j = jnp.asarray(g)
    valid_j = jnp.asarray(valid)
    A_pack = jnp.asarray(A, jnp.float32)[g_j][:, g_j]
    mask_add = jnp.where((A_pack > 0) & valid_j[None, :] & valid_j[:, None],
                         0.0, -1e9).astype(jnp.float32)

    # ---- compact sparse edge-bias factorisation (no dense [H,N,N] in HBM)
    src_p, dst_p, feats_list = [], [], []
    for et, feats in E.items():
        for (s_g, d_g) in edge_index_dict[et]:
            src_p.append(inv[int(s_g)])
            dst_p.append(inv[int(d_g)])
        feats_list.append(jnp.asarray(feats, jnp.float32))
    n_e = len(src_p)
    Ep = max(_ceil8(n_e), 8)
    src_arr = np.zeros((Ep,), np.int32)
    dst_arr = np.zeros((Ep,), np.int32)
    src_arr[:n_e] = src_p
    dst_arr[:n_e] = dst_p
    src_oh = jax.nn.one_hot(jnp.asarray(src_arr), Npack, dtype=jnp.float32)  # [Ep, N]
    dst_oh = jax.nn.one_hot(jnp.asarray(dst_arr), Npack, dtype=jnp.float32)  # [Ep, N]

    def make_wd(lp):                      # [H, Npack, Ep]
        if n_e == 0:
            return jnp.zeros((H, Npack, Ep), jnp.float32)
        # TODO(synk): per-edge-type encoders would need separate we/be per type.
        logits = jnp.concatenate(feats_list, axis=0) @ lp["we"] + lp["be"]   # [n_e, H]
        logits = jnp.pad(logits, ((0, Ep - n_e), (0, 0)))                    # pads -> 0
        return jnp.einsum('eh,en->hne', logits, dst_oh)

    l1, l2 = params["l1"], params["l2"]
    ln1, ln2 = params["ln1"], params["ln2"]
    inputs = (Xp, mask_add, src_oh,
              make_wd(l1), l1["wqkv"], l1["bqkv"], l1["wo"], l1["bo"],
              ln1["gamma"], ln1["beta"],
              make_wd(l2), l2["wqkv"], l2["bqkv"], l2["wo"], l2["bo"],
              ln2["gamma"], ln2["beta"])

    kern = functools.partial(psinn_kernel, num_heads=H, head_dim=Hd,
                             row_blocks=row_blocks)
    # TODO(synk): for large graphs add grid=(pl.cdiv(Npack, tq),) with a (tq, Npack)
    #             BlockSpec on the mask and dimension_semantics=("parallel",)
    #             (two TCs on v7x); at this size a single invocation is best.
    out = pl.pallas_call(
        kern,
        out_shape=jax.ShapeDtypeStruct((Npack, D), jnp.float32),
        in_specs=[pl.BlockSpec(memory_space=pltpu.MemorySpace.VMEM)] * len(inputs),
        out_specs=pl.BlockSpec(memory_space=pltpu.MemorySpace.VMEM),
        compiler_params=pltpu.CompilerParams(
            # above 16/32 MiB scoped defaults, below v7x's 64 MiB physical VMEM
            vmem_limit_bytes=48 * 1024 * 1024),
    )(*inputs)

    return {nt: out[offsets[nt]:offsets[nt] + counts[nt]] for nt in types}


# ---------------------------------- params -----------------------------------
def init_psinn_params(key, num_att_heads, head_dim, edge_feat_dim):
    H, Hd = num_att_heads, head_dim
    D = H * Hd
    T = len(NodeType)
    wscale = 1.0 / (D ** 0.5)
    qscale = 1.0 / (Hd ** 0.5)          # attention scale folded into Q weights

    def init_layer(k):
        kq, kk_, kv, ko, ke = jax.random.split(k, 5)
        wq = jax.random.normal(kq, (T, D, D), jnp.float32) * wscale * qscale
        wk = jax.random.normal(kk_, (T, D, D), jnp.float32) * wscale
        wv = jax.random.normal(kv, (T, D, D), jnp.float32) * wscale
        return {
            "wqkv": jnp.concatenate([wq, wk, wv], axis=2).astype(jnp.bfloat16),  # [T,D,3D]
            "bqkv": jnp.zeros((T, 3 * D), jnp.float32),
            "wo": (jax.random.normal(ko, (T, D, D), jnp.float32)
                   * wscale).astype(jnp.bfloat16),                              # [T,D,D]
            "bo": jnp.zeros((T, D), jnp.float32),
            "we": jax.random.normal(ke, (edge_feat_dim, H), jnp.float32)
                  * (1.0 / edge_feat_dim ** 0.5),
            "be": jnp.zeros((H,), jnp.float32),
        }

    def init_ln():
        return {"gamma": jnp.ones((T, D), jnp.float32),
                "beta": jnp.zeros((T, D), jnp.float32)}

    k1, k2 = jax.random.split(key)
    return {"l1": init_layer(k1), "ln1": init_ln(),
            "l2": init_layer(k2), "ln2": init_ln(),
            "num_heads": H, "head_dim": Hd}


# -------------------------- pure-JAX reference check --------------------------
def psinn_reference(params, X, node_index_dict, A, E, edge_index_dict):
    """Module-level (un-packed) reference mirroring the PyTorch forward."""
    H, Hd = params["num_heads"], params["head_dim"]
    D = H * Hd
    N = A.shape[0]
    bf16 = jnp.bfloat16

    Xf = jnp.zeros((N, D), jnp.float32)
    tid = jnp.zeros((N,), jnp.int32)
    for nt, idx in node_index_dict.items():
        ii = jnp.asarray(idx, jnp.int32)
        Xf = Xf.at[ii].set(jnp.asarray(X[nt], jnp.float32))
        tid = tid.at[ii].set(int(nt))

    mask = jnp.where(jnp.asarray(A, jnp.float32) > 0, 0.0, -1e9)

    def edge_bias(lp):
        B = jnp.zeros((H, N, N), jnp.float32)
        for et, feats in E.items():
            logits = jnp.asarray(feats, jnp.float32) @ lp["we"] + lp["be"]
            src = jnp.asarray([p[0] for p in edge_index_dict[et]], jnp.int32)
            dst = jnp.asarray([p[1] for p in edge_index_dict[et]], jnp.int32)
            B = B.at[:, dst, src].add(logits.T)
        return B

    def typed_proj(z, W, b):                       # W [T,D,K] bf16, b [T,K] f32
        return jnp.einsum('nd,ndk->nk', z.astype(bf16), W[tid],
                          preferred_element_type=jnp.float32) + b[tid]

    def attn(z, lp):
        qkv = typed_proj(z, lp["wqkv"], lp["bqkv"])
        q, k, v = qkv[:, :D], qkv[:, D:2 * D], qkv[:, 2 * D:]
        q3 = q.reshape(N, H, Hd).transpose(1, 0, 2).astype(bf16)
        k3 = k.reshape(N, H, Hd).transpose(1, 0, 2).astype(bf16)
        v3 = v.reshape(N, H, Hd).transpose(1, 0, 2).astype(bf16)
        s = jnp.einsum('hqd,hkd->hqk', q3, k3, preferred_element_type=jnp.float32)
        s = s + edge_bias(lp) + mask[None]
        p = jax.nn.softmax(s, axis=-1)
        ctx = jnp.einsum('hqk,hkd->hqd', p.astype(bf16), v3,
                         preferred_element_type=jnp.float32)
        ctx = ctx.transpose(1, 0, 2).reshape(N, D)
        return typed_proj(ctx, lp["wo"], lp["bo"])

    def ln_res(z, res, lnp):
        gma, bta = lnp["gamma"][tid], lnp["beta"][tid]
        mu = jnp.mean(z, -1, keepdims=True)
        var = jnp.mean((z - mu) ** 2, -1, keepdims=True)
        return (z - mu) * jax.lax.rsqrt(var + 1e-5) * gma + bta + res

    z1 = attn(Xf, params["l1"])
    h1 = ln_res(z1, Xf, params["ln1"])
    z2 = attn(h1, params["l2"])
    h2 = ln_res(z2, h1, params["ln2"])
    return {nt: h2[jnp.asarray(idx, jnp.int32)] for nt, idx in node_index_dict.items()}


# ----------------------------------- main ------------------------------------
if __name__ == "__main__":
    key = jax.random.PRNGKey(0)
    num_att_heads, head_dim = 4, 8
    D = num_att_heads * head_dim                      # 32
    edge_feat_dim = 16

    # nodes: 8 SCENE, 4 GRIPPER, 4 AGENT  -> 16 nodes (packed to 24 padded rows)
    node_index_dict = {
        NodeType.SCENE: list(range(0, 8)),
        NodeType.GRIPPER: list(range(8, 12)),
        NodeType.AGENT: list(range(12, 16)),
    }
    N = 16

    kx, kg, ka, kadj, ke, kp = jax.random.split(key, 6)
    X = {
        NodeType.SCENE: jax.random.normal(kx, (8, D), jnp.float32),
        NodeType.GRIPPER: jax.random.normal(kg, (4, D), jnp.float32),
        NodeType.AGENT: jax.random.normal(ka, (4, D), jnp.float32),
    }

    # adjacency: random edges + self loops (production graphs must also guarantee
    # at least one unmasked neighbour per node, else softmax rows degenerate)
    A = (jax.random.uniform(kadj, (N, N)) > 0.3).astype(jnp.float32)
    A = jnp.maximum(A, jnp.eye(N, dtype=jnp.float32))

    edge_index_dict = {
        EdgeType.AGENT_TIME_ACTION_AGENT: [(12, 13), (13, 14), (14, 15), (15, 12)],
    }
    E = {EdgeType.AGENT_TIME_ACTION_AGENT:
         jax.random.normal(ke, (4, edge_feat_dim), jnp.float32)}

    params = init_psinn_params(kp, num_att_heads, head_dim, edge_feat_dim)

    out = psinn_forward(params, X, node_index_dict, A, E, edge_index_dict)
    ref = psinn_reference(params, X, node_index_dict, A, E, edge_index_dict)

    for nt in NodeType:
        res = np.asarray(jax.block_until_ready(out[nt]))
        assert res.shape == X[nt].shape, (nt, res.shape)
        assert np.all(np.isfinite(res)), nt
        # bf16 MXU operands -> loose-but-meaningful tolerance vs. f32-ordered ref
        np.testing.assert_allclose(res, np.asarray(ref[nt]), rtol=5e-2, atol=5e-2)

    print("KERNEL_OK")
</pallas_src>

<mosaic_0001>
module attributes {stable_mosaic.version = 11 : i64} {
  func.func @psinn_kernel(%arg0: memref<24x32xf32, #tpu.memory_space<vmem>>, %arg1: memref<24x24xf32, #tpu.memory_space<vmem>>, %arg2: memref<8x24xf32, #tpu.memory_space<vmem>>, %arg3: memref<4x24x8xf32, #tpu.memory_space<vmem>>, %arg4: memref<3x32x96xbf16, #tpu.memory_space<vmem>>, %arg5: memref<3x96xf32, #tpu.memory_space<vmem>>, %arg6: memref<3x32x32xbf16, #tpu.memory_space<vmem>>, %arg7: memref<3x32xf32, #tpu.memory_space<vmem>>, %arg8: memref<3x32xf32, #tpu.memory_space<vmem>>, %arg9: memref<3x32xf32, #tpu.memory_space<vmem>>, %arg10: memref<4x24x8xf32, #tpu.memory_space<vmem>>, %arg11: memref<3x32x96xbf16, #tpu.memory_space<vmem>>, %arg12: memref<3x96xf32, #tpu.memory_space<vmem>>, %arg13: memref<3x32x32xbf16, #tpu.memory_space<vmem>>, %arg14: memref<3x32xf32, #tpu.memory_space<vmem>>, %arg15: memref<3x32xf32, #tpu.memory_space<vmem>>, %arg16: memref<3x32xf32, #tpu.memory_space<vmem>>, %arg17: memref<24x32xf32, #tpu.memory_space<vmem>>) attributes {dimension_semantics = [], scalar_prefetch = 0 : i64, scratch_operands = 0 : i64, tpu.core_type = #tpu.core_type<tc>} {
    %c0 = arith.constant 0 : index
    %c0_0 = arith.constant 0 : index
    %0 = vector.load %arg0[%c0, %c0_0] : memref<24x32xf32, #tpu.memory_space<vmem>>, vector<24x32xf32>
    %c0_1 = arith.constant 0 : index
    %c0_2 = arith.constant 0 : index
    %1 = vector.load %arg1[%c0_1, %c0_2] : memref<24x24xf32, #tpu.memory_space<vmem>>, vector<24x24xf32>
    %c0_3 = arith.constant 0 : index
    %c0_4 = arith.constant 0 : index
    %2 = vector.load %arg2[%c0_3, %c0_4] : memref<8x24xf32, #tpu.memory_space<vmem>>, vector<8x24xf32>
    %3 = vector.extract_strided_slice %0 {offsets = [0, 0], sizes = [8, 32], strides = [1, 1]} : vector<24x32xf32> to vector<8x32xf32>
    %4 = arith.truncf %3 : vector<8x32xf32> to vector<8x32xbf16>
    %c0_5 = arith.constant 0 : index
    %c0_6 = arith.constant 0 : index
    %c0_7 = arith.constant 0 : index
    %5 = vector.load %arg4[%c0_5, %c0_6, %c0_7] : memref<3x32x96xbf16, #tpu.memory_space<vmem>>, vector<1x32x96xbf16>
    %6 = vector.shape_cast %5 : vector<1x32x96xbf16> to vector<32x96xbf16>
    %cst = arith.constant dense<0.000000e+00> : vector<8x96xf32>
    %7 = tpu.matmul %4, %6, %cst {dimension_numbers = #tpu.dot_dimension_numbers<[1], [0], [0], [1], [0, 0, 1, 1], [], []>} : vector<8x32xbf16>, vector<32x96xbf16>, vector<8x96xf32> -> vector<8x96xf32>
    %c0_8 = arith.constant 0 : index
    %c0_9 = arith.constant 0 : index
    %8 = vector.load %arg5[%c0_8, %c0_9] : memref<3x96xf32, #tpu.memory_space<vmem>>, vector<1x96xf32>
    %9 = vector.broadcast %8 : vector<1x96xf32> to vector<8x96xf32>
    %10 = arith.addf %7, %9 : vector<8x96xf32>
    %11 = vector.extract_strided_slice %10 {offsets = [0, 0], sizes = [8, 32], strides = [1, 1]} : vector<8x96xf32> to vector<8x32xf32>
    %12 = vector.extract_strided_slice %10 {offsets = [0, 32], sizes = [8, 32], strides = [1, 1]} : vector<8x96xf32> to vector<8x32xf32>
    %13 = vector.extract_strided_slice %10 {offsets = [0, 64], sizes = [8, 32], strides = [1, 1]} : vector<8x96xf32> to vector<8x32xf32>
    %14 = vector.extract_strided_slice %0 {offsets = [8, 0], sizes = [8, 32], strides = [1, 1]} : vector<24x32xf32> to vector<8x32xf32>
    %15 = arith.truncf %14 : vector<8x32xf32> to vector<8x32xbf16>
    %c1 = arith.constant 1 : index
    %c0_10 = arith.constant 0 : index
    %c0_11 = arith.constant 0 : index
    %16 = vector.load %arg4[%c1, %c0_10, %c0_11] : memref<3x32x96xbf16, #tpu.memory_space<vmem>>, vector<1x32x96xbf16>
    %17 = vector.shape_cast %16 : vector<1x32x96xbf16> to vector<32x96xbf16>
    %cst_12 = arith.constant dense<0.000000e+00> : vector<8x96xf32>
    %18 = tpu.matmul %15, %17, %cst_12 {dimension_numbers = #tpu.dot_dimension_numbers<[1], [0], [0], [1], [0, 0, 1, 1], [], []>} : vector<8x32xbf16>, vector<32x96xbf16>, vector<8x96xf32> -> vector<8x96xf32>
    %c1_13 = arith.constant 1 : index
    %c0_14 = arith.constant 0 : index
    %19 = vector.load %arg5[%c1_13, %c0_14] : memref<3x96xf32, #tpu.memory_space<vmem>>, vector<1x96xf32>
    %20 = vector.broadcast %19 : vector<1x96xf32> to vector<8x96xf32>
    %21 = arith.addf %18, %20 : vector<8x96xf32>
    %22 = vector.extract_strided_slice %21 {offsets = [0, 0], sizes = [8, 32], strides = [1, 1]} : vector<8x96xf32> to vector<8x32xf32>
    %23 = vector.extract_strided_slice %21 {offsets = [0, 32], sizes = [8, 32], strides = [1, 1]} : vector<8x96xf32> to vector<8x32xf32>
    %24 = vector.extract_strided_slice %21 {offsets = [0, 64], sizes = [8, 32], strides = [1, 1]} : vector<8x96xf32> to vector<8x32xf32>
    %25 = vector.extract_strided_slice %0 {offsets = [16, 0], sizes = [8, 32], strides = [1, 1]} : vector<24x32xf32> to vector<8x32xf32>
    %26 = arith.truncf %25 : vector<8x32xf32> to vector<8x32xbf16>
    %c2 = arith.constant 2 : index
    %c0_15 = arith.constant 0 : index
    %c0_16 = arith.constant 0 : index
    %27 = vector.load %arg4[%c2, %c0_15, %c0_16] : memref<3x32x96xbf16, #tpu.memory_space<vmem>>, vector<1x32x96xbf16>
    %28 = vector.shape_cast %27 : vector<1x32x96xbf16> to vector<32x96xbf16>
    %cst_17 = arith.constant dense<0.000000e+00> : vector<8x96xf32>
    %29 = tpu.matmul %26, %28, %cst_17 {dimension_numbers = #tpu.dot_dimension_numbers<[1], [0], [0], [1], [0, 0, 1, 1], [], []>} : vector<8x32xbf16>, vector<32x96xbf16>, vector<8x96xf32> -> vector<8x96xf32>
    %c2_18 = arith.constant 2 : index
    %c0_19 = arith.constant 0 : index
    %30 = vector.load %arg5[%c2_18, %c0_19] : memref<3x96xf32, #tpu.memory_space<vmem>>, vector<1x96xf32>
    %31 = vector.broadcast %30 : vector<1x96xf32> to vector<8x96xf32>
    %32 = arith.addf %29, %31 : vector<8x96xf32>
    %33 = vector.extract_strided_slice %32 {offsets = [0, 0], sizes = [8, 32], strides = [1, 1]} : vector<8x96xf32> to vector<8x32xf32>
    %34 = vector.extract_strided_slice %32 {offsets = [0, 32], sizes = [8, 32], strides = [1, 1]} : vector<8x96xf32> to vector<8x32xf32>
    %35 = vector.extract_strided_slice %32 {offsets = [0, 64], sizes = [8, 32], strides = [1, 1]} : vector<8x96xf32> to vector<8x32xf32>
    %36 = tpu.concatenate %11, %22, %33 in 0 : vector<8x32xf32>, vector<8x32xf32>, vector<8x32xf32> -> vector<24x32xf32>
    %37 = vector.extract_strided_slice %36 {offsets = [0, 0], sizes = [24, 8], strides = [1, 1]} : vector<24x32xf32> to vector<24x8xf32>
    %38 = vector.extract_strided_slice %36 {offsets = [0, 8], sizes = [24, 8], strides = [1, 1]} : vector<24x32xf32> to vector<24x8xf32>
    %39 = vector.extract_strided_slice %36 {offsets = [0, 16], sizes = [24, 8], strides = [1, 1]} : vector<24x32xf32> to vector<24x8xf32>
    %40 = vector.extract_strided_slice %36 {offsets = [0, 24], sizes = [24, 8], strides = [1, 1]} : vector<24x32xf32> to vector<24x8xf32>
    %41 = vector.shape_cast %37 : vector<24x8xf32> to vector<1x24x8xf32>
    %42 = vector.shape_cast %38 : vector<24x8xf32> to vector<1x24x8xf32>
    %43 = vector.shape_cast %39 : vector<24x8xf32> to vector<1x24x8xf32>
    %44 = vector.shape_cast %40 : vector<24x8xf32> to vector<1x24x8xf32>
    %45 = tpu.concatenate %41, %42, %43, %44 in 0 : vector<1x24x8xf32>, vector<1x24x8xf32>, vector<1x24x8xf32>, vector<1x24x8xf32> -> vector<4x24x8xf32>
    %46 = arith.truncf %45 : vector<4x24x8xf32> to vector<4x24x8xbf16>
    %47 = tpu.concatenate %12, %23, %34 in 0 : vector<8x32xf32>, vector<8x32xf32>, vector<8x32xf32> -> vector<24x32xf32>
    %48 = vector.extract_strided_slice %47 {offsets = [0, 0], sizes = [24, 8], strides = [1, 1]} : vector<24x32xf32> to vector<24x8xf32>
    %49 = vector.extract_strided_slice %47 {offsets = [0, 8], sizes = [24, 8], strides = [1, 1]} : vector<24x32xf32> to vector<24x8xf32>
    %50 = vector.extract_strided_slice %47 {offsets = [0, 16], sizes = [24, 8], strides = [1, 1]} : vector<24x32xf32> to vector<24x8xf32>
    %51 = vector.extract_strided_slice %47 {offsets = [0, 24], sizes = [24, 8], strides = [1, 1]} : vector<24x32xf32> to vector<24x8xf32>
    %52 = vector.shape_cast %48 : vector<24x8xf32> to vector<1x24x8xf32>
    %53 = vector.shape_cast %49 : vector<24x8xf32> to vector<1x24x8xf32>
    %54 = vector.shape_cast %50 : vector<24x8xf32> to vector<1x24x8xf32>
    %55 = vector.shape_cast %51 : vector<24x8xf32> to vector<1x24x8xf32>
    %56 = tpu.concatenate %52, %53, %54, %55 in 0 : vector<1x24x8xf32>, vector<1x24x8xf32>, vector<1x24x8xf32>, vector<1x24x8xf32> -> vector<4x24x8xf32>
    %57 = arith.truncf %56 : vector<4x24x8xf32> to vector<4x24x8xbf16>
    %58 = tpu.concatenate %13, %24, %35 in 0 : vector<8x32xf32>, vector<8x32xf32>, vector<8x32xf32> -> vector<24x32xf32>
    %59 = vector.extract_strided_slice %58 {offsets = [0, 0], sizes = [24, 8], strides = [1, 1]} : vector<24x32xf32> to vector<24x8xf32>
    %60 = vector.extract_strided_slice %58 {offsets = [0, 8], sizes = [24, 8], strides = [1, 1]} : vector<24x32xf32> to vector<24x8xf32>
    %61 = vector.extract_strided_slice %58 {offsets = [0, 16], sizes = [24, 8], strides = [1, 1]} : vector<24x32xf32> to vector<24x8xf32>
    %62 = vector.extract_strided_slice %58 {offsets = [0, 24], sizes = [24, 8], strides = [1, 1]} : vector<24x32xf32> to vector<24x8xf32>
    %63 = vector.shape_cast %59 : vector<24x8xf32> to vector<1x24x8xf32>
    %64 = vector.shape_cast %60 : vector<24x8xf32> to vector<1x24x8xf32>
    %65 = vector.shape_cast %61 : vector<24x8xf32> to vector<1x24x8xf32>
    %66 = vector.shape_cast %62 : vector<24x8xf32> to vector<1x24x8xf32>
    %67 = tpu.concatenate %63, %64, %65, %66 in 0 : vector<1x24x8xf32>, vector<1x24x8xf32>, vector<1x24x8xf32>, vector<1x24x8xf32> -> vector<4x24x8xf32>
    %68 = arith.truncf %67 : vector<4x24x8xf32> to vector<4x24x8xbf16>
    %c0_20 = arith.constant 0 : index
    %c0_21 = arith.constant 0 : index
    %c0_22 = arith.constant 0 : index
    %69 = vector.load %arg3[%c0_20, %c0_21, %c0_22] : memref<4x24x8xf32, #tpu.memory_space<vmem>>, vector<4x24x8xf32>
    "tpu.trace_start"() <{level = 10 : i32, message = "hne,em->hnm"}> : () -> ()
    %cst_23 = arith.constant dense<0.000000e+00> : vector<4x24x24xf32>
    %70 = tpu.matmul %69, %2, %cst_23 {dimension_numbers = #tpu.dot_dimension_numbers<[2], [0], [0, 1], [1], [0, 0, 0, 1, 1, 1], [], []>} : vector<4x24x8xf32>, vector<8x24xf32>, vector<4x24x24xf32> -> vector<4x24x24xf32>
    "tpu.trace_stop"() : () -> ()
    "tpu.trace_start"() <{level = 10 : i32, message = "hqd,hkd->hqk"}> : () -> ()
    %cst_24 = arith.constant dense<0.000000e+00> : vector<4x24x24xf32>
    %71 = tpu.matmul %46, %57, %cst_24 {dimension_numbers = #tpu.dot_dimension_numbers<[2], [2], [1], [1], [0, 0, 0, 1, 1, 1], [0], [0]>} : vector<4x24x8xbf16>, vector<4x24x8xbf16>, vector<4x24x24xf32> -> vector<4x24x24xf32>
    "tpu.trace_stop"() : () -> ()
    %72 = arith.addf %71, %70 : vector<4x24x24xf32>
    %73 = vector.shape_cast %1 : vector<24x24xf32> to vector<1x24x24xf32>
    %74 = vector.broadcast %73 : vector<1x24x24xf32> to vector<4x24x24xf32>
    %75 = arith.addf %72, %74 : vector<4x24x24xf32>
    %cst_25 = arith.constant dense<0xFF800000> : vector<4x24xf32>
    %76 = vector.multi_reduction <maximumf>, %75, %cst_25 [2] : vector<4x24x24xf32> to vector<4x24xf32>
    %77 = vector.shape_cast %76 : vector<4x24xf32> to vector<4x24x1xf32>
    %78 = vector.broadcast %77 : vector<4x24x1xf32> to vector<4x24x24xf32>
    %79 = arith.subf %75, %78 : vector<4x24x24xf32>
    %80 = math.exp %79 : vector<4x24x24xf32>
    %cst_26 = arith.constant dense<0.000000e+00> : vector<4x24xf32>
    %81 = vector.multi_reduction <add>, %80, %cst_26 [2] : vector<4x24x24xf32> to vector<4x24xf32>
    %82 = vector.shape_cast %81 : vector<4x24xf32> to vector<4x24x1xf32>
    %83 = tpu.reciprocal %82 : vector<4x24x1xf32> -> vector<4x24x1xf32>
    %84 = vector.broadcast %83 : vector<4x24x1xf32> to vector<4x24x24xf32>
    %85 = arith.mulf %80, %84 : vector<4x24x24xf32>
    %86 = arith.truncf %85 : vector<4x24x24xf32> to vector<4x24x24xbf16>
    "tpu.trace_start"() <{level = 10 : i32, message = "hqk,hkd->hqd"}> : () -> ()
    %cst_27 = arith.constant dense<0.000000e+00> : vector<4x24x8xf32>
    %87 = tpu.matmul %86, %68, %cst_27 {dimension_numbers = #tpu.dot_dimension_numbers<[2], [1], [1], [2], [0, 0, 0, 1, 1, 2], [0], [0]>} : vector<4x24x24xbf16>, vector<4x24x8xbf16>, vector<4x24x8xf32> -> vector<4x24x8xf32>
    "tpu.trace_stop"() : () -> ()
    %88 = vector.extract_strided_slice %87 {offsets = [0, 0, 0], sizes = [1, 24, 8], strides = [1, 1, 1]} : vector<4x24x8xf32> to vector<1x24x8xf32>
    %89 = vector.shape_cast %88 : vector<1x24x8xf32> to vector<24x8xf32>
    %90 = vector.extract_strided_slice %87 {offsets = [1, 0, 0], sizes = [1, 24, 8], strides = [1, 1, 1]} : vector<4x24x8xf32> to vector<1x24x8xf32>
    %91 = vector.shape_cast %90 : vector<1x24x8xf32> to vector<24x8xf32>
    %92 = vector.extract_strided_slice %87 {offsets = [2, 0, 0], sizes = [1, 24, 8], strides = [1, 1, 1]} : vector<4x24x8xf32> to vector<1x24x8xf32>
    %93 = vector.shape_cast %92 : vector<1x24x8xf32> to vector<24x8xf32>
    %94 = vector.extract_strided_slice %87 {offsets = [3, 0, 0], sizes = [1, 24, 8], strides = [1, 1, 1]} : vector<4x24x8xf32> to vector<1x24x8xf32>
    %95 = vector.shape_cast %94 : vector<1x24x8xf32> to vector<24x8xf32>
    %96 = tpu.concatenate %89, %91, %93, %95 in 1 : vector<24x8xf32>, vector<24x8xf32>, vector<24x8xf32>, vector<24x8xf32> -> vector<24x32xf32>
    %97 = vector.extract_strided_slice %96 {offsets = [0, 0], sizes = [8, 32], strides = [1, 1]} : vector<24x32xf32> to vector<8x32xf32>
    %98 = arith.truncf %97 : vector<8x32xf32> to vector<8x32xbf16>
    %c0_28 = arith.constant 0 : index
    %c0_29 = arith.constant 0 : index
    %c0_30 = arith.constant 0 : index
    %99 = vector.load %arg6[%c0_28, %c0_29, %c0_30] : memref<3x32x32xbf16, #tpu.memory_space<vmem>>, vector<1x32x32xbf16>
    %100 = vector.shape_cast %99 : vector<1x32x32xbf16> to vector<32x32xbf16>
    %cst_31 = arith.constant dense<0.000000e+00> : vector<8x32xf32>
    %101 = tpu.matmul %98, %100, %cst_31 {dimension_numbers = #tpu.dot_dimension_numbers<[1], [0], [0], [1], [0, 0, 1, 1], [], []>} : vector<8x32xbf16>, vector<32x32xbf16>, vector<8x32xf32> -> vector<8x32xf32>
    %c0_32 = arith.constant 0 : index
    %c0_33 = arith.constant 0 : index
    %102 = vector.load %arg7[%c0_32, %c0_33] : memref<3x32xf32, #tpu.memory_space<vmem>>, vector<1x32xf32>
    %103 = vector.broadcast %102 : vector<1x32xf32> to vector<8x32xf32>
    %104 = arith.addf %101, %103 : vector<8x32xf32>
    %105 = vector.extract_strided_slice %96 {offsets = [8, 0], sizes = [8, 32], strides = [1, 1]} : vector<24x32xf32> to vector<8x32xf32>
    %106 = arith.truncf %105 : vector<8x32xf32> to vector<8x32xbf16>
    %c1_34 = arith.constant 1 : index
    %c0_35 = arith.constant 0 : index
    %c0_36 = arith.constant 0 : index
    %107 = vector.load %arg6[%c1_34, %c0_35, %c0_36] : memref<3x32x32xbf16, #tpu.memory_space<vmem>>, vector<1x32x32xbf16>
    %108 = vector.shape_cast %107 : vector<1x32x32xbf16> to vector<32x32xbf16>
    %cst_37 = arith.constant dense<0.000000e+00> : vector<8x32xf32>
    %109 = tpu.matmul %106, %108, %cst_37 {dimension_numbers = #tpu.dot_dimension_numbers<[1], [0], [0], [1], [0, 0, 1, 1], [], []>} : vector<8x32xbf16>, vector<32x32xbf16>, vector<8x32xf32> -> vector<8x32xf32>
    %c1_38 = arith.constant 1 : index
    %c0_39 = arith.constant 0 : index
    %110 = vector.load %arg7[%c1_38, %c0_39] : memref<3x32xf32, #tpu.memory_space<vmem>>, vector<1x32xf32>
    %111 = vector.broadcast %110 : vector<1x32xf32> to vector<8x32xf32>
    %112 = arith.addf %109, %111 : vector<8x32xf32>
    %113 = vector.extract_strided_slice %96 {offsets = [16, 0], sizes = [8, 32], strides = [1, 1]} : vector<24x32xf32> to vector<8x32xf32>
    %114 = arith.truncf %113 : vector<8x32xf32> to vector<8x32xbf16>
    %c2_40 = arith.constant 2 : index
    %c0_41 = arith.constant 0 : index
    %c0_42 = arith.constant 0 : index
    %115 = vector.load %arg6[%c2_40, %c0_41, %c0_42] : memref<3x32x32xbf16, #tpu.memory_space<vmem>>, vector<1x32x32xbf16>
    %116 = vector.shape_cast %115 : vector<1x32x32xbf16> to vector<32x32xbf16>
    %cst_43 = arith.constant dense<0.000000e+00> : vector<8x32xf32>
    %117 = tpu.matmul %114, %116, %cst_43 {dimension_numbers = #tpu.dot_dimension_numbers<[1], [0], [0], [1], [0, 0, 1, 1], [], []>} : vector<8x32xbf16>, vector<32x32xbf16>, vector<8x32xf32> -> vector<8x32xf32>
    %c2_44 = arith.constant 2 : index
    %c0_45 = arith.constant 0 : index
    %118 = vector.load %arg7[%c2_44, %c0_45] : memref<3x32xf32, #tpu.memory_space<vmem>>, vector<1x32xf32>
    %119 = vector.broadcast %118 : vector<1x32xf32> to vector<8x32xf32>
    %120 = arith.addf %117, %119 : vector<8x32xf32>
    %121 = tpu.concatenate %104, %112, %120 in 0 : vector<8x32xf32>, vector<8x32xf32>, vector<8x32xf32> -> vector<24x32xf32>
    %122 = vector.extract_strided_slice %121 {offsets = [0, 0], sizes = [8, 32], strides = [1, 1]} : vector<24x32xf32> to vector<8x32xf32>
    %cst_46 = arith.constant dense<0.000000e+00> : vector<8xf32>
    %123 = vector.multi_reduction <add>, %122, %cst_46 [1] : vector<8x32xf32> to vector<8xf32>
    %124 = vector.shape_cast %123 : vector<8xf32> to vector<8x1xf32>
    %cst_47 = arith.constant 3.200000e+01 : f32
    %125 = vector.broadcast %cst_47 : f32 to vector<8x1xf32>
    %126 = arith.divf %124, %125 : vector<8x1xf32>
    %127 = arith.mulf %122, %122 : vector<8x32xf32>
    %cst_48 = arith.constant dense<0.000000e+00> : vector<8xf32>
    %128 = vector.multi_reduction <add>, %127, %cst_48 [1] : vector<8x32xf32> to vector<8xf32>
    %129 = vector.shape_cast %128 : vector<8xf32> to vector<8x1xf32>
    %cst_49 = arith.constant 3.200000e+01 : f32
    %130 = vector.broadcast %cst_49 : f32 to vector<8x1xf32>
    %131 = arith.divf %129, %130 : vector<8x1xf32>
    %132 = arith.mulf %126, %126 : vector<8x1xf32>
    %133 = arith.subf %131, %132 : vector<8x1xf32>
    %134 = vector.broadcast %126 : vector<8x1xf32> to vector<8x32xf32>
    %135 = arith.subf %122, %134 : vector<8x32xf32>
    %cst_50 = arith.constant 9.99999974E-6 : f32
    %136 = vector.broadcast %cst_50 : f32 to vector<8x1xf32>
    %137 = arith.addf %133, %136 : vector<8x1xf32>
    %138 = math.rsqrt %137 : vector<8x1xf32>
    %139 = vector.broadcast %138 : vector<8x1xf32> to vector<8x32xf32>
    %140 = arith.mulf %135, %139 : vector<8x32xf32>
    %c0_51 = arith.constant 0 : index
    %c0_52 = arith.constant 0 : index
    %141 = vector.load %arg8[%c0_51, %c0_52] : memref<3x32xf32, #tpu.memory_space<vmem>>, vector<1x32xf32>
    %142 = vector.broadcast %141 : vector<1x32xf32> to vector<8x32xf32>
    %143 = arith.mulf %140, %142 : vector<8x32xf32>
    %c0_53 = arith.constant 0 : index
    %c0_54 = arith.constant 0 : index
    %144 = vector.load %arg9[%c0_53, %c0_54] : memref<3x32xf32, #tpu.memory_space<vmem>>, vector<1x32xf32>
    %145 = vector.broadcast %144 : vector<1x32xf32> to vector<8x32xf32>
    %146 = arith.addf %143, %145 : vector<8x32xf32>
    %147 = vector.extract_strided_slice %0 {offsets = [0, 0], sizes = [8, 32], strides = [1, 1]} : vector<24x32xf32> to vector<8x32xf32>
    %148 = arith.addf %146, %147 : vector<8x32xf32>
    %149 = vector.extract_strided_slice %121 {offsets = [8, 0], sizes = [8, 32], strides = [1, 1]} : vector<24x32xf32> to vector<8x32xf32>
    %cst_55 = arith.constant dense<0.000000e+00> : vector<8xf32>
    %150 = vector.multi_reduction <add>, %149, %cst_55 [1] : vector<8x32xf32> to vector<8xf32>
    %151 = vector.shape_cast %150 : vector<8xf32> to vector<8x1xf32>
    %cst_56 = arith.constant 3.200000e+01 : f32
    %152 = vector.broadcast %cst_56 : f32 to vector<8x1xf32>
    %153 = arith.divf %151, %152 : vector<8x1xf32>
    %154 = arith.mulf %149, %149 : vector<8x32xf32>
    %cst_57 = arith.constant dense<0.000000e+00> : vector<8xf32>
    %155 = vector.multi_reduction <add>, %154, %cst_57 [1] : vector<8x32xf32> to vector<8xf32>
    %156 = vector.shape_cast %155 : vector<8xf32> to vector<8x1xf32>
    %cst_58 = arith.constant 3.200000e+01 : f32
    %157 = vector.broadcast %cst_58 : f32 to vector<8x1xf32>
    %158 = arith.divf %156, %157 : vector<8x1xf32>
    %159 = arith.mulf %153, %153 : vector<8x1xf32>
    %160 = arith.subf %158, %159 : vector<8x1xf32>
    %161 = vector.broadcast %153 : vector<8x1xf32> to vector<8x32xf32>
    %162 = arith.subf %149, %161 : vector<8x32xf32>
    %cst_59 = arith.constant 9.99999974E-6 : f32
    %163 = vector.broadcast %cst_59 : f32 to vector<8x1xf32>
    %164 = arith.addf %160, %163 : vector<8x1xf32>
    %165 = math.rsqrt %164 : vector<8x1xf32>
    %166 = vector.broadcast %165 : vector<8x1xf32> to vector<8x32xf32>
    %167 = arith.mulf %162, %166 : vector<8x32xf32>
    %c1_60 = arith.constant 1 : index
    %c0_61 = arith.constant 0 : index
    %168 = vector.load %arg8[%c1_60, %c0_61] : memref<3x32xf32, #tpu.memory_space<vmem>>, vector<1x32xf32>
    %169 = vector.broadcast %168 : vector<1x32xf32> to vector<8x32xf32>
    %170 = arith.mulf %167, %169 : vector<8x32xf32>
    %c1_62 = arith.constant 1 : index
    %c0_63 = arith.constant 0 : index
    %171 = vector.load %arg9[%c1_62, %c0_63] : memref<3x32xf32, #tpu.memory_space<vmem>>, vector<1x32xf32>
    %172 = vector.broadcast %171 : vector<1x32xf32> to vector<8x32xf32>
    %173 = arith.addf %170, %172 : vector<8x32xf32>
    %174 = vector.extract_strided_slice %0 {offsets = [8, 0], sizes = [8, 32], strides = [1, 1]} : vector<24x32xf32> to vector<8x32xf32>
    %175 = arith.addf %173, %174 : vector<8x32xf32>
    %176 = vector.extract_strided_slice %121 {offsets = [16, 0], sizes = [8, 32], strides = [1, 1]} : vector<24x32xf32> to vector<8x32xf32>
    %cst_64 = arith.constant dense<0.000000e+00> : vector<8xf32>
    %177 = vector.multi_reduction <add>, %176, %cst_64 [1] : vector<8x32xf32> to vector<8xf32>
    %178 = vector.shape_cast %177 : vector<8xf32> to vector<8x1xf32>
    %cst_65 = arith.constant 3.200000e+01 : f32
    %179 = vector.broadcast %cst_65 : f32 to vector<8x1xf32>
    %180 = arith.divf %178, %179 : vector<8x1xf32>
    %181 = arith.mulf %176, %176 : vector<8x32xf32>
    %cst_66 = arith.constant dense<0.000000e+00> : vector<8xf32>
    %182 = vector.multi_reduction <add>, %181, %cst_66 [1] : vector<8x32xf32> to vector<8xf32>
    %183 = vector.shape_cast %182 : vector<8xf32> to vector<8x1xf32>
    %cst_67 = arith.constant 3.200000e+01 : f32
    %184 = vector.broadcast %cst_67 : f32 to vector<8x1xf32>
    %185 = arith.divf %183, %184 : vector<8x1xf32>
    %186 = arith.mulf %180, %180 : vector<8x1xf32>
    %187 = arith.subf %185, %186 : vector<8x1xf32>
    %188 = vector.broadcast %180 : vector<8x1xf32> to vector<8x32xf32>
    %189 = arith.subf %176, %188 : vector<8x32xf32>
    %cst_68 = arith.constant 9.99999974E-6 : f32
    %190 = vector.broadcast %cst_68 : f32 to vector<8x1xf32>
    %191 = arith.addf %187, %190 : vector<8x1xf32>
    %192 = math.rsqrt %191 : vector<8x1xf32>
    %193 = vector.broadcast %192 : vector<8x1xf32> to vector<8x32xf32>
    %194 = arith.mulf %189, %193 : vector<8x32xf32>
    %c2_69 = arith.constant 2 : index
    %c0_70 = arith.constant 0 : index
    %195 = vector.load %arg8[%c2_69, %c0_70] : memref<3x32xf32, #tpu.memory_space<vmem>>, vector<1x32xf32>
    %196 = vector.broadcast %195 : vector<1x32xf32> to vector<8x32xf32>
    %197 = arith.mulf %194, %196 : vector<8x32xf32>
    %c2_71 = arith.constant 2 : index
    %c0_72 = arith.constant 0 : index
    %198 = vector.load %arg9[%c2_71, %c0_72] : memref<3x32xf32, #tpu.memory_space<vmem>>, vector<1x32xf32>
    %199 = vector.broadcast %198 : vector<1x32xf32> to vector<8x32xf32>
    %200 = arith.addf %197, %199 : vector<8x32xf32>
    %201 = vector.extract_strided_slice %0 {offsets = [16, 0], sizes = [8, 32], strides = [1, 1]} : vector<24x32xf32> to vector<8x32xf32>
    %202 = arith.addf %200, %201 : vector<8x32xf32>
    %203 = tpu.concatenate %148, %175, %202 in 0 : vector<8x32xf32>, vector<8x32xf32>, vector<8x32xf32> -> vector<24x32xf32>
    %204 = vector.extract_strided_slice %203 {offsets = [0, 0], sizes = [8, 32], strides = [1, 1]} : vector<24x32xf32> to vector<8x32xf32>
    %205 = arith.truncf %204 : vector<8x32xf32> to vector<8x32xbf16>
    %c0_73 = arith.constant 0 : index
    %c0_74 = arith.constant 0 : index
    %c0_75 = arith.constant 0 : index
    %206 = vector.load %arg11[%c0_73, %c0_74, %c0_75] : memref<3x32x96xbf16, #tpu.memory_space<vmem>>, vector<1x32x96xbf16>
    %207 = vector.shape_cast %206 : vector<1x32x96xbf16> to vector<32x96xbf16>
    %cst_76 = arith.constant dense<0.000000e+00> : vector<8x96xf32>
    %208 = tpu.matmul %205, %207, %cst_76 {dimension_numbers = #tpu.dot_dimension_numbers<[1], [0], [0], [1], [0, 0, 1, 1], [], []>} : vector<8x32xbf16>, vector<32x96xbf16>, vector<8x96xf32> -> vector<8x96xf32>
    %c0_77 = arith.constant 0 : index
    %c0_78 = arith.constant 0 : index
    %209 = vector.load %arg12[%c0_77, %c0_78] : memref<3x96xf32, #tpu.memory_space<vmem>>, vector<1x96xf32>
    %210 = vector.broadcast %209 : vector<1x96xf32> to vector<8x96xf32>
    %211 = arith.addf %208, %210 : vector<8x96xf32>
    %212 = vector.extract_strided_slice %211 {offsets = [0, 0], sizes = [8, 32], strides = [1, 1]} : vector<8x96xf32> to vector<8x32xf32>
    %213 = vector.extract_strided_slice %211 {offsets = [0, 32], sizes = [8, 32], strides = [1, 1]} : vector<8x96xf32> to vector<8x32xf32>
    %214 = vector.extract_strided_slice %211 {offsets = [0, 64], sizes = [8, 32], strides = [1, 1]} : vector<8x96xf32> to vector<8x32xf32>
    %215 = vector.extract_strided_slice %203 {offsets = [8, 0], sizes = [8, 32], strides = [1, 1]} : vector<24x32xf32> to vector<8x32xf32>
    %216 = arith.truncf %215 : vector<8x32xf32> to vector<8x32xbf16>
    %c1_79 = arith.constant 1 : index
    %c0_80 = arith.constant 0 : index
    %c0_81 = arith.constant 0 : index
    %217 = vector.load %arg11[%c1_79, %c0_80, %c0_81] : memref<3x32x96xbf16, #tpu.memory_space<vmem>>, vector<1x32x96xbf16>
    %218 = vector.shape_cast %217 : vector<1x32x96xbf16> to vector<32x96xbf16>
    %cst_82 = arith.constant dense<0.000000e+00> : vector<8x96xf32>
    %219 = tpu.matmul %216, %218, %cst_82 {dimension_numbers = #tpu.dot_dimension_numbers<[1], [0], [0], [1], [0, 0, 1, 1], [], []>} : vector<8x32xbf16>, vector<32x96xbf16>, vector<8x96xf32> -> vector<8x96xf32>
    %c1_83 = arith.constant 1 : index
    %c0_84 = arith.constant 0 : index
    %220 = vector.load %arg12[%c1_83, %c0_84] : memref<3x96xf32, #tpu.memory_space<vmem>>, vector<1x96xf32>
    %221 = vector.broadcast %220 : vector<1x96xf32> to vector<8x96xf32>
    %222 = arith.addf %219, %221 : vector<8x96xf32>
    %223 = vector.extract_strided_slice %222 {offsets = [0, 0], sizes = [8, 32], strides = [1, 1]} : vector<8x96xf32> to vector<8x32xf32>
    %224 = vector.extract_strided_slice %222 {offsets = [0, 32], sizes = [8, 32], strides = [1, 1]} : vector<8x96xf32> to vector<8x32xf32>
    %225 = vector.extract_strided_slice %222 {offsets = [0, 64], sizes = [8, 32], strides = [1, 1]} : vector<8x96xf32> to vector<8x32xf32>
    %226 = vector.extract_strided_slice %203 {offsets = [16, 0], sizes = [8, 32], strides = [1, 1]} : vector<24x32xf32> to vector<8x32xf32>
    %227 = arith.truncf %226 : vector<8x32xf32> to vector<8x32xbf16>
    %c2_85 = arith.constant 2 : index
    %c0_86 = arith.constant 0 : index
    %c0_87 = arith.constant 0 : index
    %228 = vector.load %arg11[%c2_85, %c0_86, %c0_87] : memref<3x32x96xbf16, #tpu.memory_space<vmem>>, vector<1x32x96xbf16>
    %229 = vector.shape_cast %228 : vector<1x32x96xbf16> to vector<32x96xbf16>
    %cst_88 = arith.constant dense<0.000000e+00> : vector<8x96xf32>
    %230 = tpu.matmul %227, %229, %cst_88 {dimension_numbers = #tpu.dot_dimension_numbers<[1], [0], [0], [1], [0, 0, 1, 1], [], []>} : vector<8x32xbf16>, vector<32x96xbf16>, vector<8x96xf32> -> vector<8x96xf32>
    %c2_89 = arith.constant 2 : index
    %c0_90 = arith.constant 0 : index
    %231 = vector.load %arg12[%c2_89, %c0_90] : memref<3x96xf32, #tpu.memory_space<vmem>>, vector<1x96xf32>
    %232 = vector.broadcast %231 : vector<1x96xf32> to vector<8x96xf32>
    %233 = arith.addf %230, %232 : vector<8x96xf32>
    %234 = vector.extract_strided_slice %233 {offsets = [0, 0], sizes = [8, 32], strides = [1, 1]} : vector<8x96xf32> to vector<8x32xf32>
    %235 = vector.extract_strided_slice %233 {offsets = [0, 32], sizes = [8, 32], strides = [1, 1]} : vector<8x96xf32> to vector<8x32xf32>
    %236 = vector.extract_strided_slice %233 {offsets = [0, 64], sizes = [8, 32], strides = [1, 1]} : vector<8x96xf32> to vector<8x32xf32>
    %237 = tpu.concatenate %212, %223, %234 in 0 : vector<8x32xf32>, vector<8x32xf32>, vector<8x32xf32> -> vector<24x32xf32>
    %238 = vector.extract_strided_slice %237 {offsets = [0, 0], sizes = [24, 8], strides = [1, 1]} : vector<24x32xf32> to vector<24x8xf32>
    %239 = vector.extract_strided_slice %237 {offsets = [0, 8], sizes = [24, 8], strides = [1, 1]} : vector<24x32xf32> to vector<24x8xf32>
    %240 = vector.extract_strided_slice %237 {offsets = [0, 16], sizes = [24, 8], strides = [1, 1]} : vector<24x32xf32> to vector<24x8xf32>
    %241 = vector.extract_strided_slice %237 {offsets = [0, 24], sizes = [24, 8], strides = [1, 1]} : vector<24x32xf32> to vector<24x8xf32>
    %242 = vector.shape_cast %238 : vector<24x8xf32> to vector<1x24x8xf32>
    %243 = vector.shape_cast %239 : vector<24x8xf32> to vector<1x24x8xf32>
    %244 = vector.shape_cast %240 : vector<24x8xf32> to vector<1x24x8xf32>
    %245 = vector.shape_cast %241 : vector<24x8xf32> to vector<1x24x8xf32>
    %246 = tpu.concatenate %242, %243, %244, %245 in 0 : vector<1x24x8xf32>, vector<1x24x8xf32>, vector<1x24x8xf32>, vector<1x24x8xf32> -> vector<4x24x8xf32>
    %247 = arith.truncf %246 : vector<4x24x8xf32> to vector<4x24x8xbf16>
    %248 = tpu.concatenate %213, %224, %235 in 0 : vector<8x32xf32>, vector<8x32xf32>, vector<8x32xf32> -> vector<24x32xf32>
    %249 = vector.extract_strided_slice %248 {offsets = [0, 0], sizes = [24, 8], strides = [1, 1]} : vector<24x32xf32> to vector<24x8xf32>
    %250 = vector.extract_strided_slice %248 {offsets = [0, 8], sizes = [24, 8], strides = [1, 1]} : vector<24x32xf32> to vector<24x8xf32>
    %251 = vector.extract_strided_slice %248 {offsets = [0, 16], sizes = [24, 8], strides = [1, 1]} : vector<24x32xf32> to vector<24x8xf32>
    %252 = vector.extract_strided_slice %248 {offsets = [0, 24], sizes = [24, 8], strides = [1, 1]} : vector<24x32xf32> to vector<24x8xf32>
    %253 = vector.shape_cast %249 : vector<24x8xf32> to vector<1x24x8xf32>
    %254 = vector.shape_cast %250 : vector<24x8xf32> to vector<1x24x8xf32>
    %255 = vector.shape_cast %251 : vector<24x8xf32> to vector<1x24x8xf32>
    %256 = vector.shape_cast %252 : vector<24x8xf32> to vector<1x24x8xf32>
    %257 = tpu.concatenate %253, %254, %255, %256 in 0 : vector<1x24x8xf32>, vector<1x24x8xf32>, vector<1x24x8xf32>, vector<1x24x8xf32> -> vector<4x24x8xf32>
    %258 = arith.truncf %257 : vector<4x24x8xf32> to vector<4x24x8xbf16>
    %259 = tpu.concatenate %214, %225, %236 in 0 : vector<8x32xf32>, vector<8x32xf32>, vector<8x32xf32> -> vector<24x32xf32>
    %260 = vector.extract_strided_slice %259 {offsets = [0, 0], sizes = [24, 8], strides = [1, 1]} : vector<24x32xf32> to vector<24x8xf32>
    %261 = vector.extract_strided_slice %259 {offsets = [0, 8], sizes = [24, 8], strides = [1, 1]} : vector<24x32xf32> to vector<24x8xf32>
    %262 = vector.extract_strided_slice %259 {offsets = [0, 16], sizes = [24, 8], strides = [1, 1]} : vector<24x32xf32> to vector<24x8xf32>
    %263 = vector.extract_strided_slice %259 {offsets = [0, 24], sizes = [24, 8], strides = [1, 1]} : vector<24x32xf32> to vector<24x8xf32>
    %264 = vector.shape_cast %260 : vector<24x8xf32> to vector<1x24x8xf32>
    %265 = vector.shape_cast %261 : vector<24x8xf32> to vector<1x24x8xf32>
    %266 = vector.shape_cast %262 : vector<24x8xf32> to vector<1x24x8xf32>
    %267 = vector.shape_cast %263 : vector<24x8xf32> to vector<1x24x8xf32>
    %268 = tpu.concatenate %264, %265, %266, %267 in 0 : vector<1x24x8xf32>, vector<1x24x8xf32>, vector<1x24x8xf32>, vector<1x24x8xf32> -> vector<4x24x8xf32>
    %269 = arith.truncf %268 : vector<4x24x8xf32> to vector<4x24x8xbf16>
    %c0_91 = arith.constant 0 : index
    %c0_92 = arith.constant 0 : index
    %c0_93 = arith.constant 0 : index
    %270 = vector.load %arg10[%c0_91, %c0_92, %c0_93] : memref<4x24x8xf32, #tpu.memory_space<vmem>>, vector<4x24x8xf32>
    "tpu.trace_start"() <{level = 10 : i32, message = "hne,em->hnm"}> : () -> ()
    %cst_94 = arith.constant dense<0.000000e+00> : vector<4x24x24xf32>
    %271 = tpu.matmul %270, %2, %cst_94 {dimension_numbers = #tpu.dot_dimension_numbers<[2], [0], [0, 1], [1], [0, 0, 0, 1, 1, 1], [], []>} : vector<4x24x8xf32>, vector<8x24xf32>, vector<4x24x24xf32> -> vector<4x24x24xf32>
    "tpu.trace_stop"() : () -> ()
    "tpu.trace_start"() <{level = 10 : i32, message = "hqd,hkd->hqk"}> : () -> ()
    %cst_95 = arith.constant dense<0.000000e+00> : vector<4x24x24xf32>
    %272 = tpu.matmul %247, %258, %cst_95 {dimension_numbers = #tpu.dot_dimension_numbers<[2], [2], [1], [1], [0, 0, 0, 1, 1, 1], [0], [0]>} : vector<4x24x8xbf16>, vector<4x24x8xbf16>, vector<4x24x24xf32> -> vector<4x24x24xf32>
    "tpu.trace_stop"() : () -> ()
    %273 = arith.addf %272, %271 : vector<4x24x24xf32>
    %274 = vector.shape_cast %1 : vector<24x24xf32> to vector<1x24x24xf32>
    %275 = vector.broadcast %274 : vector<1x24x24xf32> to vector<4x24x24xf32>
    %276 = arith.addf %273, %275 : vector<4x24x24xf32>
    %cst_96 = arith.constant dense<0xFF800000> : vector<4x24xf32>
    %277 = vector.multi_reduction <maximumf>, %276, %cst_96 [2] : vector<4x24x24xf32> to vector<4x24xf32>
    %278 = vector.shape_cast %277 : vector<4x24xf32> to vector<4x24x1xf32>
    %279 = vector.broadcast %278 : vector<4x24x1xf32> to vector<4x24x24xf32>
    %280 = arith.subf %276, %279 : vector<4x24x24xf32>
    %281 = math.exp %280 : vector<4x24x24xf32>
    %cst_97 = arith.constant dense<0.000000e+00> : vector<4x24xf32>
    %282 = vector.multi_reduction <add>, %281, %cst_97 [2] : vector<4x24x24xf32> to vector<4x24xf32>
    %283 = vector.shape_cast %282 : vector<4x24xf32> to vector<4x24x1xf32>
    %284 = tpu.reciprocal %283 : vector<4x24x1xf32> -> vector<4x24x1xf32>
    %285 = vector.broadcast %284 : vector<4x24x1xf32> to vector<4x24x24xf32>
    %286 = arith.mulf %281, %285 : vector<4x24x24xf32>
    %287 = arith.truncf %286 : vector<4x24x24xf32> to vector<4x24x24xbf16>
    "tpu.trace_start"() <{level = 10 : i32, message = "hqk,hkd->hqd"}> : () -> ()
    %cst_98 = arith.constant dense<0.000000e+00> : vector<4x24x8xf32>
    %288 = tpu.matmul %287, %269, %cst_98 {dimension_numbers = #tpu.dot_dimension_numbers<[2], [1], [1], [2], [0, 0, 0, 1, 1, 2], [0], [0]>} : vector<4x24x24xbf16>, vector<4x24x8xbf16>, vector<4x24x8xf32> -> vector<4x24x8xf32>
    "tpu.trace_stop"() : () -> ()
    %289 = vector.extract_strided_slice %288 {offsets = [0, 0, 0], sizes = [1, 24, 8], strides = [1, 1, 1]} : vector<4x24x8xf32> to vector<1x24x8xf32>
    %290 = vector.shape_cast %289 : vector<1x24x8xf32> to vector<24x8xf32>
    %291 = vector.extract_strided_slice %288 {offsets = [1, 0, 0], sizes = [1, 24, 8], strides = [1, 1, 1]} : vector<4x24x8xf32> to vector<1x24x8xf32>
    %292 = vector.shape_cast %291 : vector<1x24x8xf32> to vector<24x8xf32>
    %293 = vector.extract_strided_slice %288 {offsets = [2, 0, 0], sizes = [1, 24, 8], strides = [1, 1, 1]} : vector<4x24x8xf32> to vector<1x24x8xf32>
    %294 = vector.shape_cast %293 : vector<1x24x8xf32> to vector<24x8xf32>
    %295 = vector.extract_strided_slice %288 {offsets = [3, 0, 0], sizes = [1, 24, 8], strides = [1, 1, 1]} : vector<4x24x8xf32> to vector<1x24x8xf32>
    %296 = vector.shape_cast %295 : vector<1x24x8xf32> to vector<24x8xf32>
    %297 = tpu.concatenate %290, %292, %294, %296 in 1 : vector<24x8xf32>, vector<24x8xf32>, vector<24x8xf32>, vector<24x8xf32> -> vector<24x32xf32>
    %298 = vector.extract_strided_slice %297 {offsets = [0, 0], sizes = [8, 32], strides = [1, 1]} : vector<24x32xf32> to vector<8x32xf32>
    %299 = arith.truncf %298 : vector<8x32xf32> to vector<8x32xbf16>
    %c0_99 = arith.constant 0 : index
    %c0_100 = arith.constant 0 : index
    %c0_101 = arith.constant 0 : index
    %300 = vector.load %arg13[%c0_99, %c0_100, %c0_101] : memref<3x32x32xbf16, #tpu.memory_space<vmem>>, vector<1x32x32xbf16>
    %301 = vector.shape_cast %300 : vector<1x32x32xbf16> to vector<32x32xbf16>
    %cst_102 = arith.constant dense<0.000000e+00> : vector<8x32xf32>
    %302 = tpu.matmul %299, %301, %cst_102 {dimension_numbers = #tpu.dot_dimension_numbers<[1], [0], [0], [1], [0, 0, 1, 1], [], []>} : vector<8x32xbf16>, vector<32x32xbf16>, vector<8x32xf32> -> vector<8x32xf32>
    %c0_103 = arith.constant 0 : index
    %c0_104 = arith.constant 0 : index
    %303 = vector.load %arg14[%c0_103, %c0_104] : memref<3x32xf32, #tpu.memory_space<vmem>>, vector<1x32xf32>
    %304 = vector.broadcast %303 : vector<1x32xf32> to vector<8x32xf32>
    %305 = arith.addf %302, %304 : vector<8x32xf32>
    %306 = vector.extract_strided_slice %297 {offsets = [8, 0], sizes = [8, 32], strides = [1, 1]} : vector<24x32xf32> to vector<8x32xf32>
    %307 = arith.truncf %306 : vector<8x32xf32> to vector<8x32xbf16>
    %c1_105 = arith.constant 1 : index
    %c0_106 = arith.constant 0 : index
    %c0_107 = arith.constant 0 : index
    %308 = vector.load %arg13[%c1_105, %c0_106, %c0_107] : memref<3x32x32xbf16, #tpu.memory_space<vmem>>, vector<1x32x32xbf16>
    %309 = vector.shape_cast %308 : vector<1x32x32xbf16> to vector<32x32xbf16>
    %cst_108 = arith.constant dense<0.000000e+00> : vector<8x32xf32>
    %310 = tpu.matmul %307, %309, %cst_108 {dimension_numbers = #tpu.dot_dimension_numbers<[1], [0], [0], [1], [0, 0, 1, 1], [], []>} : vector<8x32xbf16>, vector<32x32xbf16>, vector<8x32xf32> -> vector<8x32xf32>
    %c1_109 = arith.constant 1 : index
    %c0_110 = arith.constant 0 : index
    %311 = vector.load %arg14[%c1_109, %c0_110] : memref<3x32xf32, #tpu.memory_space<vmem>>, vector<1x32xf32>
    %312 = vector.broadcast %311 : vector<1x32xf32> to vector<8x32xf32>
    %313 = arith.addf %310, %312 : vector<8x32xf32>
    %314 = vector.extract_strided_slice %297 {offsets = [16, 0], sizes = [8, 32], strides = [1, 1]} : vector<24x32xf32> to vector<8x32xf32>
    %315 = arith.truncf %314 : vector<8x32xf32> to vector<8x32xbf16>
    %c2_111 = arith.constant 2 : index
    %c0_112 = arith.constant 0 : index
    %c0_113 = arith.constant 0 : index
    %316 = vector.load %arg13[%c2_111, %c0_112, %c0_113] : memref<3x32x32xbf16, #tpu.memory_space<vmem>>, vector<1x32x32xbf16>
    %317 = vector.shape_cast %316 : vector<1x32x32xbf16> to vector<32x32xbf16>
    %cst_114 = arith.constant dense<0.000000e+00> : vector<8x32xf32>
    %318 = tpu.matmul %315, %317, %cst_114 {dimension_numbers = #tpu.dot_dimension_numbers<[1], [0], [0], [1], [0, 0, 1, 1], [], []>} : vector<8x32xbf16>, vector<32x32xbf16>, vector<8x32xf32> -> vector<8x32xf32>
    %c2_115 = arith.constant 2 : index
    %c0_116 = arith.constant 0 : index
    %319 = vector.load %arg14[%c2_115, %c0_116] : memref<3x32xf32, #tpu.memory_space<vmem>>, vector<1x32xf32>
    %320 = vector.broadcast %319 : vector<1x32xf32> to vector<8x32xf32>
    %321 = arith.addf %318, %320 : vector<8x32xf32>
    %322 = tpu.concatenate %305, %313, %321 in 0 : vector<8x32xf32>, vector<8x32xf32>, vector<8x32xf32> -> vector<24x32xf32>
    %323 = vector.extract_strided_slice %322 {offsets = [0, 0], sizes = [8, 32], strides = [1, 1]} : vector<24x32xf32> to vector<8x32xf32>
    %cst_117 = arith.constant dense<0.000000e+00> : vector<8xf32>
    %324 = vector.multi_reduction <add>, %323, %cst_117 [1] : vector<8x32xf32> to vector<8xf32>
    %325 = vector.shape_cast %324 : vector<8xf32> to vector<8x1xf32>
    %cst_118 = arith.constant 3.200000e+01 : f32
    %326 = vector.broadcast %cst_118 : f32 to vector<8x1xf32>
    %327 = arith.divf %325, %326 : vector<8x1xf32>
    %328 = arith.mulf %323, %323 : vector<8x32xf32>
    %cst_119 = arith.constant dense<0.000000e+00> : vector<8xf32>
    %329 = vector.multi_reduction <add>, %328, %cst_119 [1] : vector<8x32xf32> to vector<8xf32>
    %330 = vector.shape_cast %329 : vector<8xf32> to vector<8x1xf32>
    %cst_120 = arith.constant 3.200000e+01 : f32
    %331 = vector.broadcast %cst_120 : f32 to vector<8x1xf32>
    %332 = arith.divf %330, %331 : vector<8x1xf32>
    %333 = arith.mulf %327, %327 : vector<8x1xf32>
    %334 = arith.subf %332, %333 : vector<8x1xf32>
    %335 = vector.broadcast %327 : vector<8x1xf32> to vector<8x32xf32>
    %336 = arith.subf %323, %335 : vector<8x32xf32>
    %cst_121 = arith.constant 9.99999974E-6 : f32
    %337 = vector.broadcast %cst_121 : f32 to vector<8x1xf32>
    %338 = arith.addf %334, %337 : vector<8x1xf32>
    %339 = math.rsqrt %338 : vector<8x1xf32>
    %340 = vector.broadcast %339 : vector<8x1xf32> to vector<8x32xf32>
    %341 = arith.mulf %336, %340 : vector<8x32xf32>
    %c0_122 = arith.constant 0 : index
    %c0_123 = arith.constant 0 : index
    %342 = vector.load %arg15[%c0_122, %c0_123] : memref<3x32xf32, #tpu.memory_space<vmem>>, vector<1x32xf32>
    %343 = vector.broadcast %342 : vector<1x32xf32> to vector<8x32xf32>
    %344 = arith.mulf %341, %343 : vector<8x32xf32>
    %c0_124 = arith.constant 0 : index
    %c0_125 = arith.constant 0 : index
    %345 = vector.load %arg16[%c0_124, %c0_125] : memref<3x32xf32, #tpu.memory_space<vmem>>, vector<1x32xf32>
    %346 = vector.broadcast %345 : vector<1x32xf32> to vector<8x32xf32>
    %347 = arith.addf %344, %346 : vector<8x32xf32>
    %348 = vector.extract_strided_slice %203 {offsets = [0, 0], sizes = [8, 32], strides = [1, 1]} : vector<24x32xf32> to vector<8x32xf32>
    %349 = arith.addf %347, %348 : vector<8x32xf32>
    %350 = vector.extract_strided_slice %322 {offsets = [8, 0], sizes = [8, 32], strides = [1, 1]} : vector<24x32xf32> to vector<8x32xf32>
    %cst_126 = arith.constant dense<0.000000e+00> : vector<8xf32>
    %351 = vector.multi_reduction <add>, %350, %cst_126 [1] : vector<8x32xf32> to vector<8xf32>
    %352 = vector.shape_cast %351 : vector<8xf32> to vector<8x1xf32>
    %cst_127 = arith.constant 3.200000e+01 : f32
    %353 = vector.broadcast %cst_127 : f32 to vector<8x1xf32>
    %354 = arith.divf %352, %353 : vector<8x1xf32>
    %355 = arith.mulf %350, %350 : vector<8x32xf32>
    %cst_128 = arith.constant dense<0.000000e+00> : vector<8xf32>
    %356 = vector.multi_reduction <add>, %355, %cst_128 [1] : vector<8x32xf32> to vector<8xf32>
    %357 = vector.shape_cast %356 : vector<8xf32> to vector<8x1xf32>
    %cst_129 = arith.constant 3.200000e+01 : f32
    %358 = vector.broadcast %cst_129 : f32 to vector<8x1xf32>
    %359 = arith.divf %357, %358 : vector<8x1xf32>
    %360 = arith.mulf %354, %354 : vector<8x1xf32>
    %361 = arith.subf %359, %360 : vector<8x1xf32>
    %362 = vector.broadcast %354 : vector<8x1xf32> to vector<8x32xf32>
    %363 = arith.subf %350, %362 : vector<8x32xf32>
    %cst_130 = arith.constant 9.99999974E-6 : f32
    %364 = vector.broadcast %cst_130 : f32 to vector<8x1xf32>
    %365 = arith.addf %361, %364 : vector<8x1xf32>
    %366 = math.rsqrt %365 : vector<8x1xf32>
    %367 = vector.broadcast %366 : vector<8x1xf32> to vector<8x32xf32>
    %368 = arith.mulf %363, %367 : vector<8x32xf32>
    %c1_131 = arith.constant 1 : index
    %c0_132 = arith.constant 0 : index
    %369 = vector.load %arg15[%c1_131, %c0_132] : memref<3x32xf32, #tpu.memory_space<vmem>>, vector<1x32xf32>
    %370 = vector.broadcast %369 : vector<1x32xf32> to vector<8x32xf32>
    %371 = arith.mulf %368, %370 : vector<8x32xf32>
    %c1_133 = arith.constant 1 : index
    %c0_134 = arith.constant 0 : index
    %372 = vector.load %arg16[%c1_133, %c0_134] : memref<3x32xf32, #tpu.memory_space<vmem>>, vector<1x32xf32>
    %373 = vector.broadcast %372 : vector<1x32xf32> to vector<8x32xf32>
    %374 = arith.addf %371, %373 : vector<8x32xf32>
    %375 = vector.extract_strided_slice %203 {offsets = [8, 0], sizes = [8, 32], strides = [1, 1]} : vector<24x32xf32> to vector<8x32xf32>
    %376 = arith.addf %374, %375 : vector<8x32xf32>
    %377 = vector.extract_strided_slice %322 {offsets = [16, 0], sizes = [8, 32], strides = [1, 1]} : vector<24x32xf32> to vector<8x32xf32>
    %cst_135 = arith.constant dense<0.000000e+00> : vector<8xf32>
    %378 = vector.multi_reduction <add>, %377, %cst_135 [1] : vector<8x32xf32> to vector<8xf32>
    %379 = vector.shape_cast %378 : vector<8xf32> to vector<8x1xf32>
    %cst_136 = arith.constant 3.200000e+01 : f32
    %380 = vector.broadcast %cst_136 : f32 to vector<8x1xf32>
    %381 = arith.divf %379, %380 : vector<8x1xf32>
    %382 = arith.mulf %377, %377 : vector<8x32xf32>
    %cst_137 = arith.constant dense<0.000000e+00> : vector<8xf32>
    %383 = vector.multi_reduction <add>, %382, %cst_137 [1] : vector<8x32xf32> to vector<8xf32>
    %384 = vector.shape_cast %383 : vector<8xf32> to vector<8x1xf32>
    %cst_138 = arith.constant 3.200000e+01 : f32
    %385 = vector.broadcast %cst_138 : f32 to vector<8x1xf32>
    %386 = arith.divf %384, %385 : vector<8x1xf32>
    %387 = arith.mulf %381, %381 : vector<8x1xf32>
    %388 = arith.subf %386, %387 : vector<8x1xf32>
    %389 = vector.broadcast %381 : vector<8x1xf32> to vector<8x32xf32>
    %390 = arith.subf %377, %389 : vector<8x32xf32>
    %cst_139 = arith.constant 9.99999974E-6 : f32
    %391 = vector.broadcast %cst_139 : f32 to vector<8x1xf32>
    %392 = arith.addf %388, %391 : vector<8x1xf32>
    %393 = math.rsqrt %392 : vector<8x1xf32>
    %394 = vector.broadcast %393 : vector<8x1xf32> to vector<8x32xf32>
    %395 = arith.mulf %390, %394 : vector<8x32xf32>
    %c2_140 = arith.constant 2 : index
    %c0_141 = arith.constant 0 : index
    %396 = vector.load %arg15[%c2_140, %c0_141] : memref<3x32xf32, #tpu.memory_space<vmem>>, vector<1x32xf32>
    %397 = vector.broadcast %396 : vector<1x32xf32> to vector<8x32xf32>
    %398 = arith.mulf %395, %397 : vector<8x32xf32>
    %c2_142 = arith.constant 2 : index
    %c0_143 = arith.constant 0 : index
    %399 = vector.load %arg16[%c2_142, %c0_143] : memref<3x32xf32, #tpu.memory_space<vmem>>, vector<1x32xf32>
    %400 = vector.broadcast %399 : vector<1x32xf32> to vector<8x32xf32>
    %401 = arith.addf %398, %400 : vector<8x32xf32>
    %402 = vector.extract_strided_slice %203 {offsets = [16, 0], sizes = [8, 32], strides = [1, 1]} : vector<24x32xf32> to vector<8x32xf32>
    %403 = arith.addf %401, %402 : vector<8x32xf32>
    %404 = tpu.concatenate %349, %376, %403 in 0 : vector<8x32xf32>, vector<8x32xf32>, vector<8x32xf32> -> vector<24x32xf32>
    %c0_144 = arith.constant 0 : index
    %c0_145 = arith.constant 0 : index
    %405 = vector.load %arg17[%c0_144, %c0_145] : memref<24x32xf32, #tpu.memory_space<vmem>>, vector<24x32xf32>
    tpu.vector_store %arg17[%c0_144, %c0_145], %404 {strides = array<i32>} : memref<24x32xf32, #tpu.memory_space<vmem>>, vector<24x32xf32>,
    return
  }
}

</mosaic_0001>

<llo_original>
// kernel: tpu_custom_call.1
$region0: #{tpu_custom_call.1}
  #allocation0 [shape = 'u32[]', space=smem, size = 0x4, offset = 0x4, fixed_abs, tag = 'smem constant byte address 0x4 - core index']
  #allocation1 [shape = 'u32[144,128]{1,0:T(1,128)}', space=vmem, size = 0x12000, scoped, tag = 'internal scratch']
  %s0 = inlined_call_operand.vmem [shape: f32[24,32], index: 0, kind: input, shape index: {}]
  %s1 = inlined_call_operand.hbm [shape: f32[24,24], index: 1, kind: input, shape index: {}]
  %s2 = inlined_call_operand.vmem [shape: f32[8,24], index: 2, kind: input, shape index: {}]
  %s3 = inlined_call_operand.vmem [shape: f32[4,24,8], index: 3, kind: input, shape index: {}]
  %s4 = inlined_call_operand.vmem [shape: bf16[3,32,96], index: 4, kind: input, shape index: {}]
  %s5 = inlined_call_operand.vmem [shape: f32[3,96], index: 5, kind: input, shape index: {}]
  %s6 = inlined_call_operand.vmem [shape: bf16[3,32,32], index: 6, kind: input, shape index: {}]
  %s7 = inlined_call_operand.vmem [shape: f32[3,32], index: 7, kind: input, shape index: {}]
  %s8 = inlined_call_operand.vmem [shape: f32[3,32], index: 8, kind: input, shape index: {}]
  %s9 = inlined_call_operand.vmem [shape: f32[3,32], index: 9, kind: input, shape index: {}]
  %s10 = inlined_call_operand.vmem [shape: f32[4,24,8], index: 10, kind: input, shape index: {}]
  %s11 = inlined_call_operand.vmem [shape: bf16[3,32,96], index: 11, kind: input, shape index: {}]
  %s12 = inlined_call_operand.vmem [shape: f32[3,96], index: 12, kind: input, shape index: {}]
  %s13 = inlined_call_operand.vmem [shape: bf16[3,32,32], index: 13, kind: input, shape index: {}]
  %s14 = inlined_call_operand.vmem [shape: f32[3,32], index: 14, kind: input, shape index: {}]
  %s15 = inlined_call_operand.vmem [shape: f32[3,32], index: 15, kind: input, shape index: {}]
  %s16 = inlined_call_operand.vmem [shape: f32[3,32], index: 16, kind: input, shape index: {}]
  %s17 = inlined_call_operand.hbm [shape: f32[24,32], index: 17, kind: output, shape index: {}]
  %s18 = sld [smem:[#allocation0]]
  $region82: #{tpu_custom_call.1} parent=0
    _
  %s20 = ssub.s32 1, %s18
  %s21 = scalar_select 0, %s20, %s18
  $region1: #{tpu_custom_call.1} parent=0
    #allocation2 [shape = 'u8[12288]{0}', space=vmem, size = 0x3000, scoped, tag = 'input window, operand 1, single buffered']
    #allocation3 [shape = 's32[1]{0}', space=sflag, size = 0x4, scoped, tag = 'scoped memory for tpu_custom_call.1']
    #allocation4 [shape = 's32[1]{0}', space=sflag, size = 0x4, scoped, tag = 'scoped memory for tpu_custom_call.1']
    #allocation5 [shape = 'u8[12288]{0}', space=vmem, size = 0x3000, scoped, tag = 'output window, operand 0, single buffered']
    %22 = vsyncpa [#allocation3], 0
    %23 = vsyncpa [#allocation4], 0
    // Predicated region
    $region2: #{tpu_custom_call.1} parent=1 // pred_check
      _
    $region3: #{tpu_custom_call.1} parent=1 // pred_check_branch
      %25 = sbr.rel (0) target = $region5
    $region4: #{tpu_custom_call.1} parent=1 // pred_region
      _
    $region5: #{tpu_custom_call.1} parent=1 // pred_fallthru
      _
    // Predicated region
    $region6: #{tpu_custom_call.1} parent=1 // pred_check
      _
    $region7: #{tpu_custom_call.1} parent=1 // pred_check_branch
      %27 = sbr.rel (0) target = $region9
    $region8: #{tpu_custom_call.1} parent=1 // pred_region
      %s29 = ssub.s32 384, 384
      %30 = vsyncadd [#allocation3], %s29
      %s31 = sshll.u32 [#allocation2], 4
      %s32 = int_to_ptr.vmem [resolvable:$true] %s31
      %37 = dma.hbm_to_vmem [thread:$0]  %s1, 384, %s32, [#allocation3], 128, 128, 8
    $region9: #{tpu_custom_call.1} parent=1 // pred_fallthru
      _
    // Predicated region
    $region10: #{tpu_custom_call.1} parent=1 // pred_check
      _
    $region11: #{tpu_custom_call.1} parent=1 // pred_check_branch
      %39 = sbr.rel (0) target = $region13
    $region12: #{tpu_custom_call.1} parent=1 // pred_region
      _
    $region13: #{tpu_custom_call.1} parent=1 // pred_fallthru
      _
    // Predicated region
    $region14: #{tpu_custom_call.1} parent=1 // pred_check
      _
    $region15: #{tpu_custom_call.1} parent=1 // pred_check_branch
      %41 = sbr.rel (0) target = $region17
    $region16: #{tpu_custom_call.1} parent=1 // pred_region
      _
    $region17: #{tpu_custom_call.1} parent=1 // pred_fallthru
      _
    // Predicated region
    $region18: #{tpu_custom_call.1} parent=1 // pred_check
      _
    $region19: #{tpu_custom_call.1} parent=1 // pred_check_branch
      %43 = sbr.rel (0) target = $region21
    $region20: #{tpu_custom_call.1} parent=1 // pred_region
      _
    $region21: #{tpu_custom_call.1} parent=1 // pred_fallthru
      _
    // Predicated region
    $region22: #{tpu_custom_call.1} parent=1 // pred_check
      _
    $region23: #{tpu_custom_call.1} parent=1 // pred_check_branch
      %45 = sbr.rel (0) target = $region25
    $region24: #{tpu_custom_call.1} parent=1 // pred_region
      _
    $region25: #{tpu_custom_call.1} parent=1 // pred_fallthru
      _
    // Predicated region
    $region26: #{tpu_custom_call.1} parent=1 // pred_check
      _
    $region27: #{tpu_custom_call.1} parent=1 // pred_check_branch
      %47 = sbr.rel (0) target = $region29
    $region28: #{tpu_custom_call.1} parent=1 // pred_region
      _
    $region29: #{tpu_custom_call.1} parent=1 // pred_fallthru
      _
    // Predicated region
    $region30: #{tpu_custom_call.1} parent=1 // pred_check
      _
    $region31: #{tpu_custom_call.1} parent=1 // pred_check_branch
      %49 = sbr.rel (0) target = $region33
    $region32: #{tpu_custom_call.1} parent=1 // pred_region
      _
    $region33: #{tpu_custom_call.1} parent=1 // pred_fallthru
      _
    // Predicated region
    $region34: #{tpu_custom_call.1} parent=1 // pred_check
      _
    $region35: #{tpu_custom_call.1} parent=1 // pred_check_branch
      %51 = sbr.rel (0) target = $region37
    $region36: #{tpu_custom_call.1} parent=1 // pred_region
      _
    $region37: #{tpu_custom_call.1} parent=1 // pred_fallthru
      _
    // Predicated region
    $region38: #{tpu_custom_call.1} parent=1 // pred_check
      _
    $region39: #{tpu_custom_call.1} parent=1 // pred_check_branch
      %53 = sbr.rel (0) target = $region41
    $region40: #{tpu_custom_call.1} parent=1 // pred_region
      _
    $region41: #{tpu_custom_call.1} parent=1 // pred_fallthru
      _
    // Predicated region
    $region42: #{tpu_custom_call.1} parent=1 // pred_check
      _
    $region43: #{tpu_custom_call.1} parent=1 // pred_check_branch
      %55 = sbr.rel (0) target = $region45
    $region44: #{tpu_custom_call.1} parent=1 // pred_region
      _
    $region45: #{tpu_custom_call.1} parent=1 // pred_fallthru
      _
    // Predicated region
    $region46: #{tpu_custom_call.1} parent=1 // pred_check
      _
    $region47: #{tpu_custom_call.1} parent=1 // pred_check_branch
      %57 = sbr.rel (0) target = $region49
    $region48: #{tpu_custom_call.1} parent=1 // pred_region
      _
    $region49: #{tpu_custom_call.1} parent=1 // pred_fallthru
      _
    // Predicated region
    $region50: #{tpu_custom_call.1} parent=1 // pred_check
      _
    $region51: #{tpu_custom_call.1} parent=1 // pred_check_branch
      %59 = sbr.rel (0) target = $region53
    $region52: #{tpu_custom_call.1} parent=1 // pred_region
      _
    $region53: #{tpu_custom_call.1} parent=1 // pred_fallthru
      _
    // Predicated region
    $region54: #{tpu_custom_call.1} parent=1 // pred_check
      _
    $region55: #{tpu_custom_call.1} parent=1 // pred_check_branch
      %61 = sbr.rel (0) target = $region57
    $region56: #{tpu_custom_call.1} parent=1 // pred_region
      _
    $region57: #{tpu_custom_call.1} parent=1 // pred_fallthru
      _
    // Predicated region
    $region58: #{tpu_custom_call.1} parent=1 // pred_check
      _
    $region59: #{tpu_custom_call.1} parent=1 // pred_check_branch
      %63 = sbr.rel (0) target = $region61
    $region60: #{tpu_custom_call.1} parent=1 // pred_region
      _
    $region61: #{tpu_custom_call.1} parent=1 // pred_fallthru
      _
    // Predicated region
    $region62: #{tpu_custom_call.1} parent=1 // pred_check
      _
    $region63: #{tpu_custom_call.1} parent=1 // pred_check_branch
      %65 = sbr.rel (0) target = $region65
    $region64: #{tpu_custom_call.1} parent=1 // pred_region
      _
    $region65: #{tpu_custom_call.1} parent=1 // pred_fallthru
      _
    // Predicated region
    $region66: #{tpu_custom_call.1} parent=1 // pred_check
      _
    $region67: #{tpu_custom_call.1} parent=1 // pred_check_branch
      %67 = sbr.rel (0) target = $region69
    $region68: #{tpu_custom_call.1} parent=1 // pred_region
      _
    $region69: #{tpu_custom_call.1} parent=1 // pred_fallthru
      _
    // Predicated region
    $region70: #{tpu_custom_call.1} parent=1 // pred_check
      _
    $region71: #{tpu_custom_call.1} parent=1 // pred_check_branch
      %69 = sbr.rel (0) target = $region73
    $region72: #{tpu_custom_call.1} parent=1 // pred_region
      %70 = dma.done [#allocation3], 384
    $region73: #{tpu_custom_call.1} parent=1 // pred_fallthru
      _
    %v72 = vld [vmem:[%s0] sm:$0xff]
    %v73 = vld [vmem:[%s0 + $0x8] sm:$0xff]
    %v74 = vld [vmem:[%s0 + $0x10] sm:$0xff]
    %v75 = vld [vmem:[#allocation2] sm:$0xff]
    %v76 = vld [vmem:[#allocation2 + $0x8] sm:$0xff]
    %v77 = vld [vmem:[#allocation2 + $0x10] sm:$0xff]
    %v78 = vld [vmem:[%s2] sm:$0xff]
    %v79 = vpack.c.bf16 %v72, %v72
    %v80 = vld [vmem:[%s4] sm:$0xf]
    %v81 = vld [vmem:[%s4 + $0x4] sm:$0xf]
    %v82 = vld [vmem:[%s4 + $0x8] sm:$0xf]
    %v83 = vld [vmem:[%s4 + $0xc] sm:$0xf]
    %v84 = vld [vmem:[%s5] sm:$0x1]
    %v85 = vlaneseq
    %v86 = vshrl.u32 %v85, 7
    %v87 = vsub.s32 0, %v86
    %v88 = vrot.slane %v84, %v87
    %v93 = vunpack.c.l.b16 %v80
    %v94 = vunpack.c.l.b16 %v81
    %v95 = vunpack.c.l.b16 %v82
    %v96 = vunpack.c.l.b16 %v83
    %v97 = vpack.c.b16 %v94, %v93
    %v98 = vpack.c.b16 %v96, %v95
    %vm101 = vcmask 261120
    %v103 = vsel %vm101, %v79, 0
    %105 = vmatprep.subr.bf16.mxu0 0
    %106 = vmatpush1.bf16.msra.mxu0 %v97
    %107 = vmatprep.subr.bf16.mxu0 0
    %108 = vmatpush1.bf16.msra.mxu0 %v98
    %109 = vmatprep.subr.bf16.mxu0 0
    %110 = vmatpush1.bf16.msra.mxu0 0
    %111 = vmatprep.subr.bf16.mxu0 0
    %112 = vmatpush1.bf16.msra.mxu0 0
    %113 = vmatprep.subr.bf16.mxu0 0
    %114 = vmatpush1.bf16.msra.mxu0 0
    %115 = vmatprep.subr.bf16.mxu0 0
    %116 = vmatpush1.bf16.msra.mxu0 0
    %117 = vmatprep.subr.bf16.mxu0 0
    %118 = vmatpush1.bf16.msra.mxu0 0
    %119 = vmatprep.subr.bf16.mxu0 0
    %120 = vmatpush1.bf16.msra.mxu0 0
    %121 = vmatprep.subr.bf16.mxu0 0
    %122 = vmatpush1.bf16.msra.mxu0 0
    %123 = vmatprep.subr.bf16.mxu0 0
    %124 = vmatpush1.bf16.msra.mxu0 0
    %125 = vmatprep.subr.bf16.mxu0 0
    %126 = vmatpush1.bf16.msra.mxu0 0
    %127 = vmatprep.subr.bf16.mxu0 0
    %128 = vmatpush1.bf16.msra.mxu0 0
    %129 = vmatprep.subr.bf16.mxu0 0
    %130 = vmatpush1.bf16.msra.mxu0 0
    %131 = vmatprep.subr.bf16.mxu0 0
    %132 = vmatpush1.bf16.msra.mxu0 0
    %133 = vmatprep.subr.bf16.mxu0 0
    %134 = vmatpush1.bf16.msra.mxu0 0
    %135 = vmatprep.subr.bf16.mxu0 0
    %136 = vmatpush1.bf16.msra.mxu0 0
    %137 = vmatprep.mubr.bf16.mxu0 0
    %138 = vmatmul.mubr.bf16.gmra.mrb[0].mxu0 %v103
    %v139 = vpop.f32.mrb[0].mxu0
    %v140 = vadd.f32 %v88, %v139
    %v141 = vpop.f32.mrb[0].mxu0
    %v142 = vpop.f32.mrb[0].mxu0
    %v143 = vpop.f32.mrb[0].mxu0
    %144 = vdwg.mxu0
    %v145 = vpack.c.bf16 %v73, %v73
    %s146 = scalar_lea.vmem %s4, 16
    %v147 = vld [vmem:[%s146] sm:$0xf]
    %v148 = vld [vmem:[%s146 + $0x4] sm:$0xf]
    %v149 = vld [vmem:[%s146 + $0x8] sm:$0xf]
    %v150 = vld [vmem:[%s146 + $0xc] sm:$0xf]
    %v151 = vld [vmem:[%s5 + $0x1] sm:$0x1]
    %v152 = vlaneseq
    %v153 = vshrl.u32 %v152, 7
    %v154 = vsub.s32 0, %v153
    %v155 = vrot.slane %v151, %v154
    %v160 = vunpack.c.l.b16 %v147
    %v161 = vunpack.c.l.b16 %v148
    %v162 = vunpack.c.l.b16 %v149
    %v163 = vunpack.c.l.b16 %v150
    %v164 = vpack.c.b16 %v161, %v160
    %v165 = vpack.c.b16 %v163, %v162
    %v169 = vsel %vm101, %v145, 0
    %171 = vmatprep.subr.bf16.mxu0 0
    %172 = vmatpush1.bf16.msra.mxu0 %v164
    %173 = vmatprep.subr.bf16.mxu0 0
    %174 = vmatpush1.bf16.msra.mxu0 %v165
    %175 = vmatprep.subr.bf16.mxu0 0
    %176 = vmatpush1.bf16.msra.mxu0 0
    %177 = vmatprep.subr.bf16.mxu0 0
    %178 = vmatpush1.bf16.msra.mxu0 0
    %179 = vmatprep.subr.bf16.mxu0 0
    %180 = vmatpush1.bf16.msra.mxu0 0
    %181 = vmatprep.subr.bf16.mxu0 0
    %182 = vmatpush1.bf16.msra.mxu0 0
    %183 = vmatprep.subr.bf16.mxu0 0
    %184 = vmatpush1.bf16.msra.mxu0 0
    %185 = vmatprep.subr.bf16.mxu0 0
    %186 = vmatpush1.bf16.msra.mxu0 0
    %187 = vmatprep.subr.bf16.mxu0 0
    %188 = vmatpush1.bf16.msra.mxu0 0
    %189 = vmatprep.subr.bf16.mxu0 0
    %190 = vmatpush1.bf16.msra.mxu0 0
    %191 = vmatprep.subr.bf16.mxu0 0
    %192 = vmatpush1.bf16.msra.mxu0 0
    %193 = vmatprep.subr.bf16.mxu0 0
    %194 = vmatpush1.bf16.msra.mxu0 0
    %195 = vmatprep.subr.bf16.mxu0 0
    %196 = vmatpush1.bf16.msra.mxu0 0
    %197 = vmatprep.subr.bf16.mxu0 0
    %198 = vmatpush1.bf16.msra.mxu0 0
    %199 = vmatprep.subr.bf16.mxu0 0
    %200 = vmatpush1.bf16.msra.mxu0 0
    %201 = vmatprep.subr.bf16.mxu0 0
    %202 = vmatpush1.bf16.msra.mxu0 0
    %203 = vmatprep.mubr.bf16.mxu0 0
    %204 = vmatmul.mubr.bf16.gmra.mrb[0].mxu0 %v169
    %v205 = vpop.f32.mrb[0].mxu0
    %v206 = vadd.f32 %v155, %v205
    %v207 = vpop.f32.mrb[0].mxu0
    %v208 = vpop.f32.mrb[0].mxu0
    %v209 = vpop.f32.mrb[0].mxu0
    %210 = vdwg.mxu0
    %v211 = vpack.c.bf16 %v74, %v74
    %s212 = scalar_lea.vmem %s4, 32
    %v213 = vld [vmem:[%s212] sm:$0xf]
    %v214 = vld [vmem:[%s212 + $0x4] sm:$0xf]
    %v215 = vld [vmem:[%s212 + $0x8] sm:$0xf]
    %v216 = vld [vmem:[%s212 + $0xc] sm:$0xf]
    %v217 = vld [vmem:[%s5 + $0x2] sm:$0x1]
    %v218 = vlaneseq
    %v219 = vshrl.u32 %v218, 7
    %v220 = vsub.s32 0, %v219
    %v221 = vrot.slane %v217, %v220
    %v226 = vunpack.c.l.b16 %v213
    %v227 = vunpack.c.l.b16 %v214
    %v228 = vunpack.c.l.b16 %v215
    %v229 = vunpack.c.l.b16 %v216
    %v230 = vpack.c.b16 %v227, %v226
    %v231 = vpack.c.b16 %v229, %v228
    %v235 = vsel %vm101, %v211, 0
    %237 = vmatprep.subr.bf16.mxu0 0
    %238 = vmatpush1.bf16.msra.mxu0 %v230
    %239 = vmatprep.subr.bf16.mxu0 0
    %240 = vmatpush1.bf16.msra.mxu0 %v231
    %241 = vmatprep.subr.bf16.mxu0 0
    %242 = vmatpush1.bf16.msra.mxu0 0
    %243 = vmatprep.subr.bf16.mxu0 0
    %244 = vmatpush1.bf16.msra.mxu0 0
    %245 = vmatprep.subr.bf16.mxu0 0
    %246 = vmatpush1.bf16.msra.mxu0 0
    %247 = vmatprep.subr.bf16.mxu0 0
    %248 = vmatpush1.bf16.msra.mxu0 0
    %249 = vmatprep.subr.bf16.mxu0 0
    %250 = vmatpush1.bf16.msra.mxu0 0
    %251 = vmatprep.subr.bf16.mxu0 0
    %252 = vmatpush1.bf16.msra.mxu0 0
    %253 = vmatprep.subr.bf16.mxu0 0
    %254 = vmatpush1.bf16.msra.mxu0 0
    %255 = vmatprep.subr.bf16.mxu0 0
    %256 = vmatpush1.bf16.msra.mxu0 0
    %257 = vmatprep.subr.bf16.mxu0 0
    %258 = vmatpush1.bf16.msra.mxu0 0
    %259 = vmatprep.subr.bf16.mxu0 0
    %260 = vmatpush1.bf16.msra.mxu0 0
    %261 = vmatprep.subr.bf16.mxu0 0
    %262 = vmatpush1.bf16.msra.mxu0 0
    %263 = vmatprep.subr.bf16.mxu0 0
    %264 = vmatpush1.bf16.msra.mxu0 0
    %265 = vmatprep.subr.bf16.mxu0 0
    %266 = vmatpush1.bf16.msra.mxu0 0
    %267 = vmatprep.subr.bf16.mxu0 0
    %268 = vmatpush1.bf16.msra.mxu0 0
    %269 = vmatprep.mubr.bf16.mxu0 0
    %270 = vmatmul.mubr.bf16.gmra.mrb[0].mxu0 %v235
    %v271 = vpop.f32.mrb[0].mxu0
    %v272 = vadd.f32 %v221, %v271
    %v273 = vpop.f32.mrb[0].mxu0
    %v274 = vpop.f32.mrb[0].mxu0
    %v275 = vpop.f32.mrb[0].mxu0
    %276 = vdwg.mxu0
    %280 = vrot.lane.b32.xlu0 %v140, 120
    %v281 = vpop.permute.xlu0 %280
    %282 = vrot.lane.b32.xlu0 %v206, 120
    %v283 = vpop.permute.xlu0 %282
    %284 = vrot.lane.b32.xlu0 %v272, 120
    %v285 = vpop.permute.xlu0 %284
    %289 = vrot.lane.b32.xlu0 %v140, 112
    %v290 = vpop.permute.xlu0 %289
    %291 = vrot.lane.b32.xlu0 %v206, 112
    %v292 = vpop.permute.xlu0 %291
    %293 = vrot.lane.b32.xlu0 %v272, 112
    %v294 = vpop.permute.xlu0 %293
    %298 = vrot.lane.b32.xlu0 %v140, 104
    %v299 = vpop.permute.xlu0 %298
    %300 = vrot.lane.b32.xlu0 %v206, 104
    %v301 = vpop.permute.xlu0 %300
    %302 = vrot.lane.b32.xlu0 %v272, 104
    %v303 = vpop.permute.xlu0 %302
    %v307 = vpack.c.bf16 %v206, %v140
    %v308 = vpack.c.bf16 %v272, %v272
    %v309 = vpack.c.bf16 %v283, %v281
    %v310 = vpack.c.bf16 %v285, %v285
    %v311 = vpack.c.bf16 %v292, %v290
    %v312 = vpack.c.bf16 %v294, %v294
    %v313 = vpack.c.bf16 %v301, %v299
    %v314 = vpack.c.bf16 %v303, %v303
    %v315 = vld [vmem:[%s3] sm:$0xff]
    %v316 = vld [vmem:[%s3 + $0x8] sm:$0xff]
    %v317 = vld [vmem:[%s3 + $0x10] sm:$0xff]
    %v318 = vld [vmem:[%s3 + $0x18] sm:$0xff]
    %v319 = vld [vmem:[%s3 + $0x20] sm:$0xff]
    %v320 = vld [vmem:[%s3 + $0x28] sm:$0xff]
    %v321 = vld [vmem:[%s3 + $0x30] sm:$0xff]
    %v322 = vld [vmem:[%s3 + $0x38] sm:$0xff]
    %v323 = vld [vmem:[%s3 + $0x40] sm:$0xff]
    %v324 = vld [vmem:[%s3 + $0x48] sm:$0xff]
    %v325 = vld [vmem:[%s3 + $0x50] sm:$0xff]
    %v326 = vld [vmem:[%s3 + $0x58] sm:$0xff]
    %vm327 = vcmask 64512
    %v329 = vsel %vm327, %v315, 0
    %v332 = vsel %vm327, %v316, 0
    %v335 = vsel %vm327, %v317, 0
    %v338 = vsel %vm327, %v318, 0
    %v341 = vsel %vm327, %v319, 0
    %v344 = vsel %vm327, %v320, 0
    %v347 = vsel %vm327, %v321, 0
    %v350 = vsel %vm327, %v322, 0
    %v353 = vsel %vm327, %v323, 0
    %v356 = vsel %vm327, %v324, 0
    %v359 = vsel %vm327, %v325, 0
    %v362 = vsel %vm327, %v326, 0
    %364 = vmatprep.subr.mxu0 0.0
    %365 = vmatpush1.msra.mxu0 %v78
    %366 = vmatprep.subr.mxu0 0.0
    %367 = vmatpush1.msra.mxu0 0.0
    %368 = vmatprep.subr.mxu0 0.0
    %369 = vmatpush1.msra.mxu0 0.0
    %370 = vmatprep.subr.mxu0 0.0
    %371 = vmatpush1.msra.mxu0 0.0
    %372 = vmatprep.subr.mxu0 0.0
    %373 = vmatpush1.msra.mxu0 0.0
    %374 = vmatprep.subr.mxu0 0.0
    %375 = vmatpush1.msra.mxu0 0.0
    %376 = vmatprep.subr.mxu0 0.0
    %377 = vmatpush1.msra.mxu0 0.0
    %378 = vmatprep.subr.mxu0 0.0
    %379 = vmatpush1.msra.mxu0 0.0
    %380 = vmatprep.subr.mxu0 0.0
    %381 = vmatpush1.msra.mxu0 0.0
    %382 = vmatprep.subr.mxu0 0.0
    %383 = vmatpush1.msra.mxu0 0.0
    %384 = vmatprep.subr.mxu0 0.0
    %385 = vmatpush1.msra.mxu0 0.0
    %386 = vmatprep.subr.mxu0 0.0
    %387 = vmatpush1.msra.mxu0 0.0
    %388 = vmatprep.subr.mxu0 0.0
    %389 = vmatpush1.msra.mxu0 0.0
    %390 = vmatprep.subr.mxu0 0.0
    %391 = vmatpush1.msra.mxu0 0.0
    %392 = vmatprep.subr.mxu0 0.0
    %393 = vmatpush1.msra.mxu0 0.0
    %394 = vmatprep.subr.mxu0 0.0
    %395 = vmatpush1.msra.mxu0 0.0
    %396 = vmatprep.subr.mxu0 0.0
    %397 = vmatpush1.msra.mxu0 0.0
    %398 = vmatprep.subr.mxu0 0.0
    %399 = vmatpush1.msra.mxu0 0.0
    %400 = vmatprep.subr.mxu0 0.0
    %401 = vmatpush1.msra.mxu0 0.0
    %402 = vmatprep.subr.mxu0 0.0
    %403 = vmatpush1.msra.mxu0 0.0
    %404 = vmatprep.subr.mxu0 0.0
    %405 = vmatpush1.msra.mxu0 0.0
    %406 = vmatprep.subr.mxu0 0.0
    %407 = vmatpush1.msra.mxu0 0.0
    %408 = vmatprep.subr.mxu0 0.0
    %409 = vmatpush1.msra.mxu0 0.0
    %410 = vmatprep.subr.mxu0 0.0
    %411 = vmatpush1.msra.mxu0 0.0
    %412 = vmatprep.subr.mxu0 0.0
    %413 = vmatpush1.msra.mxu0 0.0
    %414 = vmatprep.subr.mxu0 0.0
    %415 = vmatpush1.msra.mxu0 0.0
    %416 = vmatprep.subr.mxu0 0.0
    %417 = vmatpush1.msra.mxu0 0.0
    %418 = vmatprep.subr.mxu0 0.0
    %419 = vmatpush1.msra.mxu0 0.0
    %420 = vmatprep.subr.mxu0 0.0
    %421 = vmatpush1.msra.mxu0 0.0
    %422 = vmatprep.subr.mxu0 0.0
    %423 = vmatpush1.msra.mxu0 0.0
    %424 = vmatprep.subr.mxu0 0.0
    %425 = vmatpush1.msra.mxu0 0.0
    %426 = vmatprep.subr.mxu0 0.0
    %427 = vmatpush1.msra.mxu0 0.0
    %428 = vmatprep.mubr.f32.mxu0 0.0
    %429 = vmatmul.mubr.f32.gmra.mrb[0].mxu0 %v329
    %v430 = vpop.f32.mrb[0].mxu0
    %v431 = vadd.f32 0.0, %v430
    %v432 = vpop.f32.mrb[0].mxu0
    %433 = vmatprep.mubr.f32.mxu0 0.0
    %434 = vmatmul.mubr.f32.gmra.mrb[0].mxu0 %v332
    %v435 = vpop.f32.mrb[0].mxu0
    %v436 = vadd.f32 0.0, %v435
    %v437 = vpop.f32.mrb[0].mxu0
    %438 = vmatprep.mubr.f32.mxu0 0.0
    %439 = vmatmul.mubr.f32.gmra.mrb[0].mxu0 %v335
    %v440 = vpop.f32.mrb[0].mxu0
    %v441 = vadd.f32 0.0, %v440
    %v442 = vpop.f32.mrb[0].mxu0
    %443 = vmatprep.mubr.f32.mxu0 0.0
    %444 = vmatmul.mubr.f32.gmra.mrb[0].mxu0 %v338
    %v445 = vpop.f32.mrb[0].mxu0
    %v446 = vadd.f32 0.0, %v445
    %v447 = vpop.f32.mrb[0].mxu0
    %448 = vmatprep.mubr.f32.mxu0 0.0
    %449 = vmatmul.mubr.f32.gmra.mrb[0].mxu0 %v341
    %v450 = vpop.f32.mrb[0].mxu0
    %v451 = vadd.f32 0.0, %v450
    %v452 = vpop.f32.mrb[0].mxu0
    %453 = vmatprep.mubr.f32.mxu0 0.0
    %454 = vmatmul.mubr.f32.gmra.mrb[0].mxu0 %v344
    %v455 = vpop.f32.mrb[0].mxu0
    %v456 = vadd.f32 0.0, %v455
    %v457 = vpop.f32.mrb[0].mxu0
    %458 = vmatprep.mubr.f32.mxu0 0.0
    %459 = vmatmul.mubr.f32.gmra.mrb[0].mxu0 %v347
    %v460 = vpop.f32.mrb[0].mxu0
    %v461 = vadd.f32 0.0, %v460
    %v462 = vpop.f32.mrb[0].mxu0
    %463 = vmatprep.mubr.f32.mxu0 0.0
    %464 = vmatmul.mubr.f32.gmra.mrb[0].mxu0 %v350
    %v465 = vpop.f32.mrb[0].mxu0
    %v466 = vadd.f32 0.0, %v465
    %v467 = vpop.f32.mrb[0].mxu0
    %468 = vmatprep.mubr.f32.mxu0 0.0
    %469 = vmatmul.mubr.f32.gmra.mrb[0].mxu0 %v353
    %v470 = vpop.f32.mrb[0].mxu0
    %v471 = vadd.f32 0.0, %v470
    %v472 = vpop.f32.mrb[0].mxu0
    %473 = vmatprep.mubr.f32.mxu0 0.0
    %474 = vmatmul.mubr.f32.gmra.mrb[0].mxu0 %v356
    %v475 = vpop.f32.mrb[0].mxu0
    %v476 = vadd.f32 0.0, %v475
    %v477 = vpop.f32.mrb[0].mxu0
    %478 = vmatprep.mubr.f32.mxu0 0.0
    %479 = vmatmul.mubr.f32.gmra.mrb[0].mxu0 %v359
    %v480 = vpop.f32.mrb[0].mxu0
    %v481 = vadd.f32 0.0, %v480
    %v482 = vpop.f32.mrb[0].mxu0
    %483 = vmatprep.mubr.f32.mxu0 0.0
    %484 = vmatmul.mubr.f32.gmra.mrb[0].mxu0 %v362
    %v485 = vpop.f32.mrb[0].mxu0
    %v486 = vadd.f32 0.0, %v485
    %v487 = vpop.f32.mrb[0].mxu0
    %488 = vdwg.mxu0
    %491 = vrot.lane.b32.xlu0 %v307, 96
    %v492 = vpop.permute.xlu0 %491
    %493 = vrot.lane.b32.xlu0 %v308, 96
    %v494 = vpop.permute.xlu0 %493
    %v496 = vsel %vm327, %v307, 0
    %v499 = vsel %vm327, %v308, 0
    %v502 = vsel %vm327, %v492, 0
    %v505 = vsel %vm327, %v494, 0
    %507 = vmatprep.subr.bf16.mxu0 0
    %508 = vmatpush1.bf16.xpose.msra.mxu0 %v502
    %509 = vmatprep.subr.bf16.mxu0 0
    %510 = vmatpush1.bf16.xpose.msra.mxu0 %v505
    %511 = vmatprep.subr.bf16.mxu0 0
    %512 = vmatpush1.bf16.xpose.msra.mxu0 0
    %513 = vmatprep.subr.bf16.mxu0 0
    %514 = vmatpush1.bf16.xpose.msra.mxu0 0
    %515 = vmatprep.subr.bf16.mxu0 0
    %516 = vmatpush1.bf16.xpose.msra.mxu0 0
    %517 = vmatprep.subr.bf16.mxu0 0
    %518 = vmatpush1.bf16.xpose.msra.mxu0 0
    %519 = vmatprep.subr.bf16.mxu0 0
    %520 = vmatpush1.bf16.xpose.msra.mxu0 0
    %521 = vmatprep.subr.bf16.mxu0 0
    %522 = vmatpush1.bf16.xpose.msra.mxu0 0
    %523 = vmatprep.subr.bf16.mxu0 0
    %524 = vmatpush1.bf16.xpose.msra.mxu0 0
    %525 = vmatprep.subr.bf16.mxu0 0
    %526 = vmatpush1.bf16.xpose.msra.mxu0 0
    %527 = vmatprep.subr.bf16.mxu0 0
    %528 = vmatpush1.bf16.xpose.msra.mxu0 0
    %529 = vmatprep.subr.bf16.mxu0 0
    %530 = vmatpush1.bf16.xpose.msra.mxu0 0
    %531 = vmatprep.subr.bf16.mxu0 0
    %532 = vmatpush1.bf16.xpose.msra.mxu0 0
    %533 = vmatprep.subr.bf16.mxu0 0
    %534 = vmatpush1.bf16.xpose.msra.mxu0 0
    %535 = vmatprep.subr.bf16.mxu0 0
    %536 = vmatpush1.bf16.xpose.msra.mxu0 0
    %537 = vmatprep.subr.bf16.mxu0 0
    %538 = vmatpush1.bf16.xpose.msra.mxu0 0
    %539 = vmatprep.mubr.bf16.mxu0 0
    %540 = vmatmul.mubr.bf16.gmra.mrb[0].mxu0 %v496
    %v541 = vpop.f32.mrb[0].mxu0
    %v542 = vadd.f32 %v431, %v541
    %v543 = vpop.f32.mrb[0].mxu0
    %v544 = vpop.f32.mrb[0].mxu0
    %v545 = vadd.f32 %v436, %v544
    %v546 = vpop.f32.mrb[0].mxu0
    %547 = vmatprep.mubr.bf16.mxu0 0
    %548 = vmatmul.mubr.bf16.gmra.mrb[0].mxu0 %v499
    %v549 = vpop.f32.mrb[0].mxu0
    %v550 = vadd.f32 %v441, %v549
    %v551 = vpop.f32.mrb[0].mxu0
    %v552 = vpop.f32.mrb[0].mxu0
    %v553 = vpop.f32.mrb[0].mxu0
    %554 = vdwg.mxu0
    %557 = vrot.lane.b32.xlu0 %v309, 96
    %v558 = vpop.permute.xlu0 %557
    %559 = vrot.lane.b32.xlu0 %v310, 96
    %v560 = vpop.permute.xlu0 %559
    %v562 = vsel %vm327, %v309, 0
    %v565 = vsel %vm327, %v310, 0
    %v568 = vsel %vm327, %v558, 0
    %v571 = vsel %vm327, %v560, 0
    %573 = vmatprep.subr.bf16.mxu0 0
    %574 = vmatpush1.bf16.xpose.msra.mxu0 %v568
    %575 = vmatprep.subr.bf16.mxu0 0
    %576 = vmatpush1.bf16.xpose.msra.mxu0 %v571
    %577 = vmatprep.subr.bf16.mxu0 0
    %578 = vmatpush1.bf16.xpose.msra.mxu0 0
    %579 = vmatprep.subr.bf16.mxu0 0
    %580 = vmatpush1.bf16.xpose.msra.mxu0 0
    %581 = vmatprep.subr.bf16.mxu0 0
    %582 = vmatpush1.bf16.xpose.msra.mxu0 0
    %583 = vmatprep.subr.bf16.mxu0 0
    %584 = vmatpush1.bf16.xpose.msra.mxu0 0
    %585 = vmatprep.subr.bf16.mxu0 0
    %586 = vmatpush1.bf16.xpose.msra.mxu0 0
    %587 = vmatprep.subr.bf16.mxu0 0
    %588 = vmatpush1.bf16.xpose.msra.mxu0 0
    %589 = vmatprep.subr.bf16.mxu0 0
    %590 = vmatpush1.bf16.xpose.msra.mxu0 0
    %591 = vmatprep.subr.bf16.mxu0 0
    %592 = vmatpush1.bf16.xpose.msra.mxu0 0
    %593 = vmatprep.subr.bf16.mxu0 0
    %594 = vmatpush1.bf16.xpose.msra.mxu0 0
    %595 = vmatprep.subr.bf16.mxu0 0
    %596 = vmatpush1.bf16.xpose.msra.mxu0 0
    %597 = vmatprep.subr.bf16.mxu0 0
    %598 = vmatpush1.bf16.xpose.msra.mxu0 0
    %599 = vmatprep.subr.bf16.mxu0 0
    %600 = vmatpush1.bf16.xpose.msra.mxu0 0
    %601 = vmatprep.subr.bf16.mxu0 0
    %602 = vmatpush1.bf16.xpose.msra.mxu0 0
    %603 = vmatprep.subr.bf16.mxu0 0
    %604 = vmatpush1.bf16.xpose.msra.mxu0 0
    %605 = vmatprep.mubr.bf16.mxu0 0
    %606 = vmatmul.mubr.bf16.gmra.mrb[0].mxu0 %v562
    %v607 = vpop.f32.mrb[0].mxu0
    %v608 = vadd.f32 %v446, %v607
    %v609 = vpop.f32.mrb[0].mxu0
    %v610 = vpop.f32.mrb[0].mxu0
    %v611 = vadd.f32 %v451, %v610
    %v612 = vpop.f32.mrb[0].mxu0
    %613 = vmatprep.mubr.bf16.mxu0 0
    %614 = vmatmul.mubr.bf16.gmra.mrb[0].mxu0 %v565
    %v615 = vpop.f32.mrb[0].mxu0
    %v616 = vadd.f32 %v456, %v615
    %v617 = vpop.f32.mrb[0].mxu0
    %v618 = vpop.f32.mrb[0].mxu0
    %v619 = vpop.f32.mrb[0].mxu0
    %620 = vdwg.mxu0
    %623 = vrot.lane.b32.xlu0 %v311, 96
    %v624 = vpop.permute.xlu0 %623
    %625 = vrot.lane.b32.xlu0 %v312, 96
    %v626 = vpop.permute.xlu0 %625
    %v628 = vsel %vm327, %v311, 0
    %v631 = vsel %vm327, %v312, 0
    %v634 = vsel %vm327, %v624, 0
    %v637 = vsel %vm327, %v626, 0
    %639 = vmatprep.subr.bf16.mxu0 0
    %640 = vmatpush1.bf16.xpose.msra.mxu0 %v634
    %641 = vmatprep.subr.bf16.mxu0 0
    %642 = vmatpush1.bf16.xpose.msra.mxu0 %v637
    %643 = vmatprep.subr.bf16.mxu0 0
    %644 = vmatpush1.bf16.xpose.msra.mxu0 0
    %645 = vmatprep.subr.bf16.mxu0 0
    %646 = vmatpush1.bf16.xpose.msra.mxu0 0
    %647 = vmatprep.subr.bf16.mxu0 0
    %648 = vmatpush1.bf16.xpose.msra.mxu0 0
    %649 = vmatprep.subr.bf16.mxu0 0
    %650 = vmatpush1.bf16.xpose.msra.mxu0 0
    %651 = vmatprep.subr.bf16.mxu0 0
    %652 = vmatpush1.bf16.xpose.msra.mxu0 0
    %653 = vmatprep.subr.bf16.mxu0 0
    %654 = vmatpush1.bf16.xpose.msra.mxu0 0
    %655 = vmatprep.subr.bf16.mxu0 0
    %656 = vmatpush1.bf16.xpose.msra.mxu0 0
    %657 = vmatprep.subr.bf16.mxu0 0
    %658 = vmatpush1.bf16.xpose.msra.mxu0 0
    %659 = vmatprep.subr.bf16.mxu0 0
    %660 = vmatpush1.bf16.xpose.msra.mxu0 0
    %661 = vmatprep.subr.bf16.mxu0 0
    %662 = vmatpush1.bf16.xpose.msra.mxu0 0
    %663 = vmatprep.subr.bf16.mxu0 0
    %664 = vmatpush1.bf16.xpose.msra.mxu0 0
    %665 = vmatprep.subr.bf16.mxu0 0
    %666 = vmatpush1.bf16.xpose.msra.mxu0 0
    %667 = vmatprep.subr.bf16.mxu0 0
    %668 = vmatpush1.bf16.xpose.msra.mxu0 0
    %669 = vmatprep.subr.bf16.mxu0 0
    %670 = vmatpush1.bf16.xpose.msra.mxu0 0
    %671 = vmatprep.mubr.bf16.mxu0 0
    %672 = vmatmul.mubr.bf16.gmra.mrb[0].mxu0 %v628
    %v673 = vpop.f32.mrb[0].mxu0
    %v674 = vadd.f32 %v461, %v673
    %v675 = vpop.f32.mrb[0].mxu0
    %v676 = vpop.f32.mrb[0].mxu0
    %v677 = vadd.f32 %v466, %v676
    %v678 = vpop.f32.mrb[0].mxu0
    %679 = vmatprep.mubr.bf16.mxu0 0
    %680 = vmatmul.mubr.bf16.gmra.mrb[0].mxu0 %v631
    %v681 = vpop.f32.mrb[0].mxu0
    %v682 = vadd.f32 %v471, %v681
    %v683 = vpop.f32.mrb[0].mxu0
    %v684 = vpop.f32.mrb[0].mxu0
    %v685 = vpop.f32.mrb[0].mxu0
    %686 = vdwg.mxu0
    %689 = vrot.lane.b32.xlu0 %v313, 96
    %v690 = vpop.permute.xlu0 %689
    %691 = vrot.lane.b32.xlu0 %v314, 96
    %v692 = vpop.permute.xlu0 %691
    %v694 = vsel %vm327, %v313, 0
    %v697 = vsel %vm327, %v314, 0
    %v700 = vsel %vm327, %v690, 0
    %v703 = vsel %vm327, %v692, 0
    %705 = vmatprep.subr.bf16.mxu0 0
    %706 = vmatpush1.bf16.xpose.msra.mxu0 %v700
    %707 = vmatprep.subr.bf16.mxu0 0
    %708 = vmatpush1.bf16.xpose.msra.mxu0 %v703
    %709 = vmatprep.subr.bf16.mxu0 0
    %710 = vmatpush1.bf16.xpose.msra.mxu0 0
    %711 = vmatprep.subr.bf16.mxu0 0
    %712 = vmatpush1.bf16.xpose.msra.mxu0 0
    %713 = vmatprep.subr.bf16.mxu0 0
    %714 = vmatpush1.bf16.xpose.msra.mxu0 0
    %715 = vmatprep.subr.bf16.mxu0 0
    %716 = vmatpush1.bf16.xpose.msra.mxu0 0
    %717 = vmatprep.subr.bf16.mxu0 0
    %718 = vmatpush1.bf16.xpose.msra.mxu0 0
    %719 = vmatprep.subr.bf16.mxu0 0
    %720 = vmatpush1.bf16.xpose.msra.mxu0 0
    %721 = vmatprep.subr.bf16.mxu0 0
    %722 = vmatpush1.bf16.xpose.msra.mxu0 0
    %723 = vmatprep.subr.bf16.mxu0 0
    %724 = vmatpush1.bf16.xpose.msra.mxu0 0
    %725 = vmatprep.subr.bf16.mxu0 0
    %726 = vmatpush1.bf16.xpose.msra.mxu0 0
    %727 = vmatprep.subr.bf16.mxu0 0
    %728 = vmatpush1.bf16.xpose.msra.mxu0 0
    %729 = vmatprep.subr.bf16.mxu0 0
    %730 = vmatpush1.bf16.xpose.msra.mxu0 0
    %731 = vmatprep.subr.bf16.mxu0 0
    %732 = vmatpush1.bf16.xpose.msra.mxu0 0
    %733 = vmatprep.subr.bf16.mxu0 0
    %734 = vmatpush1.bf16.xpose.msra.mxu0 0
    %735 = vmatprep.subr.bf16.mxu0 0
    %736 = vmatpush1.bf16.xpose.msra.mxu0 0
    %737 = vmatprep.mubr.bf16.mxu0 0
    %738 = vmatmul.mubr.bf16.gmra.mrb[0].mxu0 %v694
    %v739 = vpop.f32.mrb[0].mxu0
    %v740 = vadd.f32 %v476, %v739
    %v741 = vpop.f32.mrb[0].mxu0
    %v742 = vpop.f32.mrb[0].mxu0
    %v743 = vadd.f32 %v481, %v742
    %v744 = vpop.f32.mrb[0].mxu0
    %745 = vmatprep.mubr.bf16.mxu0 0
    %746 = vmatmul.mubr.bf16.gmra.mrb[0].mxu0 %v697
    %v747 = vpop.f32.mrb[0].mxu0
    %v748 = vadd.f32 %v486, %v747
    %v749 = vpop.f32.mrb[0].mxu0
    %v750 = vpop.f32.mrb[0].mxu0
    %v751 = vpop.f32.mrb[0].mxu0
    %752 = vdwg.mxu0
    %v753 = vadd.f32 %v542, %v75
    %v754 = vadd.f32 %v545, %v76
    %v755 = vadd.f32 %v550, %v77
    %v756 = vadd.f32 %v608, %v75
    %v757 = vadd.f32 %v611, %v76
    %v758 = vadd.f32 %v616, %v77
    %v759 = vadd.f32 %v674, %v75
    %v760 = vadd.f32 %v677, %v76
    %v761 = vadd.f32 %v682, %v77
    %v762 = vadd.f32 %v740, %v75
    %v763 = vadd.f32 %v743, %v76
    %v764 = vadd.f32 %v748, %v77
    %vm765 = vcmask 195584
    %v766 = vsel %vm765, %v753, -inf
    %767 = vmax.xlane.f32.xlu0 %v766
    %v768 = vpop.xlane.xlu0 %767
    %v769 = vsel %vm765, %v754, -inf
    %770 = vmax.xlane.f32.xlu0 %v769
    %v771 = vpop.xlane.xlu0 %770
    %v772 = vsel %vm765, %v755, -inf
    %773 = vmax.xlane.f32.xlu0 %v772
    %v774 = vpop.xlane.xlu0 %773
    %v775 = vsel %vm765, %v756, -inf
    %776 = vmax.xlane.f32.xlu0 %v775
    %v777 = vpop.xlane.xlu0 %776
    %v778 = vsel %vm765, %v757, -inf
    %779 = vmax.xlane.f32.xlu0 %v778
    %v780 = vpop.xlane.xlu0 %779
    %v781 = vsel %vm765, %v758, -inf
    %782 = vmax.xlane.f32.xlu0 %v781
    %v783 = vpop.xlane.xlu0 %782
    %v784 = vsel %vm765, %v759, -inf
    %785 = vmax.xlane.f32.xlu0 %v784
    %v786 = vpop.xlane.xlu0 %785
    %v787 = vsel %vm765, %v760, -inf
    %788 = vmax.xlane.f32.xlu0 %v787
    %v789 = vpop.xlane.xlu0 %788
    %v790 = vsel %vm765, %v761, -inf
    %791 = vmax.xlane.f32.xlu0 %v790
    %v792 = vpop.xlane.xlu0 %791
    %v793 = vsel %vm765, %v762, -inf
    %794 = vmax.xlane.f32.xlu0 %v793
    %v795 = vpop.xlane.xlu0 %794
    %v796 = vsel %vm765, %v763, -inf
    %797 = vmax.xlane.f32.xlu0 %v796
    %v798 = vpop.xlane.xlu0 %797
    %v799 = vsel %vm765, %v764, -inf
    %800 = vmax.xlane.f32.xlu0 %v799
    %v801 = vpop.xlane.xlu0 %800
    %v802 = vsub.f32 %v753, %v768
    %v803 = vsub.f32 %v754, %v771
    %v804 = vsub.f32 %v755, %v774
    %v805 = vsub.f32 %v756, %v777
    %v806 = vsub.f32 %v757, %v780
    %v807 = vsub.f32 %v758, %v783
    %v808 = vsub.f32 %v759, %v786
    %v809 = vsub.f32 %v760, %v789
    %v810 = vsub.f32 %v761, %v792
    %v811 = vsub.f32 %v762, %v795
    %v812 = vsub.f32 %v763, %v798
    %v813 = vsub.f32 %v764, %v801
    %v814 = vmul.f32 %v802, 1.442695
    %v815 = vpow.pop %v814
    %v816 = vmul.f32 %v803, 1.442695
    %v817 = vpow.pop %v816
    %v818 = vmul.f32 %v804, 1.442695
    %v819 = vpow.pop %v818
    %v820 = vmul.f32 %v805, 1.442695
    %v821 = vpow.pop %v820
    %v822 = vmul.f32 %v806, 1.442695
    %v823 = vpow.pop %v822
    %v824 = vmul.f32 %v807, 1.442695
    %v825 = vpow.pop %v824
    %v826 = vmul.f32 %v808, 1.442695
    %v827 = vpow.pop %v826
    %v828 = vmul.f32 %v809, 1.442695
    %v829 = vpow.pop %v828
    %v830 = vmul.f32 %v810, 1.442695
    %v831 = vpow.pop %v830
    %v832 = vmul.f32 %v811, 1.442695
    %v833 = vpow.pop %v832
    %v834 = vmul.f32 %v812, 1.442695
    %v835 = vpow.pop %v834
    %v836 = vmul.f32 %v813, 1.442695
    %v837 = vpow.pop %v836
    %v838 = vsel %vm765, %v815, 0.0
    %839 = vadd.xlane.f32.xlu0 %v838
    %v840 = vpop.xlane.xlu0 %839
    %v841 = vsel %vm765, %v817, 0.0
    %842 = vadd.xlane.f32.xlu0 %v841
    %v843 = vpop.xlane.xlu0 %842
    %v844 = vsel %vm765, %v819, 0.0
    %845 = vadd.xlane.f32.xlu0 %v844
    %v846 = vpop.xlane.xlu0 %845
    %v847 = vsel %vm765, %v821, 0.0
    %848 = vadd.xlane.f32.xlu0 %v847
    %v849 = vpop.xlane.xlu0 %848
    %v850 = vsel %vm765, %v823, 0.0
    %851 = vadd.xlane.f32.xlu0 %v850
    %v852 = vpop.xlane.xlu0 %851
    %v853 = vsel %vm765, %v825, 0.0
    %854 = vadd.xlane.f32.xlu0 %v853
    %v855 = vpop.xlane.xlu0 %854
    %v856 = vsel %vm765, %v827, 0.0
    %857 = vadd.xlane.f32.xlu0 %v856
    %v858 = vpop.xlane.xlu0 %857
    %v859 = vsel %vm765, %v829, 0.0
    %860 = vadd.xlane.f32.xlu0 %v859
    %v861 = vpop.xlane.xlu0 %860
    %v862 = vsel %vm765, %v831, 0.0
    %863 = vadd.xlane.f32.xlu0 %v862
    %v864 = vpop.xlane.xlu0 %863
    %v865 = vsel %vm765, %v833, 0.0
    %866 = vadd.xlane.f32.xlu0 %v865
    %v867 = vpop.xlane.xlu0 %866
    %v868 = vsel %vm765, %v835, 0.0
    %869 = vadd.xlane.f32.xlu0 %v868
    %v870 = vpop.xlane.xlu0 %869
    %v871 = vsel %vm765, %v837, 0.0
    %872 = vadd.xlane.f32.xlu0 %v871
    %v873 = vpop.xlane.xlu0 %872
    %v874 = vrcp.pop %v840
    %v875 = vrcp.pop %v843
    %v876 = vrcp.pop %v846
    %v877 = vrcp.pop %v849
    %v878 = vrcp.pop %v852
    %v879 = vrcp.pop %v855
    %v880 = vrcp.pop %v858
    %v881 = vrcp.pop %v861
    %v882 = vrcp.pop %v864
    %v883 = vrcp.pop %v867
    %v884 = vrcp.pop %v870
    %v885 = vrcp.pop %v873
    %v886 = vmul.f32 %v815, %v874
    %v887 = vmul.f32 %v817, %v875
    %v888 = vmul.f32 %v819, %v876
    %v889 = vmul.f32 %v821, %v877
    %v890 = vmul.f32 %v823, %v878
    %v891 = vmul.f32 %v825, %v879
    %v892 = vmul.f32 %v827, %v880
    %v893 = vmul.f32 %v829, %v881
    %v894 = vmul.f32 %v831, %v882
    %v895 = vmul.f32 %v833, %v883
    %v896 = vmul.f32 %v835, %v884
    %v897 = vmul.f32 %v837, %v885
    %v898 = vpack.c.bf16 %v887, %v886
    %v899 = vpack.c.bf16 %v888, %v888
    %v900 = vpack.c.bf16 %v890, %v889
    %v901 = vpack.c.bf16 %v891, %v891
    %v902 = vpack.c.bf16 %v893, %v892
    %v903 = vpack.c.bf16 %v894, %v894
    %v904 = vpack.c.bf16 %v896, %v895
    %v905 = vpack.c.bf16 %v897, %v897
    %906 = vrot.lane.b32.xlu0 %v307, 64
    %v907 = vpop.permute.xlu0 %906
    %908 = vrot.lane.b32.xlu0 %v308, 64
    %v909 = vpop.permute.xlu0 %908
    %v912 = vsel %vm765, %v898, 0
    %v915 = vsel %vm765, %v899, 0
    %vm917 = vcmask 1043456
    %v919 = vsel %vm917, %v909, 0
    %921 = vmatprep.subr.bf16.mxu0 0
    %922 = vmatpush1.bf16.msra.mxu0 %v907
    %923 = vmatprep.subr.bf16.mxu0 0
    %924 = vmatpush1.bf16.msra.mxu0 %v919
    %925 = vmatprep.subr.bf16.mxu0 0
    %926 = vmatpush1.bf16.msra.mxu0 0
    %927 = vmatprep.subr.bf16.mxu0 0
    %928 = vmatpush1.bf16.msra.mxu0 0
    %929 = vmatprep.subr.bf16.mxu0 0
    %930 = vmatpush1.bf16.msra.mxu0 0
    %931 = vmatprep.subr.bf16.mxu0 0
    %932 = vmatpush1.bf16.msra.mxu0 0
    %933 = vmatprep.subr.bf16.mxu0 0
    %934 = vmatpush1.bf16.msra.mxu0 0
    %935 = vmatprep.subr.bf16.mxu0 0
    %936 = vmatpush1.bf16.msra.mxu0 0
    %937 = vmatprep.subr.bf16.mxu0 0
    %938 = vmatpush1.bf16.msra.mxu0 0
    %939 = vmatprep.subr.bf16.mxu0 0
    %940 = vmatpush1.bf16.msra.mxu0 0
    %941 = vmatprep.subr.bf16.mxu0 0
    %942 = vmatpush1.bf16.msra.mxu0 0
    %943 = vmatprep.subr.bf16.mxu0 0
    %944 = vmatpush1.bf16.msra.mxu0 0
    %945 = vmatprep.subr.bf16.mxu0 0
    %946 = vmatpush1.bf16.msra.mxu0 0
    %947 = vmatprep.subr.bf16.mxu0 0
    %948 = vmatpush1.bf16.msra.mxu0 0
    %949 = vmatprep.subr.bf16.mxu0 0
    %950 = vmatpush1.bf16.msra.mxu0 0
    %951 = vmatprep.subr.bf16.mxu0 0
    %952 = vmatpush1.bf16.msra.mxu0 0
    %953 = vmatprep.mubr.bf16.mxu0 0
    %954 = vmatmul.mubr.bf16.gmra.mrb[0].mxu0 %v912
    %v955 = vpop.f32.mrb[0].mxu0
    %v956 = vadd.f32 0.0, %v955
    %v957 = vpop.f32.mrb[0].mxu0
    %v958 = vpop.f32.mrb[0].mxu0
    %v959 = vadd.f32 0.0, %v958
    %v960 = vpop.f32.mrb[0].mxu0
    %961 = vmatprep.mubr.bf16.mxu0 0
    %962 = vmatmul.mubr.bf16.gmra.mrb[0].mxu0 %v915
    %v963 = vpop.f32.mrb[0].mxu0
    %v964 = vadd.f32 0.0, %v963
    %v965 = vpop.f32.mrb[0].mxu0
    %v966 = vpop.f32.mrb[0].mxu0
    %v967 = vpop.f32.mrb[0].mxu0
    %968 = vdwg.mxu0
    %969 = vrot.lane.b32.xlu0 %v309, 64
    %v970 = vpop.permute.xlu0 %969
    %971 = vrot.lane.b32.xlu0 %v310, 64
    %v972 = vpop.permute.xlu0 %971
    %v975 = vsel %vm765, %v900, 0
    %v978 = vsel %vm765, %v901, 0
    %v981 = vsel %vm917, %v972, 0
    %983 = vmatprep.subr.bf16.mxu0 0
    %984 = vmatpush1.bf16.msra.mxu0 %v970
    %985 = vmatprep.subr.bf16.mxu0 0
    %986 = vmatpush1.bf16.msra.mxu0 %v981
    %987 = vmatprep.subr.bf16.mxu0 0
    %988 = vmatpush1.bf16.msra.mxu0 0
    %989 = vmatprep.subr.bf16.mxu0 0
    %990 = vmatpush1.bf16.msra.mxu0 0
    %991 = vmatprep.subr.bf16.mxu0 0
    %992 = vmatpush1.bf16.msra.mxu0 0
    %993 = vmatprep.subr.bf16.mxu0 0
    %994 = vmatpush1.bf16.msra.mxu0 0
    %995 = vmatprep.subr.bf16.mxu0 0
    %996 = vmatpush1.bf16.msra.mxu0 0
    %997 = vmatprep.subr.bf16.mxu0 0
    %998 = vmatpush1.bf16.msra.mxu0 0
    %999 = vmatprep.subr.bf16.mxu0 0
    %1000 = vmatpush1.bf16.msra.mxu0 0
    %1001 = vmatprep.subr.bf16.mxu0 0
    %1002 = vmatpush1.bf16.msra.mxu0 0
    %1003 = vmatprep.subr.bf16.mxu0 0
    %1004 = vmatpush1.bf16.msra.mxu0 0
    %1005 = vmatprep.subr.bf16.mxu0 0
    %1006 = vmatpush1.bf16.msra.mxu0 0
    %1007 = vmatprep.subr.bf16.mxu0 0
    %1008 = vmatpush1.bf16.msra.mxu0 0
    %1009 = vmatprep.subr.bf16.mxu0 0
    %1010 = vmatpush1.bf16.msra.mxu0 0
    %1011 = vmatprep.subr.bf16.mxu0 0
    %1012 = vmatpush1.bf16.msra.mxu0 0
    %1013 = vmatprep.subr.bf16.mxu0 0
    %1014 = vmatpush1.bf16.msra.mxu0 0
    %1015 = vmatprep.mubr.bf16.mxu0 0
    %1016 = vmatmul.mubr.bf16.gmra.mrb[0].mxu0 %v975
    %v1017 = vpop.f32.mrb[0].mxu0
    %v1018 = vadd.f32 0.0, %v1017
    %v1019 = vpop.f32.mrb[0].mxu0
    %v1020 = vpop.f32.mrb[0].mxu0
    %v1021 = vadd.f32 0.0, %v1020
    %v1022 = vpop.f32.mrb[0].mxu0
    %1023 = vmatprep.mubr.bf16.mxu0 0
    %1024 = vmatmul.mubr.bf16.gmra.mrb[0].mxu0 %v978
    %v1025 = vpop.f32.mrb[0].mxu0
    %v1026 = vadd.f32 0.0, %v1025
    %v1027 = vpop.f32.mrb[0].mxu0
    %v1028 = vpop.f32.mrb[0].mxu0
    %v1029 = vpop.f32.mrb[0].mxu0
    %1030 = vdwg.mxu0
    %1031 = vrot.lane.b32.xlu0 %v311, 64
    %v1032 = vpop.permute.xlu0 %1031
    %1033 = vrot.lane.b32.xlu0 %v312, 64
    %v1034 = vpop.permute.xlu0 %1033
    %v1037 = vsel %vm765, %v902, 0
    %v1040 = vsel %vm765, %v903, 0
    %v1043 = vsel %vm917, %v1034, 0
    %1045 = vmatprep.subr.bf16.mxu0 0
    %1046 = vmatpush1.bf16.msra.mxu0 %v1032
    %1047 = vmatprep.subr.bf16.mxu0 0
    %1048 = vmatpush1.bf16.msra.mxu0 %v1043
    %1049 = vmatprep.subr.bf16.mxu0 0
    %1050 = vmatpush1.bf16.msra.mxu0 0
    %1051 = vmatprep.subr.bf16.mxu0 0
    %1052 = vmatpush1.bf16.msra.mxu0 0
    %1053 = vmatprep.subr.bf16.mxu0 0
    %1054 = vmatpush1.bf16.msra.mxu0 0
    %1055 = vmatprep.subr.bf16.mxu0 0
    %1056 = vmatpush1.bf16.msra.mxu0 0
    %1057 = vmatprep.subr.bf16.mxu0 0
    %1058 = vmatpush1.bf16.msra.mxu0 0
    %1059 = vmatprep.subr.bf16.mxu0 0
    %1060 = vmatpush1.bf16.msra.mxu0 0
    %1061 = vmatprep.subr.bf16.mxu0 0
    %1062 = vmatpush1.bf16.msra.mxu0 0
    %1063 = vmatprep.subr.bf16.mxu0 0
    %1064 = vmatpush1.bf16.msra.mxu0 0
    %1065 = vmatprep.subr.bf16.mxu0 0
    %1066 = vmatpush1.bf16.msra.mxu0 0
    %1067 = vmatprep.subr.bf16.mxu0 0
    %1068 = vmatpush1.bf16.msra.mxu0 0
    %1069 = vmatprep.subr.bf16.mxu0 0
    %1070 = vmatpush1.bf16.msra.mxu0 0
    %1071 = vmatprep.subr.bf16.mxu0 0
    %1072 = vmatpush1.bf16.msra.mxu0 0
    %1073 = vmatprep.subr.bf16.mxu0 0
    %1074 = vmatpush1.bf16.msra.mxu0 0
    %1075 = vmatprep.subr.bf16.mxu0 0
    %1076 = vmatpush1.bf16.msra.mxu0 0
    %1077 = vmatprep.mubr.bf16.mxu0 0
    %1078 = vmatmul.mubr.bf16.gmra.mrb[0].mxu0 %v1037
    %v1079 = vpop.f32.mrb[0].mxu0
    %v1080 = vadd.f32 0.0, %v1079
    %v1081 = vpop.f32.mrb[0].mxu0
    %v1082 = vpop.f32.mrb[0].mxu0
    %v1083 = vadd.f32 0.0, %v1082
    %v1084 = vpop.f32.mrb[0].mxu0
    %1085 = vmatprep.mubr.bf16.mxu0 0
    %1086 = vmatmul.mubr.bf16.gmra.mrb[0].mxu0 %v1040
    %v1087 = vpop.f32.mrb[0].mxu0
    %v1088 = vadd.f32 0.0, %v1087
    %v1089 = vpop.f32.mrb[0].mxu0
    %v1090 = vpop.f32.mrb[0].mxu0
    %v1091 = vpop.f32.mrb[0].mxu0
    %1092 = vdwg.mxu0
    %1093 = vrot.lane.b32.xlu0 %v313, 64
    %v1094 = vpop.permute.xlu0 %1093
    %1095 = vrot.lane.b32.xlu0 %v314, 64
    %v1096 = vpop.permute.xlu0 %1095
    %v1099 = vsel %vm765, %v904, 0
    %v1102 = vsel %vm765, %v905, 0
    %v1105 = vsel %vm917, %v1096, 0
    %1107 = vmatprep.subr.bf16.mxu0 0
    %1108 = vmatpush1.bf16.msra.mxu0 %v1094
    %1109 = vmatprep.subr.bf16.mxu0 0
    %1110 = vmatpush1.bf16.msra.mxu0 %v1105
    %1111 = vmatprep.subr.bf16.mxu0 0
    %1112 = vmatpush1.bf16.msra.mxu0 0
    %1113 = vmatprep.subr.bf16.mxu0 0
    %1114 = vmatpush1.bf16.msra.mxu0 0
    %1115 = vmatprep.subr.bf16.mxu0 0
    %1116 = vmatpush1.bf16.msra.mxu0 0
    %1117 = vmatprep.subr.bf16.mxu0 0
    %1118 = vmatpush1.bf16.msra.mxu0 0
    %1119 = vmatprep.subr.bf16.mxu0 0
    %1120 = vmatpush1.bf16.msra.mxu0 0
    %1121 = vmatprep.subr.bf16.mxu0 0
    %1122 = vmatpush1.bf16.msra.mxu0 0
    %1123 = vmatprep.subr.bf16.mxu0 0
    %1124 = vmatpush1.bf16.msra.mxu0 0
    %1125 = vmatprep.subr.bf16.mxu0 0
    %1126 = vmatpush1.bf16.msra.mxu0 0
    %1127 = vmatprep.subr.bf16.mxu0 0
    %1128 = vmatpush1.bf16.msra.mxu0 0
    %1129 = vmatprep.subr.bf16.mxu0 0
    %1130 = vmatpush1.bf16.msra.mxu0 0
    %1131 = vmatprep.subr.bf16.mxu0 0
    %1132 = vmatpush1.bf16.msra.mxu0 0
    %1133 = vmatprep.subr.bf16.mxu0 0
    %1134 = vmatpush1.bf16.msra.mxu0 0
    %1135 = vmatprep.subr.bf16.mxu0 0
    %1136 = vmatpush1.bf16.msra.mxu0 0
    %1137 = vmatprep.subr.bf16.mxu0 0
    %1138 = vmatpush1.bf16.msra.mxu0 0
    %1139 = vmatprep.mubr.bf16.mxu0 0
    %1140 = vmatmul.mubr.bf16.gmra.mrb[0].mxu0 %v1099
    %v1141 = vpop.f32.mrb[0].mxu0
    %v1142 = vadd.f32 0.0, %v1141
    %v1143 = vpop.f32.mrb[0].mxu0
    %v1144 = vpop.f32.mrb[0].mxu0
    %v1145 = vadd.f32 0.0, %v1144
    %v1146 = vpop.f32.mrb[0].mxu0
    %1147 = vmatprep.mubr.bf16.mxu0 0
    %1148 = vmatmul.mubr.bf16.gmra.mrb[0].mxu0 %v1102
    %v1149 = vpop.f32.mrb[0].mxu0
    %v1150 = vadd.f32 0.0, %v1149
    %v1151 = vpop.f32.mrb[0].mxu0
    %v1152 = vpop.f32.mrb[0].mxu0
    %v1153 = vpop.f32.mrb[0].mxu0
    %1154 = vdwg.mxu0
    %1158 = vrot.lane.b32.xlu0 %v1018, 8
    %v1159 = vpop.permute.xlu0 %1158
    %1160 = vrot.lane.b32.xlu0 %v1021, 8
    %v1161 = vpop.permute.xlu0 %1160
    %1162 = vrot.lane.b32.xlu0 %v1026, 8
    %v1163 = vpop.permute.xlu0 %1162
    %1170 = vrot.lane.b32.xlu0 %v1080, 16
    %v1171 = vpop.permute.xlu0 %1170
    %1172 = vrot.lane.b32.xlu0 %v1083, 16
    %v1173 = vpop.permute.xlu0 %1172
    %1174 = vrot.lane.b32.xlu0 %v1088, 16
    %v1175 = vpop.permute.xlu0 %1174
    %1182 = vrot.lane.b32.xlu0 %v1142, 24
    %v1183 = vpop.permute.xlu0 %1182
    %1184 = vrot.lane.b32.xlu0 %v1145, 24
    %v1185 = vpop.permute.xlu0 %1184
    %1186 = vrot.lane.b32.xlu0 %v1150, 24
    %v1187 = vpop.permute.xlu0 %1186
    %v1191 = vsel %vm327, %v956, %v1159
    %v1192 = vsel %vm327, %v959, %v1161
    %v1193 = vsel %vm327, %v964, %v1163
    %vm1194 = vcmask 130048
    %v1195 = vsel %vm1194, %v1191, %v1171
    %v1196 = vsel %vm1194, %v1192, %v1173
    %v1197 = vsel %vm1194, %v1193, %v1175
    %v1198 = vsel %vm765, %v1195, %v1183
    %v1199 = vsel %vm765, %v1196, %v1185
    %v1200 = vsel %vm765, %v1197, %v1187
    %v1201 = vpack.c.bf16 %v1198, %v1198
    %v1202 = vld [vmem:[%s6] sm:$0xf]
    %v1203 = vld [vmem:[%s6 + $0x4] sm:$0xf]
    %v1204 = vld [vmem:[%s6 + $0x8] sm:$0xf]
    %v1205 = vld [vmem:[%s6 + $0xc] sm:$0xf]
    %v1206 = vld [vmem:[%s7] sm:$0x1]
    %v1207 = vlaneseq
    %v1208 = vshrl.u32 %v1207, 7
    %v1209 = vsub.s32 0, %v1208
    %v1210 = vrot.slane %v1206, %v1209
    %v1215 = vunpack.c.l.b16 %v1202
    %v1216 = vunpack.c.l.b16 %v1203
    %v1217 = vunpack.c.l.b16 %v1204
    %v1218 = vunpack.c.l.b16 %v1205
    %v1219 = vpack.c.b16 %v1216, %v1215
    %v1220 = vpack.c.b16 %v1218, %v1217
    %v1224 = vsel %vm101, %v1201, 0
    %1226 = vmatprep.subr.bf16.mxu0 0
    %1227 = vmatpush1.bf16.msra.mxu0 %v1219
    %1228 = vmatprep.subr.bf16.mxu0 0
    %1229 = vmatpush1.bf16.msra.mxu0 %v1220
    %1230 = vmatprep.subr.bf16.mxu0 0
    %1231 = vmatpush1.bf16.msra.mxu0 0
    %1232 = vmatprep.subr.bf16.mxu0 0
    %1233 = vmatpush1.bf16.msra.mxu0 0
    %1234 = vmatprep.subr.bf16.mxu0 0
    %1235 = vmatpush1.bf16.msra.mxu0 0
    %1236 = vmatprep.subr.bf16.mxu0 0
    %1237 = vmatpush1.bf16.msra.mxu0 0
    %1238 = vmatprep.subr.bf16.mxu0 0
    %1239 = vmatpush1.bf16.msra.mxu0 0
    %1240 = vmatprep.subr.bf16.mxu0 0
    %1241 = vmatpush1.bf16.msra.mxu0 0
    %1242 = vmatprep.subr.bf16.mxu0 0
    %1243 = vmatpush1.bf16.msra.mxu0 0
    %1244 = vmatprep.subr.bf16.mxu0 0
    %1245 = vmatpush1.bf16.msra.mxu0 0
    %1246 = vmatprep.subr.bf16.mxu0 0
    %1247 = vmatpush1.bf16.msra.mxu0 0
    %1248 = vmatprep.subr.bf16.mxu0 0
    %1249 = vmatpush1.bf16.msra.mxu0 0
    %1250 = vmatprep.subr.bf16.mxu0 0
    %1251 = vmatpush1.bf16.msra.mxu0 0
    %1252 = vmatprep.subr.bf16.mxu0 0
    %1253 = vmatpush1.bf16.msra.mxu0 0
    %1254 = vmatprep.subr.bf16.mxu0 0
    %1255 = vmatpush1.bf16.msra.mxu0 0
    %1256 = vmatprep.subr.bf16.mxu0 0
    %1257 = vmatpush1.bf16.msra.mxu0 0
    %1258 = vmatprep.mubr.bf16.mxu0 0
    %1259 = vmatmul.mubr.bf16.gmra.mrb[0].mxu0 %v1224
    %v1260 = vpop.f32.mrb[0].mxu0
    %v1261 = vadd.f32 %v1210, %v1260
    %v1262 = vpop.f32.mrb[0].mxu0
    %v1263 = vpop.f32.mrb[0].mxu0
    %v1264 = vpop.f32.mrb[0].mxu0
    %1265 = vdwg.mxu0
    %v1266 = vpack.c.bf16 %v1199, %v1199
    %s1267 = scalar_lea.vmem %s6, 16
    %v1268 = vld [vmem:[%s1267] sm:$0xf]
    %v1269 = vld [vmem:[%s1267 + $0x4] sm:$0xf]
    %v1270 = vld [vmem:[%s1267 + $0x8] sm:$0xf]
    %v1271 = vld [vmem:[%s1267 + $0xc] sm:$0xf]
    %v1272 = vld [vmem:[%s7 + $0x1] sm:$0x1]
    %v1273 = vlaneseq
    %v1274 = vshrl.u32 %v1273, 7
    %v1275 = vsub.s32 0, %v1274
    %v1276 = vrot.slane %v1272, %v1275
    %v1281 = vunpack.c.l.b16 %v1268
    %v1282 = vunpack.c.l.b16 %v1269
    %v1283 = vunpack.c.l.b16 %v1270
    %v1284 = vunpack.c.l.b16 %v1271
    %v1285 = vpack.c.b16 %v1282, %v1281
    %v1286 = vpack.c.b16 %v1284, %v1283
    %v1290 = vsel %vm101, %v1266, 0
    %1292 = vmatprep.subr.bf16.mxu0 0
    %1293 = vmatpush1.bf16.msra.mxu0 %v1285
    %1294 = vmatprep.subr.bf16.mxu0 0
    %1295 = vmatpush1.bf16.msra.mxu0 %v1286
    %1296 = vmatprep.subr.bf16.mxu0 0
    %1297 = vmatpush1.bf16.msra.mxu0 0
    %1298 = vmatprep.subr.bf16.mxu0 0
    %1299 = vmatpush1.bf16.msra.mxu0 0
    %1300 = vmatprep.subr.bf16.mxu0 0
    %1301 = vmatpush1.bf16.msra.mxu0 0
    %1302 = vmatprep.subr.bf16.mxu0 0
    %1303 = vmatpush1.bf16.msra.mxu0 0
    %1304 = vmatprep.subr.bf16.mxu0 0
    %1305 = vmatpush1.bf16.msra.mxu0 0
    %1306 = vmatprep.subr.bf16.mxu0 0
    %1307 = vmatpush1.bf16.msra.mxu0 0
    %1308 = vmatprep.subr.bf16.mxu0 0
    %1309 = vmatpush1.bf16.msra.mxu0 0
    %1310 = vmatprep.subr.bf16.mxu0 0
    %1311 = vmatpush1.bf16.msra.mxu0 0
    %1312 = vmatprep.subr.bf16.mxu0 0
    %1313 = vmatpush1.bf16.msra.mxu0 0
    %1314 = vmatprep.subr.bf16.mxu0 0
    %1315 = vmatpush1.bf16.msra.mxu0 0
    %1316 = vmatprep.subr.bf16.mxu0 0
    %1317 = vmatpush1.bf16.msra.mxu0 0
    %1318 = vmatprep.subr.bf16.mxu0 0
    %1319 = vmatpush1.bf16.msra.mxu0 0
    %1320 = vmatprep.subr.bf16.mxu0 0
    %1321 = vmatpush1.bf16.msra.mxu0 0
    %1322 = vmatprep.subr.bf16.mxu0 0
    %1323 = vmatpush1.bf16.msra.mxu0 0
    %1324 = vmatprep.mubr.bf16.mxu0 0
    %1325 = vmatmul.mubr.bf16.gmra.mrb[0].mxu0 %v1290
    %v1326 = vpop.f32.mrb[0].mxu0
    %v1327 = vadd.f32 %v1276, %v1326
    %v1328 = vpop.f32.mrb[0].mxu0
    %v1329 = vpop.f32.mrb[0].mxu0
    %v1330 = vpop.f32.mrb[0].mxu0
    %1331 = vdwg.mxu0
    %v1332 = vpack.c.bf16 %v1200, %v1200
    %s1333 = scalar_lea.vmem %s6, 32
    %v1334 = vld [vmem:[%s1333] sm:$0xf]
    %v1335 = vld [vmem:[%s1333 + $0x4] sm:$0xf]
    %v1336 = vld [vmem:[%s1333 + $0x8] sm:$0xf]
    %v1337 = vld [vmem:[%s1333 + $0xc] sm:$0xf]
    %v1338 = vld [vmem:[%s7 + $0x2] sm:$0x1]
    %v1339 = vlaneseq
    %v1340 = vshrl.u32 %v1339, 7
    %v1341 = vsub.s32 0, %v1340
    %v1342 = vrot.slane %v1338, %v1341
    %v1347 = vunpack.c.l.b16 %v1334
    %v1348 = vunpack.c.l.b16 %v1335
    %v1349 = vunpack.c.l.b16 %v1336
    %v1350 = vunpack.c.l.b16 %v1337
    %v1351 = vpack.c.b16 %v1348, %v1347
    %v1352 = vpack.c.b16 %v1350, %v1349
    %v1356 = vsel %vm101, %v1332, 0
    %1358 = vmatprep.subr.bf16.mxu0 0
    %1359 = vmatpush1.bf16.msra.mxu0 %v1351
    %1360 = vmatprep.subr.bf16.mxu0 0
    %1361 = vmatpush1.bf16.msra.mxu0 %v1352
    %1362 = vmatprep.subr.bf16.mxu0 0
    %1363 = vmatpush1.bf16.msra.mxu0 0
    %1364 = vmatprep.subr.bf16.mxu0 0
    %1365 = vmatpush1.bf16.msra.mxu0 0
    %1366 = vmatprep.subr.bf16.mxu0 0
    %1367 = vmatpush1.bf16.msra.mxu0 0
    %1368 = vmatprep.subr.bf16.mxu0 0
    %1369 = vmatpush1.bf16.msra.mxu0 0
    %1370 = vmatprep.subr.bf16.mxu0 0
    %1371 = vmatpush1.bf16.msra.mxu0 0
    %1372 = vmatprep.subr.bf16.mxu0 0
    %1373 = vmatpush1.bf16.msra.mxu0 0
    %1374 = vmatprep.subr.bf16.mxu0 0
    %1375 = vmatpush1.bf16.msra.mxu0 0
    %1376 = vmatprep.subr.bf16.mxu0 0
    %1377 = vmatpush1.bf16.msra.mxu0 0
    %1378 = vmatprep.subr.bf16.mxu0 0
    %1379 = vmatpush1.bf16.msra.mxu0 0
    %1380 = vmatprep.subr.bf16.mxu0 0
    %1381 = vmatpush1.bf16.msra.mxu0 0
    %1382 = vmatprep.subr.bf16.mxu0 0
    %1383 = vmatpush1.bf16.msra.mxu0 0
    %1384 = vmatprep.subr.bf16.mxu0 0
    %1385 = vmatpush1.bf16.msra.mxu0 0
    %1386 = vmatprep.subr.bf16.mxu0 0
    %1387 = vmatpush1.bf16.msra.mxu0 0
    %1388 = vmatprep.subr.bf16.mxu0 0
    %1389 = vmatpush1.bf16.msra.mxu0 0
    %1390 = vmatprep.mubr.bf16.mxu0 0
    %1391 = vmatmul.mubr.bf16.gmra.mrb[0].mxu0 %v1356
    %v1392 = vpop.f32.mrb[0].mxu0
    %v1393 = vadd.f32 %v1342, %v1392
    %v1394 = vpop.f32.mrb[0].mxu0
    %v1395 = vpop.f32.mrb[0].mxu0
    %v1396 = vpop.f32.mrb[0].mxu0
    %1397 = vdwg.mxu0
    %v1398 = vsel %vm101, %v1261, 0.0
    %1399 = vadd.xlane.f32.xlu0 %v1398
    %v1400 = vpop.xlane.xlu0 %1399
    %v1401 = vrcp.pop 32.0
    %v1402 = vmul.f32 %v1400, %v1401
    %v1403 = vmul.f32 %v1261, %v1261
    %v1404 = vsel %vm101, %v1403, 0.0
    %1405 = vadd.xlane.f32.xlu0 %v1404
    %v1406 = vpop.xlane.xlu0 %1405
    %v1407 = vmul.f32 %v1406, %v1401
    %v1408 = vmul.f32 %v1402, %v1402
    %v1409 = vsub.f32 %v1407, %v1408
    %v1410 = vsub.f32 %v1261, %v1402
    %v1411 = vadd.f32 %v1409, 1e-05
    %v1412 = vrsqrt.pop %v1411
    %v1413 = vmul.f32 %v1410, %v1412
    %v1414 = vld [vmem:[%s8] sm:$0x1]
    %v1415 = vlaneseq
    %v1416 = vshrl.u32 %v1415, 7
    %v1417 = vsub.s32 0, %v1416
    %v1418 = vrot.slane %v1414, %v1417
    %v1419 = vmul.f32 %v1413, %v1418
    %v1420 = vld [vmem:[%s9] sm:$0x1]
    %v1421 = vlaneseq
    %v1422 = vshrl.u32 %v1421, 7
    %v1423 = vsub.s32 0, %v1422
    %v1424 = vrot.slane %v1420, %v1423
    %v1425 = vadd.f32 %v1419, %v1424
    %v1426 = vadd.f32 %v1425, %v72
    %v1427 = vsel %vm101, %v1327, 0.0
    %1428 = vadd.xlane.f32.xlu0 %v1427
    %v1429 = vpop.xlane.xlu0 %1428
    %v1430 = vmul.f32 %v1429, %v1401
    %v1431 = vmul.f32 %v1327, %v1327
    %v1432 = vsel %vm101, %v1431, 0.0
    %1433 = vadd.xlane.f32.xlu0 %v1432
    %v1434 = vpop.xlane.xlu0 %1433
    %v1435 = vmul.f32 %v1434, %v1401
    %v1436 = vmul.f32 %v1430, %v1430
    %v1437 = vsub.f32 %v1435, %v1436
    %v1438 = vsub.f32 %v1327, %v1430
    %v1439 = vadd.f32 %v1437, 1e-05
    %v1440 = vrsqrt.pop %v1439
    %v1441 = vmul.f32 %v1438, %v1440
    %v1442 = vld [vmem:[%s8 + $0x1] sm:$0x1]
    %v1443 = vlaneseq
    %v1444 = vshrl.u32 %v1443, 7
    %v1445 = vsub.s32 0, %v1444
    %v1446 = vrot.slane %v1442, %v1445
    %v1447 = vmul.f32 %v1441, %v1446
    %v1448 = vld [vmem:[%s9 + $0x1] sm:$0x1]
    %v1449 = vlaneseq
    %v1450 = vshrl.u32 %v1449, 7
    %v1451 = vsub.s32 0, %v1450
    %v1452 = vrot.slane %v1448, %v1451
    %v1453 = vadd.f32 %v1447, %v1452
    %v1454 = vadd.f32 %v1453, %v73
    %v1455 = vsel %vm101, %v1393, 0.0
    %1456 = vadd.xlane.f32.xlu0 %v1455
    %v1457 = vpop.xlane.xlu0 %1456
    %v1458 = vmul.f32 %v1457, %v1401
    %v1459 = vmul.f32 %v1393, %v1393
    %v1460 = vsel %vm101, %v1459, 0.0
    %1461 = vadd.xlane.f32.xlu0 %v1460
    %v1462 = vpop.xlane.xlu0 %1461
    %v1463 = vmul.f32 %v1462, %v1401
    %v1464 = vmul.f32 %v1458, %v1458
    %v1465 = vsub.f32 %v1463, %v1464
    %v1466 = vsub.f32 %v1393, %v1458
    %v1467 = vadd.f32 %v1465, 1e-05
    %v1468 = vrsqrt.pop %v1467
    %v1469 = vmul.f32 %v1466, %v1468
    %v1470 = vld [vmem:[%s8 + $0x2] sm:$0x1]
    %v1471 = vlaneseq
    %v1472 = vshrl.u32 %v1471, 7
    %v1473 = vsub.s32 0, %v1472
    %v1474 = vrot.slane %v1470, %v1473
    %v1475 = vmul.f32 %v1469, %v1474
    %v1476 = vld [vmem:[%s9 + $0x2] sm:$0x1]
    %v1477 = vlaneseq
    %v1478 = vshrl.u32 %v1477, 7
    %v1479 = vsub.s32 0, %v1478
    %v1480 = vrot.slane %v1476, %v1479
    %v1481 = vadd.f32 %v1475, %v1480
    %v1482 = vadd.f32 %v1481, %v74
    %v1483 = vpack.c.bf16 %v1426, %v1426
    %v1484 = vld [vmem:[%s11] sm:$0xf]
    %v1485 = vld [vmem:[%s11 + $0x4] sm:$0xf]
    %v1486 = vld [vmem:[%s11 + $0x8] sm:$0xf]
    %v1487 = vld [vmem:[%s11 + $0xc] sm:$0xf]
    %v1488 = vld [vmem:[%s12] sm:$0x1]
    %v1489 = vlaneseq
    %v1490 = vshrl.u32 %v1489, 7
    %v1491 = vsub.s32 0, %v1490
    %v1492 = vrot.slane %v1488, %v1491
    %v1497 = vunpack.c.l.b16 %v1484
    %v1498 = vunpack.c.l.b16 %v1485
    %v1499 = vunpack.c.l.b16 %v1486
    %v1500 = vunpack.c.l.b16 %v1487
    %v1501 = vpack.c.b16 %v1498, %v1497
    %v1502 = vpack.c.b16 %v1500, %v1499
    %v1506 = vsel %vm101, %v1483, 0
    %1508 = vmatprep.subr.bf16.mxu0 0
    %1509 = vmatpush1.bf16.msra.mxu0 %v1501
    %1510 = vmatprep.subr.bf16.mxu0 0
    %1511 = vmatpush1.bf16.msra.mxu0 %v1502
    %1512 = vmatprep.subr.bf16.mxu0 0
    %1513 = vmatpush1.bf16.msra.mxu0 0
    %1514 = vmatprep.subr.bf16.mxu0 0
    %1515 = vmatpush1.bf16.msra.mxu0 0
    %1516 = vmatprep.subr.bf16.mxu0 0
    %1517 = vmatpush1.bf16.msra.mxu0 0
    %1518 = vmatprep.subr.bf16.mxu0 0
    %1519 = vmatpush1.bf16.msra.mxu0 0
    %1520 = vmatprep.subr.bf16.mxu0 0
    %1521 = vmatpush1.bf16.msra.mxu0 0
    %1522 = vmatprep.subr.bf16.mxu0 0
    %1523 = vmatpush1.bf16.msra.mxu0 0
    %1524 = vmatprep.subr.bf16.mxu0 0
    %1525 = vmatpush1.bf16.msra.mxu0 0
    %1526 = vmatprep.subr.bf16.mxu0 0
    %1527 = vmatpush1.bf16.msra.mxu0 0
    %1528 = vmatprep.subr.bf16.mxu0 0
    %1529 = vmatpush1.bf16.msra.mxu0 0
    %1530 = vmatprep.subr.bf16.mxu0 0
    %1531 = vmatpush1.bf16.msra.mxu0 0
    %1532 = vmatprep.subr.bf16.mxu0 0
    %1533 = vmatpush1.bf16.msra.mxu0 0
    %1534 = vmatprep.subr.bf16.mxu0 0
    %1535 = vmatpush1.bf16.msra.mxu0 0
    %1536 = vmatprep.subr.bf16.mxu0 0
    %1537 = vmatpush1.bf16.msra.mxu0 0
    %1538 = vmatprep.subr.bf16.mxu0 0
    %1539 = vmatpush1.bf16.msra.mxu0 0
    %1540 = vmatprep.mubr.bf16.mxu0 0
    %1541 = vmatmul.mubr.bf16.gmra.mrb[0].mxu0 %v1506
    %v1542 = vpop.f32.mrb[0].mxu0
    %v1543 = vadd.f32 %v1492, %v1542
    %v1544 = vpop.f32.mrb[0].mxu0
    %v1545 = vpop.f32.mrb[0].mxu0
    %v1546 = vpop.f32.mrb[0].mxu0
    %1547 = vdwg.mxu0
    %v1548 = vpack.c.bf16 %v1454, %v1454
    %s1549 = scalar_lea.vmem %s11, 16
    %v1550 = vld [vmem:[%s1549] sm:$0xf]
    %v1551 = vld [vmem:[%s1549 + $0x4] sm:$0xf]
    %v1552 = vld [vmem:[%s1549 + $0x8] sm:$0xf]
    %v1553 = vld [vmem:[%s1549 + $0xc] sm:$0xf]
    %v1554 = vld [vmem:[%s12 + $0x1] sm:$0x1]
    %v1555 = vlaneseq
    %v1556 = vshrl.u32 %v1555, 7
    %v1557 = vsub.s32 0, %v1556
    %v1558 = vrot.slane %v1554, %v1557
    %v1563 = vunpack.c.l.b16 %v1550
    %v1564 = vunpack.c.l.b16 %v1551
    %v1565 = vunpack.c.l.b16 %v1552
    %v1566 = vunpack.c.l.b16 %v1553
    %v1567 = vpack.c.b16 %v1564, %v1563
    %v1568 = vpack.c.b16 %v1566, %v1565
    %v1572 = vsel %vm101, %v1548, 0
    %1574 = vmatprep.subr.bf16.mxu0 0
    %1575 = vmatpush1.bf16.msra.mxu0 %v1567
    %1576 = vmatprep.subr.bf16.mxu0 0
    %1577 = vmatpush1.bf16.msra.mxu0 %v1568
    %1578 = vmatprep.subr.bf16.mxu0 0
    %1579 = vmatpush1.bf16.msra.mxu0 0
    %1580 = vmatprep.subr.bf16.mxu0 0
    %1581 = vmatpush1.bf16.msra.mxu0 0
    %1582 = vmatprep.subr.bf16.mxu0 0
    %1583 = vmatpush1.bf16.msra.mxu0 0
    %1584 = vmatprep.subr.bf16.mxu0 0
    %1585 = vmatpush1.bf16.msra.mxu0 0
    %1586 = vmatprep.subr.bf16.mxu0 0
    %1587 = vmatpush1.bf16.msra.mxu0 0
    %1588 = vmatprep.subr.bf16.mxu0 0
    %1589 = vmatpush1.bf16.msra.mxu0 0
    %1590 = vmatprep.subr.bf16.mxu0 0
    %1591 = vmatpush1.bf16.msra.mxu0 0
    %1592 = vmatprep.subr.bf16.mxu0 0
    %1593 = vmatpush1.bf16.msra.mxu0 0
    %1594 = vmatprep.subr.bf16.mxu0 0
    %1595 = vmatpush1.bf16.msra.mxu0 0
    %1596 = vmatprep.subr.bf16.mxu0 0
    %1597 = vmatpush1.bf16.msra.mxu0 0
    %1598 = vmatprep.subr.bf16.mxu0 0
    %1599 = vmatpush1.bf16.msra.mxu0 0
    %1600 = vmatprep.subr.bf16.mxu0 0
    %1601 = vmatpush1.bf16.msra.mxu0 0
    %1602 = vmatprep.subr.bf16.mxu0 0
    %1603 = vmatpush1.bf16.msra.mxu0 0
    %1604 = vmatprep.subr.bf16.mxu0 0
    %1605 = vmatpush1.bf16.msra.mxu0 0
    %1606 = vmatprep.mubr.bf16.mxu0 0
    %1607 = vmatmul.mubr.bf16.gmra.mrb[0].mxu0 %v1572
    %v1608 = vpop.f32.mrb[0].mxu0
    %v1609 = vadd.f32 %v1558, %v1608
    %v1610 = vpop.f32.mrb[0].mxu0
    %v1611 = vpop.f32.mrb[0].mxu0
    %v1612 = vpop.f32.mrb[0].mxu0
    %1613 = vdwg.mxu0
    %v1614 = vpack.c.bf16 %v1482, %v1482
    %s1615 = scalar_lea.vmem %s11, 32
    %v1616 = vld [vmem:[%s1615] sm:$0xf]
    %v1617 = vld [vmem:[%s1615 + $0x4] sm:$0xf]
    %v1618 = vld [vmem:[%s1615 + $0x8] sm:$0xf]
    %v1619 = vld [vmem:[%s1615 + $0xc] sm:$0xf]
    %v1620 = vld [vmem:[%s12 + $0x2] sm:$0x1]
    %v1621 = vlaneseq
    %v1622 = vshrl.u32 %v1621, 7
    %v1623 = vsub.s32 0, %v1622
    %v1624 = vrot.slane %v1620, %v1623
    %v1629 = vunpack.c.l.b16 %v1616
    %v1630 = vunpack.c.l.b16 %v1617
    %v1631 = vunpack.c.l.b16 %v1618
    %v1632 = vunpack.c.l.b16 %v1619
    %v1633 = vpack.c.b16 %v1630, %v1629
    %v1634 = vpack.c.b16 %v1632, %v1631
    %v1638 = vsel %vm101, %v1614, 0
    %1640 = vmatprep.subr.bf16.mxu0 0
    %1641 = vmatpush1.bf16.msra.mxu0 %v1633
    %1642 = vmatprep.subr.bf16.mxu0 0
    %1643 = vmatpush1.bf16.msra.mxu0 %v1634
    %1644 = vmatprep.subr.bf16.mxu0 0
    %1645 = vmatpush1.bf16.msra.mxu0 0
    %1646 = vmatprep.subr.bf16.mxu0 0
    %1647 = vmatpush1.bf16.msra.mxu0 0
    %1648 = vmatprep.subr.bf16.mxu0 0
    %1649 = vmatpush1.bf16.msra.mxu0 0
    %1650 = vmatprep.subr.bf16.mxu0 0
    %1651 = vmatpush1.bf16.msra.mxu0 0
    %1652 = vmatprep.subr.bf16.mxu0 0
    %1653 = vmatpush1.bf16.msra.mxu0 0
    %1654 = vmatprep.subr.bf16.mxu0 0
    %1655 = vmatpush1.bf16.msra.mxu0 0
    %1656 = vmatprep.subr.bf16.mxu0 0
    %1657 = vmatpush1.bf16.msra.mxu0 0
    %1658 = vmatprep.subr.bf16.mxu0 0
    %1659 = vmatpush1.bf16.msra.mxu0 0
    %1660 = vmatprep.subr.bf16.mxu0 0
    %1661 = vmatpush1.bf16.msra.mxu0 0
    %1662 = vmatprep.subr.bf16.mxu0 0
    %1663 = vmatpush1.bf16.msra.mxu0 0
    %1664 = vmatprep.subr.bf16.mxu0 0
    %1665 = vmatpush1.bf16.msra.mxu0 0
    %1666 = vmatprep.subr.bf16.mxu0 0
    %1667 = vmatpush1.bf16.msra.mxu0 0
    %1668 = vmatprep.subr.bf16.mxu0 0
    %1669 = vmatpush1.bf16.msra.mxu0 0
    %1670 = vmatprep.subr.bf16.mxu0 0
    %1671 = vmatpush1.bf16.msra.mxu0 0
    %1672 = vmatprep.mubr.bf16.mxu0 0
    %1673 = vmatmul.mubr.bf16.gmra.mrb[0].mxu0 %v1638
    %v1674 = vpop.f32.mrb[0].mxu0
    %v1675 = vadd.f32 %v1624, %v1674
    %v1676 = vpop.f32.mrb[0].mxu0
    %v1677 = vpop.f32.mrb[0].mxu0
    %v1678 = vpop.f32.mrb[0].mxu0
    %1679 = vdwg.mxu0
    %1683 = vrot.lane.b32.xlu0 %v1543, 120
    %v1684 = vpop.permute.xlu0 %1683
    %1685 = vrot.lane.b32.xlu0 %v1609, 120
    %v1686 = vpop.permute.xlu0 %1685
    %1687 = vrot.lane.b32.xlu0 %v1675, 120
    %v1688 = vpop.permute.xlu0 %1687
    %1692 = vrot.lane.b32.xlu0 %v1543, 112
    %v1693 = vpop.permute.xlu0 %1692
    %1694 = vrot.lane.b32.xlu0 %v1609, 112
    %v1695 = vpop.permute.xlu0 %1694
    %1696 = vrot.lane.b32.xlu0 %v1675, 112
    %v1697 = vpop.permute.xlu0 %1696
    %1701 = vrot.lane.b32.xlu0 %v1543, 104
    %v1702 = vpop.permute.xlu0 %1701
    %1703 = vrot.lane.b32.xlu0 %v1609, 104
    %v1704 = vpop.permute.xlu0 %1703
    %1705 = vrot.lane.b32.xlu0 %v1675, 104
    %v1706 = vpop.permute.xlu0 %1705
    %v1710 = vpack.c.bf16 %v1609, %v1543
    %v1711 = vpack.c.bf16 %v1675, %v1675
    %v1712 = vpack.c.bf16 %v1686, %v1684
    %v1713 = vpack.c.bf16 %v1688, %v1688
    %v1714 = vpack.c.bf16 %v1695, %v1693
    %v1715 = vpack.c.bf16 %v1697, %v1697
    %v1716 = vpack.c.bf16 %v1704, %v1702
    %v1717 = vpack.c.bf16 %v1706, %v1706
    %v1718 = vld [vmem:[%s10] sm:$0xff]
    %v1719 = vld [vmem:[%s10 + $0x8] sm:$0xff]
    %v1720 = vld [vmem:[%s10 + $0x10] sm:$0xff]
    %v1721 = vld [vmem:[%s10 + $0x18] sm:$0xff]
    %v1722 = vld [vmem:[%s10 + $0x20] sm:$0xff]
    %v1723 = vld [vmem:[%s10 + $0x28] sm:$0xff]
    %v1724 = vld [vmem:[%s10 + $0x30] sm:$0xff]
    %v1725 = vld [vmem:[%s10 + $0x38] sm:$0xff]
    %v1726 = vld [vmem:[%s10 + $0x40] sm:$0xff]
    %v1727 = vld [vmem:[%s10 + $0x48] sm:$0xff]
    %v1728 = vld [vmem:[%s10 + $0x50] sm:$0xff]
    %v1729 = vld [vmem:[%s10 + $0x58] sm:$0xff]
    %v1731 = vsel %vm327, %v1718, 0
    %v1734 = vsel %vm327, %v1719, 0
    %v1737 = vsel %vm327, %v1720, 0
    %v1740 = vsel %vm327, %v1721, 0
    %v1743 = vsel %vm327, %v1722, 0
    %v1746 = vsel %vm327, %v1723, 0
    %v1749 = vsel %vm327, %v1724, 0
    %v1752 = vsel %vm327, %v1725, 0
    %v1755 = vsel %vm327, %v1726, 0
    %v1758 = vsel %vm327, %v1727, 0
    %v1761 = vsel %vm327, %v1728, 0
    %v1764 = vsel %vm327, %v1729, 0
    %1766 = vmatprep.subr.mxu0 0.0
    %1767 = vmatpush1.msra.mxu0 %v78
    %1768 = vmatprep.subr.mxu0 0.0
    %1769 = vmatpush1.msra.mxu0 0.0
    %1770 = vmatprep.subr.mxu0 0.0
    %1771 = vmatpush1.msra.mxu0 0.0
    %1772 = vmatprep.subr.mxu0 0.0
    %1773 = vmatpush1.msra.mxu0 0.0
    %1774 = vmatprep.subr.mxu0 0.0
    %1775 = vmatpush1.msra.mxu0 0.0
    %1776 = vmatprep.subr.mxu0 0.0
    %1777 = vmatpush1.msra.mxu0 0.0
    %1778 = vmatprep.subr.mxu0 0.0
    %1779 = vmatpush1.msra.mxu0 0.0
    %1780 = vmatprep.subr.mxu0 0.0
    %1781 = vmatpush1.msra.mxu0 0.0
    %1782 = vmatprep.subr.mxu0 0.0
    %1783 = vmatpush1.msra.mxu0 0.0
    %1784 = vmatprep.subr.mxu0 0.0
    %1785 = vmatpush1.msra.mxu0 0.0
    %1786 = vmatprep.subr.mxu0 0.0
    %1787 = vmatpush1.msra.mxu0 0.0
    %1788 = vmatprep.subr.mxu0 0.0
    %1789 = vmatpush1.msra.mxu0 0.0
    %1790 = vmatprep.subr.mxu0 0.0
    %1791 = vmatpush1.msra.mxu0 0.0
    %1792 = vmatprep.subr.mxu0 0.0
    %1793 = vmatpush1.msra.mxu0 0.0
    %1794 = vmatprep.subr.mxu0 0.0
    %1795 = vmatpush1.msra.mxu0 0.0
    %1796 = vmatprep.subr.mxu0 0.0
    %1797 = vmatpush1.msra.mxu0 0.0
    %1798 = vmatprep.subr.mxu0 0.0
    %1799 = vmatpush1.msra.mxu0 0.0
    %1800 = vmatprep.subr.mxu0 0.0
    %1801 = vmatpush1.msra.mxu0 0.0
    %1802 = vmatprep.subr.mxu0 0.0
    %1803 = vmatpush1.msra.mxu0 0.0
    %1804 = vmatprep.subr.mxu0 0.0
    %1805 = vmatpush1.msra.mxu0 0.0
    %1806 = vmatprep.subr.mxu0 0.0
    %1807 = vmatpush1.msra.mxu0 0.0
    %1808 = vmatprep.subr.mxu0 0.0
    %1809 = vmatpush1.msra.mxu0 0.0
    %1810 = vmatprep.subr.mxu0 0.0
    %1811 = vmatpush1.msra.mxu0 0.0
    %1812 = vmatprep.subr.mxu0 0.0
    %1813 = vmatpush1.msra.mxu0 0.0
    %1814 = vmatprep.subr.mxu0 0.0
    %1815 = vmatpush1.msra.mxu0 0.0
    %1816 = vmatprep.subr.mxu0 0.0
    %1817 = vmatpush1.msra.mxu0 0.0
    %1818 = vmatprep.subr.mxu0 0.0
    %1819 = vmatpush1.msra.mxu0 0.0
    %1820 = vmatprep.subr.mxu0 0.0
    %1821 = vmatpush1.msra.mxu0 0.0
    %1822 = vmatprep.subr.mxu0 0.0
    %1823 = vmatpush1.msra.mxu0 0.0
    %1824 = vmatprep.subr.mxu0 0.0
    %1825 = vmatpush1.msra.mxu0 0.0
    %1826 = vmatprep.subr.mxu0 0.0
    %1827 = vmatpush1.msra.mxu0 0.0
    %1828 = vmatprep.subr.mxu0 0.0
    %1829 = vmatpush1.msra.mxu0 0.0
    %1830 = vmatprep.mubr.f32.mxu0 0.0
    %1831 = vmatmul.mubr.f32.gmra.mrb[0].mxu0 %v1731
    %v1832 = vpop.f32.mrb[0].mxu0
    %v1833 = vadd.f32 0.0, %v1832
    %v1834 = vpop.f32.mrb[0].mxu0
    %1835 = vmatprep.mubr.f32.mxu0 0.0
    %1836 = vmatmul.mubr.f32.gmra.mrb[0].mxu0 %v1734
    %v1837 = vpop.f32.mrb[0].mxu0
    %v1838 = vadd.f32 0.0, %v1837
    %v1839 = vpop.f32.mrb[0].mxu0
    %1840 = vmatprep.mubr.f32.mxu0 0.0
    %1841 = vmatmul.mubr.f32.gmra.mrb[0].mxu0 %v1737
    %v1842 = vpop.f32.mrb[0].mxu0
    %v1843 = vadd.f32 0.0, %v1842
    %v1844 = vpop.f32.mrb[0].mxu0
    %1845 = vmatprep.mubr.f32.mxu0 0.0
    %1846 = vmatmul.mubr.f32.gmra.mrb[0].mxu0 %v1740
    %v1847 = vpop.f32.mrb[0].mxu0
    %v1848 = vadd.f32 0.0, %v1847
    %v1849 = vpop.f32.mrb[0].mxu0
    %1850 = vmatprep.mubr.f32.mxu0 0.0
    %1851 = vmatmul.mubr.f32.gmra.mrb[0].mxu0 %v1743
    %v1852 = vpop.f32.mrb[0].mxu0
    %v1853 = vadd.f32 0.0, %v1852
    %v1854 = vpop.f32.mrb[0].mxu0
    %1855 = vmatprep.mubr.f32.mxu0 0.0
    %1856 = vmatmul.mubr.f32.gmra.mrb[0].mxu0 %v1746
    %v1857 = vpop.f32.mrb[0].mxu0
    %v1858 = vadd.f32 0.0, %v1857
    %v1859 = vpop.f32.mrb[0].mxu0
    %1860 = vmatprep.mubr.f32.mxu0 0.0
    %1861 = vmatmul.mubr.f32.gmra.mrb[0].mxu0 %v1749
    %v1862 = vpop.f32.mrb[0].mxu0
    %v1863 = vadd.f32 0.0, %v1862
    %v1864 = vpop.f32.mrb[0].mxu0
    %1865 = vmatprep.mubr.f32.mxu0 0.0
    %1866 = vmatmul.mubr.f32.gmra.mrb[0].mxu0 %v1752
    %v1867 = vpop.f32.mrb[0].mxu0
    %v1868 = vadd.f32 0.0, %v1867
    %v1869 = vpop.f32.mrb[0].mxu0
    %1870 = vmatprep.mubr.f32.mxu0 0.0
    %1871 = vmatmul.mubr.f32.gmra.mrb[0].mxu0 %v1755
    %v1872 = vpop.f32.mrb[0].mxu0
    %v1873 = vadd.f32 0.0, %v1872
    %v1874 = vpop.f32.mrb[0].mxu0
    %1875 = vmatprep.mubr.f32.mxu0 0.0
    %1876 = vmatmul.mubr.f32.gmra.mrb[0].mxu0 %v1758
    %v1877 = vpop.f32.mrb[0].mxu0
    %v1878 = vadd.f32 0.0, %v1877
    %v1879 = vpop.f32.mrb[0].mxu0
    %1880 = vmatprep.mubr.f32.mxu0 0.0
    %1881 = vmatmul.mubr.f32.gmra.mrb[0].mxu0 %v1761
    %v1882 = vpop.f32.mrb[0].mxu0
    %v1883 = vadd.f32 0.0, %v1882
    %v1884 = vpop.f32.mrb[0].mxu0
    %1885 = vmatprep.mubr.f32.mxu0 0.0
    %1886 = vmatmul.mubr.f32.gmra.mrb[0].mxu0 %v1764
    %v1887 = vpop.f32.mrb[0].mxu0
    %v1888 = vadd.f32 0.0, %v1887
    %v1889 = vpop.f32.mrb[0].mxu0
    %1890 = vdwg.mxu0
    %1893 = vrot.lane.b32.xlu0 %v1710, 96
    %v1894 = vpop.permute.xlu0 %1893
    %1895 = vrot.lane.b32.xlu0 %v1711, 96
    %v1896 = vpop.permute.xlu0 %1895
    %v1898 = vsel %vm327, %v1710, 0
    %v1901 = vsel %vm327, %v1711, 0
    %v1904 = vsel %vm327, %v1894, 0
    %v1907 = vsel %vm327, %v1896, 0
    %1909 = vmatprep.subr.bf16.mxu0 0
    %1910 = vmatpush1.bf16.xpose.msra.mxu0 %v1904
    %1911 = vmatprep.subr.bf16.mxu0 0
    %1912 = vmatpush1.bf16.xpose.msra.mxu0 %v1907
    %1913 = vmatprep.subr.bf16.mxu0 0
    %1914 = vmatpush1.bf16.xpose.msra.mxu0 0
    %1915 = vmatprep.subr.bf16.mxu0 0
    %1916 = vmatpush1.bf16.xpose.msra.mxu0 0
    %1917 = vmatprep.subr.bf16.mxu0 0
    %1918 = vmatpush1.bf16.xpose.msra.mxu0 0
    %1919 = vmatprep.subr.bf16.mxu0 0
    %1920 = vmatpush1.bf16.xpose.msra.mxu0 0
    %1921 = vmatprep.subr.bf16.mxu0 0
    %1922 = vmatpush1.bf16.xpose.msra.mxu0 0
    %1923 = vmatprep.subr.bf16.mxu0 0
    %1924 = vmatpush1.bf16.xpose.msra.mxu0 0
    %1925 = vmatprep.subr.bf16.mxu0 0
    %1926 = vmatpush1.bf16.xpose.msra.mxu0 0
    %1927 = vmatprep.subr.bf16.mxu0 0
    %1928 = vmatpush1.bf16.xpose.msra.mxu0 0
    %1929 = vmatprep.subr.bf16.mxu0 0
    %1930 = vmatpush1.bf16.xpose.msra.mxu0 0
    %1931 = vmatprep.subr.bf16.mxu0 0
    %1932 = vmatpush1.bf16.xpose.msra.mxu0 0
    %1933 = vmatprep.subr.bf16.mxu0 0
    %1934 = vmatpush1.bf16.xpose.msra.mxu0 0
    %1935 = vmatprep.subr.bf16.mxu0 0
    %1936 = vmatpush1.bf16.xpose.msra.mxu0 0
    %1937 = vmatprep.subr.bf16.mxu0 0
    %1938 = vmatpush1.bf16.xpose.msra.mxu0 0
    %1939 = vmatprep.subr.bf16.mxu0 0
    %1940 = vmatpush1.bf16.xpose.msra.mxu0 0
    %1941 = vmatprep.mubr.bf16.mxu0 0
    %1942 = vmatmul.mubr.bf16.gmra.mrb[0].mxu0 %v1898
    %v1943 = vpop.f32.mrb[0].mxu0
    %v1944 = vadd.f32 %v1833, %v1943
    %v1945 = vpop.f32.mrb[0].mxu0
    %v1946 = vpop.f32.mrb[0].mxu0
    %v1947 = vadd.f32 %v1838, %v1946
    %v1948 = vpop.f32.mrb[0].mxu0
    %1949 = vmatprep.mubr.bf16.mxu0 0
    %1950 = vmatmul.mubr.bf16.gmra.mrb[0].mxu0 %v1901
    %v1951 = vpop.f32.mrb[0].mxu0
    %v1952 = vadd.f32 %v1843, %v1951
    %v1953 = vpop.f32.mrb[0].mxu0
    %v1954 = vpop.f32.mrb[0].mxu0
    %v1955 = vpop.f32.mrb[0].mxu0
    %1956 = vdwg.mxu0
    %1959 = vrot.lane.b32.xlu0 %v1712, 96
    %v1960 = vpop.permute.xlu0 %1959
    %1961 = vrot.lane.b32.xlu0 %v1713, 96
    %v1962 = vpop.permute.xlu0 %1961
    %v1964 = vsel %vm327, %v1712, 0
    %v1967 = vsel %vm327, %v1713, 0
    %v1970 = vsel %vm327, %v1960, 0
    %v1973 = vsel %vm327, %v1962, 0
    %1975 = vmatprep.subr.bf16.mxu0 0
    %1976 = vmatpush1.bf16.xpose.msra.mxu0 %v1970
    %1977 = vmatprep.subr.bf16.mxu0 0
    %1978 = vmatpush1.bf16.xpose.msra.mxu0 %v1973
    %1979 = vmatprep.subr.bf16.mxu0 0
    %1980 = vmatpush1.bf16.xpose.msra.mxu0 0
    %1981 = vmatprep.subr.bf16.mxu0 0
    %1982 = vmatpush1.bf16.xpose.msra.mxu0 0
    %1983 = vmatprep.subr.bf16.mxu0 0
    %1984 = vmatpush1.bf16.xpose.msra.mxu0 0
    %1985 = vmatprep.subr.bf16.mxu0 0
    %1986 = vmatpush1.bf16.xpose.msra.mxu0 0
    %1987 = vmatprep.subr.bf16.mxu0 0
    %1988 = vmatpush1.bf16.xpose.msra.mxu0 0
    %1989 = vmatprep.subr.bf16.mxu0 0
    %1990 = vmatpush1.bf16.xpose.msra.mxu0 0
    %1991 = vmatprep.subr.bf16.mxu0 0
    %1992 = vmatpush1.bf16.xpose.msra.mxu0 0
    %1993 = vmatprep.subr.bf16.mxu0 0
    %1994 = vmatpush1.bf16.xpose.msra.mxu0 0
    %1995 = vmatprep.subr.bf16.mxu0 0
    %1996 = vmatpush1.bf16.xpose.msra.mxu0 0
    %1997 = vmatprep.subr.bf16.mxu0 0
    %1998 = vmatpush1.bf16.xpose.msra.mxu0 0
    %1999 = vmatprep.subr.bf16.mxu0 0
    %2000 = vmatpush1.bf16.xpose.msra.mxu0 0
    %2001 = vmatprep.subr.bf16.mxu0 0
    %2002 = vmatpush1.bf16.xpose.msra.mxu0 0
    %2003 = vmatprep.subr.bf16.mxu0 0
    %2004 = vmatpush1.bf16.xpose.msra.mxu0 0
    %2005 = vmatprep.subr.bf16.mxu0 0
    %2006 = vmatpush1.bf16.xpose.msra.mxu0 0
    %2007 = vmatprep.mubr.bf16.mxu0 0
    %2008 = vmatmul.mubr.bf16.gmra.mrb[0].mxu0 %v1964
    %v2009 = vpop.f32.mrb[0].mxu0
    %v2010 = vadd.f32 %v1848, %v2009
    %v2011 = vpop.f32.mrb[0].mxu0
    %v2012 = vpop.f32.mrb[0].mxu0
    %v2013 = vadd.f32 %v1853, %v2012
    %v2014 = vpop.f32.mrb[0].mxu0
    %2015 = vmatprep.mubr.bf16.mxu0 0
    %2016 = vmatmul.mubr.bf16.gmra.mrb[0].mxu0 %v1967
    %v2017 = vpop.f32.mrb[0].mxu0
    %v2018 = vadd.f32 %v1858, %v2017
    %v2019 = vpop.f32.mrb[0].mxu0
    %v2020 = vpop.f32.mrb[0].mxu0
    %v2021 = vpop.f32.mrb[0].mxu0
    %2022 = vdwg.mxu0
    %2025 = vrot.lane.b32.xlu0 %v1714, 96
    %v2026 = vpop.permute.xlu0 %2025
    %2027 = vrot.lane.b32.xlu0 %v1715, 96
    %v2028 = vpop.permute.xlu0 %2027
    %v2030 = vsel %vm327, %v1714, 0
    %v2033 = vsel %vm327, %v1715, 0
    %v2036 = vsel %vm327, %v2026, 0
    %v2039 = vsel %vm327, %v2028, 0
    %2041 = vmatprep.subr.bf16.mxu0 0
    %2042 = vmatpush1.bf16.xpose.msra.mxu0 %v2036
    %2043 = vmatprep.subr.bf16.mxu0 0
    %2044 = vmatpush1.bf16.xpose.msra.mxu0 %v2039
    %2045 = vmatprep.subr.bf16.mxu0 0
    %2046 = vmatpush1.bf16.xpose.msra.mxu0 0
    %2047 = vmatprep.subr.bf16.mxu0 0
    %2048 = vmatpush1.bf16.xpose.msra.mxu0 0
    %2049 = vmatprep.subr.bf16.mxu0 0
    %2050 = vmatpush1.bf16.xpose.msra.mxu0 0
    %2051 = vmatprep.subr.bf16.mxu0 0
    %2052 = vmatpush1.bf16.xpose.msra.mxu0 0
    %2053 = vmatprep.subr.bf16.mxu0 0
    %2054 = vmatpush1.bf16.xpose.msra.mxu0 0
    %2055 = vmatprep.subr.bf16.mxu0 0
    %2056 = vmatpush1.bf16.xpose.msra.mxu0 0
    %2057 = vmatprep.subr.bf16.mxu0 0
    %2058 = vmatpush1.bf16.xpose.msra.mxu0 0
    %2059 = vmatprep.subr.bf16.mxu0 0
    %2060 = vmatpush1.bf16.xpose.msra.mxu0 0
    %2061 = vmatprep.subr.bf16.mxu0 0
    %2062 = vmatpush1.bf16.xpose.msra.mxu0 0
    %2063 = vmatprep.subr.bf16.mxu0 0
    %2064 = vmatpush1.bf16.xpose.msra.mxu0 0
    %2065 = vmatprep.subr.bf16.mxu0 0
    %2066 = vmatpush1.bf16.xpose.msra.mxu0 0
    %2067 = vmatprep.subr.bf16.mxu0 0
    %2068 = vmatpush1.bf16.xpose.msra.mxu0 0
    %2069 = vmatprep.subr.bf16.mxu0 0
    %2070 = vmatpush1.bf16.xpose.msra.mxu0 0
    %2071 = vmatprep.subr.bf16.mxu0 0
    %2072 = vmatpush1.bf16.xpose.msra.mxu0 0
    %2073 = vmatprep.mubr.bf16.mxu0 0
    %2074 = vmatmul.mubr.bf16.gmra.mrb[0].mxu0 %v2030
    %v2075 = vpop.f32.mrb[0].mxu0
    %v2076 = vadd.f32 %v1863, %v2075
    %v2077 = vpop.f32.mrb[0].mxu0
    %v2078 = vpop.f32.mrb[0].mxu0
    %v2079 = vadd.f32 %v1868, %v2078
    %v2080 = vpop.f32.mrb[0].mxu0
    %2081 = vmatprep.mubr.bf16.mxu0 0
    %2082 = vmatmul.mubr.bf16.gmra.mrb[0].mxu0 %v2033
    %v2083 = vpop.f32.mrb[0].mxu0
    %v2084 = vadd.f32 %v1873, %v2083
    %v2085 = vpop.f32.mrb[0].mxu0
    %v2086 = vpop.f32.mrb[0].mxu0
    %v2087 = vpop.f32.mrb[0].mxu0
    %2088 = vdwg.mxu0
    %2091 = vrot.lane.b32.xlu0 %v1716, 96
    %v2092 = vpop.permute.xlu0 %2091
    %2093 = vrot.lane.b32.xlu0 %v1717, 96
    %v2094 = vpop.permute.xlu0 %2093
    %v2096 = vsel %vm327, %v1716, 0
    %v2099 = vsel %vm327, %v1717, 0
    %v2102 = vsel %vm327, %v2092, 0
    %v2105 = vsel %vm327, %v2094, 0
    %2107 = vmatprep.subr.bf16.mxu0 0
    %2108 = vmatpush1.bf16.xpose.msra.mxu0 %v2102
    %2109 = vmatprep.subr.bf16.mxu0 0
    %2110 = vmatpush1.bf16.xpose.msra.mxu0 %v2105
    %2111 = vmatprep.subr.bf16.mxu0 0
    %2112 = vmatpush1.bf16.xpose.msra.mxu0 0
    %2113 = vmatprep.subr.bf16.mxu0 0
    %2114 = vmatpush1.bf16.xpose.msra.mxu0 0
    %2115 = vmatprep.subr.bf16.mxu0 0
    %2116 = vmatpush1.bf16.xpose.msra.mxu0 0
    %2117 = vmatprep.subr.bf16.mxu0 0
    %2118 = vmatpush1.bf16.xpose.msra.mxu0 0
    %2119 = vmatprep.subr.bf16.mxu0 0
    %2120 = vmatpush1.bf16.xpose.msra.mxu0 0
    %2121 = vmatprep.subr.bf16.mxu0 0
    %2122 = vmatpush1.bf16.xpose.msra.mxu0 0
    %2123 = vmatprep.subr.bf16.mxu0 0
    %2124 = vmatpush1.bf16.xpose.msra.mxu0 0
    %2125 = vmatprep.subr.bf16.mxu0 0
    %2126 = vmatpush1.bf16.xpose.msra.mxu0 0
    %2127 = vmatprep.subr.bf16.mxu0 0
    %2128 = vmatpush1.bf16.xpose.msra.mxu0 0
    %2129 = vmatprep.subr.bf16.mxu0 0
    %2130 = vmatpush1.bf16.xpose.msra.mxu0 0
    %2131 = vmatprep.subr.bf16.mxu0 0
    %2132 = vmatpush1.bf16.xpose.msra.mxu0 0
    %2133 = vmatprep.subr.bf16.mxu0 0
    %2134 = vmatpush1.bf16.xpose.msra.mxu0 0
    %2135 = vmatprep.subr.bf16.mxu0 0
    %2136 = vmatpush1.bf16.xpose.msra.mxu0 0
    %2137 = vmatprep.subr.bf16.mxu0 0
    %2138 = vmatpush1.bf16.xpose.msra.mxu0 0
    %2139 = vmatprep.mubr.bf16.mxu0 0
    %2140 = vmatmul.mubr.bf16.gmra.mrb[0].mxu0 %v2096
    %v2141 = vpop.f32.mrb[0].mxu0
    %v2142 = vadd.f32 %v1878, %v2141
    %v2143 = vpop.f32.mrb[0].mxu0
    %v2144 = vpop.f32.mrb[0].mxu0
    %v2145 = vadd.f32 %v1883, %v2144
    %v2146 = vpop.f32.mrb[0].mxu0
    %2147 = vmatprep.mubr.bf16.mxu0 0
    %2148 = vmatmul.mubr.bf16.gmra.mrb[0].mxu0 %v2099
    %v2149 = vpop.f32.mrb[0].mxu0
    %v2150 = vadd.f32 %v1888, %v2149
    %v2151 = vpop.f32.mrb[0].mxu0
    %v2152 = vpop.f32.mrb[0].mxu0
    %v2153 = vpop.f32.mrb[0].mxu0
    %2154 = vdwg.mxu0
    %v2155 = vadd.f32 %v1944, %v75
    %v2156 = vadd.f32 %v1947, %v76
    %v2157 = vadd.f32 %v1952, %v77
    %v2158 = vadd.f32 %v2010, %v75
    %v2159 = vadd.f32 %v2013, %v76
    %v2160 = vadd.f32 %v2018, %v77
    %v2161 = vadd.f32 %v2076, %v75
    %v2162 = vadd.f32 %v2079, %v76
    %v2163 = vadd.f32 %v2084, %v77
    %v2164 = vadd.f32 %v2142, %v75
    %v2165 = vadd.f32 %v2145, %v76
    %v2166 = vadd.f32 %v2150, %v77
    %v2167 = vsel %vm765, %v2155, -inf
    %2168 = vmax.xlane.f32.xlu0 %v2167
    %v2169 = vpop.xlane.xlu0 %2168
    %v2170 = vsel %vm765, %v2156, -inf
    %2171 = vmax.xlane.f32.xlu0 %v2170
    %v2172 = vpop.xlane.xlu0 %2171
    %v2173 = vsel %vm765, %v2157, -inf
    %2174 = vmax.xlane.f32.xlu0 %v2173
    %v2175 = vpop.xlane.xlu0 %2174
    %v2176 = vsel %vm765, %v2158, -inf
    %2177 = vmax.xlane.f32.xlu0 %v2176
    %v2178 = vpop.xlane.xlu0 %2177
    %v2179 = vsel %vm765, %v2159, -inf
    %2180 = vmax.xlane.f32.xlu0 %v2179
    %v2181 = vpop.xlane.xlu0 %2180
    %v2182 = vsel %vm765, %v2160, -inf
    %2183 = vmax.xlane.f32.xlu0 %v2182
    %v2184 = vpop.xlane.xlu0 %2183
    %v2185 = vsel %vm765, %v2161, -inf
    %2186 = vmax.xlane.f32.xlu0 %v2185
    %v2187 = vpop.xlane.xlu0 %2186
    %v2188 = vsel %vm765, %v2162, -inf
    %2189 = vmax.xlane.f32.xlu0 %v2188
    %v2190 = vpop.xlane.xlu0 %2189
    %v2191 = vsel %vm765, %v2163, -inf
    %2192 = vmax.xlane.f32.xlu0 %v2191
    %v2193 = vpop.xlane.xlu0 %2192
    %v2194 = vsel %vm765, %v2164, -inf
    %2195 = vmax.xlane.f32.xlu0 %v2194
    %v2196 = vpop.xlane.xlu0 %2195
    %v2197 = vsel %vm765, %v2165, -inf
    %2198 = vmax.xlane.f32.xlu0 %v2197
    %v2199 = vpop.xlane.xlu0 %2198
    %v2200 = vsel %vm765, %v2166, -inf
    %2201 = vmax.xlane.f32.xlu0 %v2200
    %v2202 = vpop.xlane.xlu0 %2201
    %v2203 = vsub.f32 %v2155, %v2169
    %v2204 = vsub.f32 %v2156, %v2172
    %v2205 = vsub.f32 %v2157, %v2175
    %v2206 = vsub.f32 %v2158, %v2178
    %v2207 = vsub.f32 %v2159, %v2181
    %v2208 = vsub.f32 %v2160, %v2184
    %v2209 = vsub.f32 %v2161, %v2187
    %v2210 = vsub.f32 %v2162, %v2190
    %v2211 = vsub.f32 %v2163, %v2193
    %v2212 = vsub.f32 %v2164, %v2196
    %v2213 = vsub.f32 %v2165, %v2199
    %v2214 = vsub.f32 %v2166, %v2202
    %v2215 = vmul.f32 %v2203, 1.442695
    %v2216 = vpow.pop %v2215
    %v2217 = vmul.f32 %v2204, 1.442695
    %v2218 = vpow.pop %v2217
    %v2219 = vmul.f32 %v2205, 1.442695
    %v2220 = vpow.pop %v2219
    %v2221 = vmul.f32 %v2206, 1.442695
    %v2222 = vpow.pop %v2221
    %v2223 = vmul.f32 %v2207, 1.442695
    %v2224 = vpow.pop %v2223
    %v2225 = vmul.f32 %v2208, 1.442695
    %v2226 = vpow.pop %v2225
    %v2227 = vmul.f32 %v2209, 1.442695
    %v2228 = vpow.pop %v2227
    %v2229 = vmul.f32 %v2210, 1.442695
    %v2230 = vpow.pop %v2229
    %v2231 = vmul.f32 %v2211, 1.442695
    %v2232 = vpow.pop %v2231
    %v2233 = vmul.f32 %v2212, 1.442695
    %v2234 = vpow.pop %v2233
    %v2235 = vmul.f32 %v2213, 1.442695
    %v2236 = vpow.pop %v2235
    %v2237 = vmul.f32 %v2214, 1.442695
    %v2238 = vpow.pop %v2237
    %v2239 = vsel %vm765, %v2216, 0.0
    %2240 = vadd.xlane.f32.xlu0 %v2239
    %v2241 = vpop.xlane.xlu0 %2240
    %v2242 = vsel %vm765, %v2218, 0.0
    %2243 = vadd.xlane.f32.xlu0 %v2242
    %v2244 = vpop.xlane.xlu0 %2243
    %v2245 = vsel %vm765, %v2220, 0.0
    %2246 = vadd.xlane.f32.xlu0 %v2245
    %v2247 = vpop.xlane.xlu0 %2246
    %v2248 = vsel %vm765, %v2222, 0.0
    %2249 = vadd.xlane.f32.xlu0 %v2248
    %v2250 = vpop.xlane.xlu0 %2249
    %v2251 = vsel %vm765, %v2224, 0.0
    %2252 = vadd.xlane.f32.xlu0 %v2251
    %v2253 = vpop.xlane.xlu0 %2252
    %v2254 = vsel %vm765, %v2226, 0.0
    %2255 = vadd.xlane.f32.xlu0 %v2254
    %v2256 = vpop.xlane.xlu0 %2255
    %v2257 = vsel %vm765, %v2228, 0.0
    %2258 = vadd.xlane.f32.xlu0 %v2257
    %v2259 = vpop.xlane.xlu0 %2258
    %v2260 = vsel %vm765, %v2230, 0.0
    %2261 = vadd.xlane.f32.xlu0 %v2260
    %v2262 = vpop.xlane.xlu0 %2261
    %v2263 = vsel %vm765, %v2232, 0.0
    %2264 = vadd.xlane.f32.xlu0 %v2263
    %v2265 = vpop.xlane.xlu0 %2264
    %v2266 = vsel %vm765, %v2234, 0.0
    %2267 = vadd.xlane.f32.xlu0 %v2266
    %v2268 = vpop.xlane.xlu0 %2267
    %v2269 = vsel %vm765, %v2236, 0.0
    %2270 = vadd.xlane.f32.xlu0 %v2269
    %v2271 = vpop.xlane.xlu0 %2270
    %v2272 = vsel %vm765, %v2238, 0.0
    %2273 = vadd.xlane.f32.xlu0 %v2272
    %v2274 = vpop.xlane.xlu0 %2273
    %v2275 = vrcp.pop %v2241
    %v2276 = vrcp.pop %v2244
    %v2277 = vrcp.pop %v2247
    %v2278 = vrcp.pop %v2250
    %v2279 = vrcp.pop %v2253
    %v2280 = vrcp.pop %v2256
    %v2281 = vrcp.pop %v2259
    %v2282 = vrcp.pop %v2262
    %v2283 = vrcp.pop %v2265
    %v2284 = vrcp.pop %v2268
    %v2285 = vrcp.pop %v2271
    %v2286 = vrcp.pop %v2274
    %v2287 = vmul.f32 %v2216, %v2275
    %v2288 = vmul.f32 %v2218, %v2276
    %v2289 = vmul.f32 %v2220, %v2277
    %v2290 = vmul.f32 %v2222, %v2278
    %v2291 = vmul.f32 %v2224, %v2279
    %v2292 = vmul.f32 %v2226, %v2280
    %v2293 = vmul.f32 %v2228, %v2281
    %v2294 = vmul.f32 %v2230, %v2282
    %v2295 = vmul.f32 %v2232, %v2283
    %v2296 = vmul.f32 %v2234, %v2284
    %v2297 = vmul.f32 %v2236, %v2285
    %v2298 = vmul.f32 %v2238, %v2286
    %v2299 = vpack.c.bf16 %v2288, %v2287
    %v2300 = vpack.c.bf16 %v2289, %v2289
    %v2301 = vpack.c.bf16 %v2291, %v2290
    %v2302 = vpack.c.bf16 %v2292, %v2292
    %v2303 = vpack.c.bf16 %v2294, %v2293
    %v2304 = vpack.c.bf16 %v2295, %v2295
    %v2305 = vpack.c.bf16 %v2297, %v2296
    %v2306 = vpack.c.bf16 %v2298, %v2298
    %2307 = vrot.lane.b32.xlu0 %v1710, 64
    %v2308 = vpop.permute.xlu0 %2307
    %2309 = vrot.lane.b32.xlu0 %v1711, 64
    %v2310 = vpop.permute.xlu0 %2309
    %v2313 = vsel %vm765, %v2299, 0
    %v2316 = vsel %vm765, %v2300, 0
    %v2319 = vsel %vm917, %v2310, 0
    %2321 = vmatprep.subr.bf16.mxu0 0
    %2322 = vmatpush1.bf16.msra.mxu0 %v2308
    %2323 = vmatprep.subr.bf16.mxu0 0
    %2324 = vmatpush1.bf16.msra.mxu0 %v2319
    %2325 = vmatprep.subr.bf16.mxu0 0
    %2326 = vmatpush1.bf16.msra.mxu0 0
    %2327 = vmatprep.subr.bf16.mxu0 0
    %2328 = vmatpush1.bf16.msra.mxu0 0
    %2329 = vmatprep.subr.bf16.mxu0 0
    %2330 = vmatpush1.bf16.msra.mxu0 0
    %2331 = vmatprep.subr.bf16.mxu0 0
    %2332 = vmatpush1.bf16.msra.mxu0 0
    %2333 = vmatprep.subr.bf16.mxu0 0
    %2334 = vmatpush1.bf16.msra.mxu0 0
    %2335 = vmatprep.subr.bf16.mxu0 0
    %2336 = vmatpush1.bf16.msra.mxu0 0
    %2337 = vmatprep.subr.bf16.mxu0 0
    %2338 = vmatpush1.bf16.msra.mxu0 0
    %2339 = vmatprep.subr.bf16.mxu0 0
    %2340 = vmatpush1.bf16.msra.mxu0 0
    %2341 = vmatprep.subr.bf16.mxu0 0
    %2342 = vmatpush1.bf16.msra.mxu0 0
    %2343 = vmatprep.subr.bf16.mxu0 0
    %2344 = vmatpush1.bf16.msra.mxu0 0
    %2345 = vmatprep.subr.bf16.mxu0 0
    %2346 = vmatpush1.bf16.msra.mxu0 0
    %2347 = vmatprep.subr.bf16.mxu0 0
    %2348 = vmatpush1.bf16.msra.mxu0 0
    %2349 = vmatprep.subr.bf16.mxu0 0
    %2350 = vmatpush1.bf16.msra.mxu0 0
    %2351 = vmatprep.subr.bf16.mxu0 0
    %2352 = vmatpush1.bf16.msra.mxu0 0
    %2353 = vmatprep.mubr.bf16.mxu0 0
    %2354 = vmatmul.mubr.bf16.gmra.mrb[0].mxu0 %v2313
    %v2355 = vpop.f32.mrb[0].mxu0
    %v2356 = vadd.f32 0.0, %v2355
    %v2357 = vpop.f32.mrb[0].mxu0
    %v2358 = vpop.f32.mrb[0].mxu0
    %v2359 = vadd.f32 0.0, %v2358
    %v2360 = vpop.f32.mrb[0].mxu0
    %2361 = vmatprep.mubr.bf16.mxu0 0
    %2362 = vmatmul.mubr.bf16.gmra.mrb[0].mxu0 %v2316
    %v2363 = vpop.f32.mrb[0].mxu0
    %v2364 = vadd.f32 0.0, %v2363
    %v2365 = vpop.f32.mrb[0].mxu0
    %v2366 = vpop.f32.mrb[0].mxu0
    %v2367 = vpop.f32.mrb[0].mxu0
    %2368 = vdwg.mxu0
    %2369 = vrot.lane.b32.xlu0 %v1712, 64
    %v2370 = vpop.permute.xlu0 %2369
    %2371 = vrot.lane.b32.xlu0 %v1713, 64
    %v2372 = vpop.permute.xlu0 %2371
    %v2375 = vsel %vm765, %v2301, 0
    %v2378 = vsel %vm765, %v2302, 0
    %v2381 = vsel %vm917, %v2372, 0
    %2383 = vmatprep.subr.bf16.mxu0 0
    %2384 = vmatpush1.bf16.msra.mxu0 %v2370
    %2385 = vmatprep.subr.bf16.mxu0 0
    %2386 = vmatpush1.bf16.msra.mxu0 %v2381
    %2387 = vmatprep.subr.bf16.mxu0 0
    %2388 = vmatpush1.bf16.msra.mxu0 0
    %2389 = vmatprep.subr.bf16.mxu0 0
    %2390 = vmatpush1.bf16.msra.mxu0 0
    %2391 = vmatprep.subr.bf16.mxu0 0
    %2392 = vmatpush1.bf16.msra.mxu0 0
    %2393 = vmatprep.subr.bf16.mxu0 0
    %2394 = vmatpush1.bf16.msra.mxu0 0
    %2395 = vmatprep.subr.bf16.mxu0 0
    %2396 = vmatpush1.bf16.msra.mxu0 0
    %2397 = vmatprep.subr.bf16.mxu0 0
    %2398 = vmatpush1.bf16.msra.mxu0 0
    %2399 = vmatprep.subr.bf16.mxu0 0
    %2400 = vmatpush1.bf16.msra.mxu0 0
    %2401 = vmatprep.subr.bf16.mxu0 0
    %2402 = vmatpush1.bf16.msra.mxu0 0
    %2403 = vmatprep.subr.bf16.mxu0 0
    %2404 = vmatpush1.bf16.msra.mxu0 0
    %2405 = vmatprep.subr.bf16.mxu0 0
    %2406 = vmatpush1.bf16.msra.mxu0 0
    %2407 = vmatprep.subr.bf16.mxu0 0
    %2408 = vmatpush1.bf16.msra.mxu0 0
    %2409 = vmatprep.subr.bf16.mxu0 0
    %2410 = vmatpush1.bf16.msra.mxu0 0
    %2411 = vmatprep.subr.bf16.mxu0 0
    %2412 = vmatpush1.bf16.msra.mxu0 0
    %2413 = vmatprep.subr.bf16.mxu0 0
    %2414 = vmatpush1.bf16.msra.mxu0 0
    %2415 = vmatprep.mubr.bf16.mxu0 0
    %2416 = vmatmul.mubr.bf16.gmra.mrb[0].mxu0 %v2375
    %v2417 = vpop.f32.mrb[0].mxu0
    %v2418 = vadd.f32 0.0, %v2417
    %v2419 = vpop.f32.mrb[0].mxu0
    %v2420 = vpop.f32.mrb[0].mxu0
    %v2421 = vadd.f32 0.0, %v2420
    %v2422 = vpop.f32.mrb[0].mxu0
    %2423 = vmatprep.mubr.bf16.mxu0 0
    %2424 = vmatmul.mubr.bf16.gmra.mrb[0].mxu0 %v2378
    %v2425 = vpop.f32.mrb[0].mxu0
    %v2426 = vadd.f32 0.0, %v2425
    %v2427 = vpop.f32.mrb[0].mxu0
    %v2428 = vpop.f32.mrb[0].mxu0
    %v2429 = vpop.f32.mrb[0].mxu0
    %2430 = vdwg.mxu0
    %2431 = vrot.lane.b32.xlu0 %v1714, 64
    %v2432 = vpop.permute.xlu0 %2431
    %2433 = vrot.lane.b32.xlu0 %v1715, 64
    %v2434 = vpop.permute.xlu0 %2433
    %v2437 = vsel %vm765, %v2303, 0
    %v2440 = vsel %vm765, %v2304, 0
    %v2443 = vsel %vm917, %v2434, 0
    %2445 = vmatprep.subr.bf16.mxu0 0
    %2446 = vmatpush1.bf16.msra.mxu0 %v2432
    %2447 = vmatprep.subr.bf16.mxu0 0
    %2448 = vmatpush1.bf16.msra.mxu0 %v2443
    %2449 = vmatprep.subr.bf16.mxu0 0
    %2450 = vmatpush1.bf16.msra.mxu0 0
    %2451 = vmatprep.subr.bf16.mxu0 0
    %2452 = vmatpush1.bf16.msra.mxu0 0
    %2453 = vmatprep.subr.bf16.mxu0 0
    %2454 = vmatpush1.bf16.msra.mxu0 0
    %2455 = vmatprep.subr.bf16.mxu0 0
    %2456 = vmatpush1.bf16.msra.mxu0 0
    %2457 = vmatprep.subr.bf16.mxu0 0
    %2458 = vmatpush1.bf16.msra.mxu0 0
    %2459 = vmatprep.subr.bf16.mxu0 0
    %2460 = vmatpush1.bf16.msra.mxu0 0
    %2461 = vmatprep.subr.bf16.mxu0 0
    %2462 = vmatpush1.bf16.msra.mxu0 0
    %2463 = vmatprep.subr.bf16.mxu0 0
    %2464 = vmatpush1.bf16.msra.mxu0 0
    %2465 = vmatprep.subr.bf16.mxu0 0
    %2466 = vmatpush1.bf16.msra.mxu0 0
    %2467 = vmatprep.subr.bf16.mxu0 0
    %2468 = vmatpush1.bf16.msra.mxu0 0
    %2469 = vmatprep.subr.bf16.mxu0 0
    %2470 = vmatpush1.bf16.msra.mxu0 0
    %2471 = vmatprep.subr.bf16.mxu0 0
    %2472 = vmatpush1.bf16.msra.mxu0 0
    %2473 = vmatprep.subr.bf16.mxu0 0
    %2474 = vmatpush1.bf16.msra.mxu0 0
    %2475 = vmatprep.subr.bf16.mxu0 0
    %2476 = vmatpush1.bf16.msra.mxu0 0
    %2477 = vmatprep.mubr.bf16.mxu0 0
    %2478 = vmatmul.mubr.bf16.gmra.mrb[0].mxu0 %v2437
    %v2479 = vpop.f32.mrb[0].mxu0
    %v2480 = vadd.f32 0.0, %v2479
    %v2481 = vpop.f32.mrb[0].mxu0
    %v2482 = vpop.f32.mrb[0].mxu0
    %v2483 = vadd.f32 0.0, %v2482
    %v2484 = vpop.f32.mrb[0].mxu0
    %2485 = vmatprep.mubr.bf16.mxu0 0
    %2486 = vmatmul.mubr.bf16.gmra.mrb[0].mxu0 %v2440
    %v2487 = vpop.f32.mrb[0].mxu0
    %v2488 = vadd.f32 0.0, %v2487
    %v2489 = vpop.f32.mrb[0].mxu0
    %v2490 = vpop.f32.mrb[0].mxu0
    %v2491 = vpop.f32.mrb[0].mxu0
    %2492 = vdwg.mxu0
    %2493 = vrot.lane.b32.xlu0 %v1716, 64
    %v2494 = vpop.permute.xlu0 %2493
    %2495 = vrot.lane.b32.xlu0 %v1717, 64
    %v2496 = vpop.permute.xlu0 %2495
    %v2499 = vsel %vm765, %v2305, 0
    %v2502 = vsel %vm765, %v2306, 0
    %v2505 = vsel %vm917, %v2496, 0
    %2507 = vmatprep.subr.bf16.mxu0 0
    %2508 = vmatpush1.bf16.msra.mxu0 %v2494
    %2509 = vmatprep.subr.bf16.mxu0 0
    %2510 = vmatpush1.bf16.msra.mxu0 %v2505
    %2511 = vmatprep.subr.bf16.mxu0 0
    %2512 = vmatpush1.bf16.msra.mxu0 0
    %2513 = vmatprep.subr.bf16.mxu0 0
    %2514 = vmatpush1.bf16.msra.mxu0 0
    %2515 = vmatprep.subr.bf16.mxu0 0
    %2516 = vmatpush1.bf16.msra.mxu0 0
    %2517 = vmatprep.subr.bf16.mxu0 0
    %2518 = vmatpush1.bf16.msra.mxu0 0
    %2519 = vmatprep.subr.bf16.mxu0 0
    %2520 = vmatpush1.bf16.msra.mxu0 0
    %2521 = vmatprep.subr.bf16.mxu0 0
    %2522 = vmatpush1.bf16.msra.mxu0 0
    %2523 = vmatprep.subr.bf16.mxu0 0
    %2524 = vmatpush1.bf16.msra.mxu0 0
    %2525 = vmatprep.subr.bf16.mxu0 0
    %2526 = vmatpush1.bf16.msra.mxu0 0
    %2527 = vmatprep.subr.bf16.mxu0 0
    %2528 = vmatpush1.bf16.msra.mxu0 0
    %2529 = vmatprep.subr.bf16.mxu0 0
    %2530 = vmatpush1.bf16.msra.mxu0 0
    %2531 = vmatprep.subr.bf16.mxu0 0
    %2532 = vmatpush1.bf16.msra.mxu0 0
    %2533 = vmatprep.subr.bf16.mxu0 0
    %2534 = vmatpush1.bf16.msra.mxu0 0
    %2535 = vmatprep.subr.bf16.mxu0 0
    %2536 = vmatpush1.bf16.msra.mxu0 0
    %2537 = vmatprep.subr.bf16.mxu0 0
    %2538 = vmatpush1.bf16.msra.mxu0 0
    %2539 = vmatprep.mubr.bf16.mxu0 0
    %2540 = vmatmul.mubr.bf16.gmra.mrb[0].mxu0 %v2499
    %v2541 = vpop.f32.mrb[0].mxu0
    %v2542 = vadd.f32 0.0, %v2541
    %v2543 = vpop.f32.mrb[0].mxu0
    %v2544 = vpop.f32.mrb[0].mxu0
    %v2545 = vadd.f32 0.0, %v2544
    %v2546 = vpop.f32.mrb[0].mxu0
    %2547 = vmatprep.mubr.bf16.mxu0 0
    %2548 = vmatmul.mubr.bf16.gmra.mrb[0].mxu0 %v2502
    %v2549 = vpop.f32.mrb[0].mxu0
    %v2550 = vadd.f32 0.0, %v2549
    %v2551 = vpop.f32.mrb[0].mxu0
    %v2552 = vpop.f32.mrb[0].mxu0
    %v2553 = vpop.f32.mrb[0].mxu0
    %2554 = vdwg.mxu0
    %2558 = vrot.lane.b32.xlu0 %v2418, 8
    %v2559 = vpop.permute.xlu0 %2558
    %2560 = vrot.lane.b32.xlu0 %v2421, 8
    %v2561 = vpop.permute.xlu0 %2560
    %2562 = vrot.lane.b32.xlu0 %v2426, 8
    %v2563 = vpop.permute.xlu0 %2562
    %2570 = vrot.lane.b32.xlu0 %v2480, 16
    %v2571 = vpop.permute.xlu0 %2570
    %2572 = vrot.lane.b32.xlu0 %v2483, 16
    %v2573 = vpop.permute.xlu0 %2572
    %2574 = vrot.lane.b32.xlu0 %v2488, 16
    %v2575 = vpop.permute.xlu0 %2574
    %2582 = vrot.lane.b32.xlu0 %v2542, 24
    %v2583 = vpop.permute.xlu0 %2582
    %2584 = vrot.lane.b32.xlu0 %v2545, 24
    %v2585 = vpop.permute.xlu0 %2584
    %2586 = vrot.lane.b32.xlu0 %v2550, 24
    %v2587 = vpop.permute.xlu0 %2586
    %v2591 = vsel %vm327, %v2356, %v2559
    %v2592 = vsel %vm327, %v2359, %v2561
    %v2593 = vsel %vm327, %v2364, %v2563
    %v2594 = vsel %vm1194, %v2591, %v2571
    %v2595 = vsel %vm1194, %v2592, %v2573
    %v2596 = vsel %vm1194, %v2593, %v2575
    %v2597 = vsel %vm765, %v2594, %v2583
    %v2598 = vsel %vm765, %v2595, %v2585
    %v2599 = vsel %vm765, %v2596, %v2587
    %v2600 = vpack.c.bf16 %v2597, %v2597
    %v2601 = vld [vmem:[%s13] sm:$0xf]
    %v2602 = vld [vmem:[%s13 + $0x4] sm:$0xf]
    %v2603 = vld [vmem:[%s13 + $0x8] sm:$0xf]
    %v2604 = vld [vmem:[%s13 + $0xc] sm:$0xf]
    %v2605 = vld [vmem:[%s14] sm:$0x1]
    %v2606 = vlaneseq
    %v2607 = vshrl.u32 %v2606, 7
    %v2608 = vsub.s32 0, %v2607
    %v2609 = vrot.slane %v2605, %v2608
    %v2614 = vunpack.c.l.b16 %v2601
    %v2615 = vunpack.c.l.b16 %v2602
    %v2616 = vunpack.c.l.b16 %v2603
    %v2617 = vunpack.c.l.b16 %v2604
    %v2618 = vpack.c.b16 %v2615, %v2614
    %v2619 = vpack.c.b16 %v2617, %v2616
    %v2623 = vsel %vm101, %v2600, 0
    %2625 = vmatprep.subr.bf16.mxu0 0
    %2626 = vmatpush1.bf16.msra.mxu0 %v2618
    %2627 = vmatprep.subr.bf16.mxu0 0
    %2628 = vmatpush1.bf16.msra.mxu0 %v2619
    %2629 = vmatprep.subr.bf16.mxu0 0
    %2630 = vmatpush1.bf16.msra.mxu0 0
    %2631 = vmatprep.subr.bf16.mxu0 0
    %2632 = vmatpush1.bf16.msra.mxu0 0
    %2633 = vmatprep.subr.bf16.mxu0 0
    %2634 = vmatpush1.bf16.msra.mxu0 0
    %2635 = vmatprep.subr.bf16.mxu0 0
    %2636 = vmatpush1.bf16.msra.mxu0 0
    %2637 = vmatprep.subr.bf16.mxu0 0
    %2638 = vmatpush1.bf16.msra.mxu0 0
    %2639 = vmatprep.subr.bf16.mxu0 0
    %2640 = vmatpush1.bf16.msra.mxu0 0
    %2641 = vmatprep.subr.bf16.mxu0 0
    %2642 = vmatpush1.bf16.msra.mxu0 0
    %2643 = vmatprep.subr.bf16.mxu0 0
    %2644 = vmatpush1.bf16.msra.mxu0 0
    %2645 = vmatprep.subr.bf16.mxu0 0
    %2646 = vmatpush1.bf16.msra.mxu0 0
    %2647 = vmatprep.subr.bf16.mxu0 0
    %2648 = vmatpush1.bf16.msra.mxu0 0
    %2649 = vmatprep.subr.bf16.mxu0 0
    %2650 = vmatpush1.bf16.msra.mxu0 0
    %2651 = vmatprep.subr.bf16.mxu0 0
    %2652 = vmatpush1.bf16.msra.mxu0 0
    %2653 = vmatprep.subr.bf16.mxu0 0
    %2654 = vmatpush1.bf16.msra.mxu0 0
    %2655 = vmatprep.subr.bf16.mxu0 0
    %2656 = vmatpush1.bf16.msra.mxu0 0
    %2657 = vmatprep.mubr.bf16.mxu0 0
    %2658 = vmatmul.mubr.bf16.gmra.mrb[0].mxu0 %v2623
    %v2659 = vpop.f32.mrb[0].mxu0
    %v2660 = vadd.f32 %v2609, %v2659
    %v2661 = vpop.f32.mrb[0].mxu0
    %v2662 = vpop.f32.mrb[0].mxu0
    %v2663 = vpop.f32.mrb[0].mxu0
    %2664 = vdwg.mxu0
    %v2665 = vpack.c.bf16 %v2598, %v2598
    %s2666 = scalar_lea.vmem %s13, 16
    %v2667 = vld [vmem:[%s2666] sm:$0xf]
    %v2668 = vld [vmem:[%s2666 + $0x4] sm:$0xf]
    %v2669 = vld [vmem:[%s2666 + $0x8] sm:$0xf]
    %v2670 = vld [vmem:[%s2666 + $0xc] sm:$0xf]
    %v2671 = vld [vmem:[%s14 + $0x1] sm:$0x1]
    %v2672 = vlaneseq
    %v2673 = vshrl.u32 %v2672, 7
    %v2674 = vsub.s32 0, %v2673
    %v2675 = vrot.slane %v2671, %v2674
    %v2680 = vunpack.c.l.b16 %v2667
    %v2681 = vunpack.c.l.b16 %v2668
    %v2682 = vunpack.c.l.b16 %v2669
    %v2683 = vunpack.c.l.b16 %v2670
    %v2684 = vpack.c.b16 %v2681, %v2680
    %v2685 = vpack.c.b16 %v2683, %v2682
    %v2689 = vsel %vm101, %v2665, 0
    %2691 = vmatprep.subr.bf16.mxu0 0
    %2692 = vmatpush1.bf16.msra.mxu0 %v2684
    %2693 = vmatprep.subr.bf16.mxu0 0
    %2694 = vmatpush1.bf16.msra.mxu0 %v2685
    %2695 = vmatprep.subr.bf16.mxu0 0
    %2696 = vmatpush1.bf16.msra.mxu0 0
    %2697 = vmatprep.subr.bf16.mxu0 0
    %2698 = vmatpush1.bf16.msra.mxu0 0
    %2699 = vmatprep.subr.bf16.mxu0 0
    %2700 = vmatpush1.bf16.msra.mxu0 0
    %2701 = vmatprep.subr.bf16.mxu0 0
    %2702 = vmatpush1.bf16.msra.mxu0 0
    %2703 = vmatprep.subr.bf16.mxu0 0
    %2704 = vmatpush1.bf16.msra.mxu0 0
    %2705 = vmatprep.subr.bf16.mxu0 0
    %2706 = vmatpush1.bf16.msra.mxu0 0
    %2707 = vmatprep.subr.bf16.mxu0 0
    %2708 = vmatpush1.bf16.msra.mxu0 0
    %2709 = vmatprep.subr.bf16.mxu0 0
    %2710 = vmatpush1.bf16.msra.mxu0 0
    %2711 = vmatprep.subr.bf16.mxu0 0
    %2712 = vmatpush1.bf16.msra.mxu0 0
    %2713 = vmatprep.subr.bf16.mxu0 0
    %2714 = vmatpush1.bf16.msra.mxu0 0
    %2715 = vmatprep.subr.bf16.mxu0 0
    %2716 = vmatpush1.bf16.msra.mxu0 0
    %2717 = vmatprep.subr.bf16.mxu0 0
    %2718 = vmatpush1.bf16.msra.mxu0 0
    %2719 = vmatprep.subr.bf16.mxu0 0
    %2720 = vmatpush1.bf16.msra.mxu0 0
    %2721 = vmatprep.subr.bf16.mxu0 0
    %2722 = vmatpush1.bf16.msra.mxu0 0
    %2723 = vmatprep.mubr.bf16.mxu0 0
    %2724 = vmatmul.mubr.bf16.gmra.mrb[0].mxu0 %v2689
    %v2725 = vpop.f32.mrb[0].mxu0
    %v2726 = vadd.f32 %v2675, %v2725
    %v2727 = vpop.f32.mrb[0].mxu0
    %v2728 = vpop.f32.mrb[0].mxu0
    %v2729 = vpop.f32.mrb[0].mxu0
    %2730 = vdwg.mxu0
    %v2731 = vpack.c.bf16 %v2599, %v2599
    %s2732 = scalar_lea.vmem %s13, 32
    %v2733 = vld [vmem:[%s2732] sm:$0xf]
    %v2734 = vld [vmem:[%s2732 + $0x4] sm:$0xf]
    %v2735 = vld [vmem:[%s2732 + $0x8] sm:$0xf]
    %v2736 = vld [vmem:[%s2732 + $0xc] sm:$0xf]
    %v2737 = vld [vmem:[%s14 + $0x2] sm:$0x1]
    %v2738 = vlaneseq
    %v2739 = vshrl.u32 %v2738, 7
    %v2740 = vsub.s32 0, %v2739
    %v2741 = vrot.slane %v2737, %v2740
    %v2746 = vunpack.c.l.b16 %v2733
    %v2747 = vunpack.c.l.b16 %v2734
    %v2748 = vunpack.c.l.b16 %v2735
    %v2749 = vunpack.c.l.b16 %v2736
    %v2750 = vpack.c.b16 %v2747, %v2746
    %v2751 = vpack.c.b16 %v2749, %v2748
    %v2755 = vsel %vm101, %v2731, 0
    %2757 = vmatprep.subr.bf16.mxu0 0
    %2758 = vmatpush1.bf16.msra.mxu0 %v2750
    %2759 = vmatprep.subr.bf16.mxu0 0
    %2760 = vmatpush1.bf16.msra.mxu0 %v2751
    %2761 = vmatprep.subr.bf16.mxu0 0
    %2762 = vmatpush1.bf16.msra.mxu0 0
    %2763 = vmatprep.subr.bf16.mxu0 0
    %2764 = vmatpush1.bf16.msra.mxu0 0
    %2765 = vmatprep.subr.bf16.mxu0 0
    %2766 = vmatpush1.bf16.msra.mxu0 0
    %2767 = vmatprep.subr.bf16.mxu0 0
    %2768 = vmatpush1.bf16.msra.mxu0 0
    %2769 = vmatprep.subr.bf16.mxu0 0
    %2770 = vmatpush1.bf16.msra.mxu0 0
    %2771 = vmatprep.subr.bf16.mxu0 0
    %2772 = vmatpush1.bf16.msra.mxu0 0
    %2773 = vmatprep.subr.bf16.mxu0 0
    %2774 = vmatpush1.bf16.msra.mxu0 0
    %2775 = vmatprep.subr.bf16.mxu0 0
    %2776 = vmatpush1.bf16.msra.mxu0 0
    %2777 = vmatprep.subr.bf16.mxu0 0
    %2778 = vmatpush1.bf16.msra.mxu0 0
    %2779 = vmatprep.subr.bf16.mxu0 0
    %2780 = vmatpush1.bf16.msra.mxu0 0
    %2781 = vmatprep.subr.bf16.mxu0 0
    %2782 = vmatpush1.bf16.msra.mxu0 0
    %2783 = vmatprep.subr.bf16.mxu0 0
    %2784 = vmatpush1.bf16.msra.mxu0 0
    %2785 = vmatprep.subr.bf16.mxu0 0
    %2786 = vmatpush1.bf16.msra.mxu0 0
    %2787 = vmatprep.subr.bf16.mxu0 0
    %2788 = vmatpush1.bf16.msra.mxu0 0
    %2789 = vmatprep.mubr.bf16.mxu0 0
    %2790 = vmatmul.mubr.bf16.gmra.mrb[0].mxu0 %v2755
    %v2791 = vpop.f32.mrb[0].mxu0
    %v2792 = vadd.f32 %v2741, %v2791
    %v2793 = vpop.f32.mrb[0].mxu0
    %v2794 = vpop.f32.mrb[0].mxu0
    %v2795 = vpop.f32.mrb[0].mxu0
    %2796 = vdwg.mxu0
    %v2797 = vsel %vm101, %v2660, 0.0
    %2798 = vadd.xlane.f32.xlu0 %v2797
    %v2799 = vpop.xlane.xlu0 %2798
    %v2800 = vmul.f32 %v2799, %v1401
    %v2801 = vmul.f32 %v2660, %v2660
    %v2802 = vsel %vm101, %v2801, 0.0
    %2803 = vadd.xlane.f32.xlu0 %v2802
    %v2804 = vpop.xlane.xlu0 %2803
    %v2805 = vmul.f32 %v2804, %v1401
    %v2806 = vmul.f32 %v2800, %v2800
    %v2807 = vsub.f32 %v2805, %v2806
    %v2808 = vsub.f32 %v2660, %v2800
    %v2809 = vadd.f32 %v2807, 1e-05
    %v2810 = vrsqrt.pop %v2809
    %v2811 = vmul.f32 %v2808, %v2810
    %v2812 = vld [vmem:[%s15] sm:$0x1]
    %v2813 = vlaneseq
    %v2814 = vshrl.u32 %v2813, 7
    %v2815 = vsub.s32 0, %v2814
    %v2816 = vrot.slane %v2812, %v2815
    %v2817 = vmul.f32 %v2811, %v2816
    %v2818 = vld [vmem:[%s16] sm:$0x1]
    %v2819 = vlaneseq
    %v2820 = vshrl.u32 %v2819, 7
    %v2821 = vsub.s32 0, %v2820
    %v2822 = vrot.slane %v2818, %v2821
    %v2823 = vadd.f32 %v2817, %v2822
    %v2824 = vadd.f32 %v2823, %v1426
    %v2825 = vsel %vm101, %v2726, 0.0
    %2826 = vadd.xlane.f32.xlu0 %v2825
    %v2827 = vpop.xlane.xlu0 %2826
    %v2828 = vmul.f32 %v2827, %v1401
    %v2829 = vmul.f32 %v2726, %v2726
    %v2830 = vsel %vm101, %v2829, 0.0
    %2831 = vadd.xlane.f32.xlu0 %v2830
    %v2832 = vpop.xlane.xlu0 %2831
    %v2833 = vmul.f32 %v2832, %v1401
    %v2834 = vmul.f32 %v2828, %v2828
    %v2835 = vsub.f32 %v2833, %v2834
    %v2836 = vsub.f32 %v2726, %v2828
    %v2837 = vadd.f32 %v2835, 1e-05
    %v2838 = vrsqrt.pop %v2837
    %v2839 = vmul.f32 %v2836, %v2838
    %v2840 = vld [vmem:[%s15 + $0x1] sm:$0x1]
    %v2841 = vlaneseq
    %v2842 = vshrl.u32 %v2841, 7
    %v2843 = vsub.s32 0, %v2842
    %v2844 = vrot.slane %v2840, %v2843
    %v2845 = vmul.f32 %v2839, %v2844
    %v2846 = vld [vmem:[%s16 + $0x1] sm:$0x1]
    %v2847 = vlaneseq
    %v2848 = vshrl.u32 %v2847, 7
    %v2849 = vsub.s32 0, %v2848
    %v2850 = vrot.slane %v2846, %v2849
    %v2851 = vadd.f32 %v2845, %v2850
    %v2852 = vadd.f32 %v2851, %v1454
    %v2853 = vsel %vm101, %v2792, 0.0
    %2854 = vadd.xlane.f32.xlu0 %v2853
    %v2855 = vpop.xlane.xlu0 %2854
    %v2856 = vmul.f32 %v2855, %v1401
    %v2857 = vmul.f32 %v2792, %v2792
    %v2858 = vsel %vm101, %v2857, 0.0
    %2859 = vadd.xlane.f32.xlu0 %v2858
    %v2860 = vpop.xlane.xlu0 %2859
    %v2861 = vmul.f32 %v2860, %v1401
    %v2862 = vmul.f32 %v2856, %v2856
    %v2863 = vsub.f32 %v2861, %v2862
    %v2864 = vsub.f32 %v2792, %v2856
    %v2865 = vadd.f32 %v2863, 1e-05
    %v2866 = vrsqrt.pop %v2865
    %v2867 = vmul.f32 %v2864, %v2866
    %v2868 = vld [vmem:[%s15 + $0x2] sm:$0x1]
    %v2869 = vlaneseq
    %v2870 = vshrl.u32 %v2869, 7
    %v2871 = vsub.s32 0, %v2870
    %v2872 = vrot.slane %v2868, %v2871
    %v2873 = vmul.f32 %v2867, %v2872
    %v2874 = vld [vmem:[%s16 + $0x2] sm:$0x1]
    %v2875 = vlaneseq
    %v2876 = vshrl.u32 %v2875, 7
    %v2877 = vsub.s32 0, %v2876
    %v2878 = vrot.slane %v2874, %v2877
    %v2879 = vadd.f32 %v2873, %v2878
    %v2880 = vadd.f32 %v2879, %v1482
    %2881 = vst.msk [vmem:[#allocation5] sm:$0xff] %vm101, %v2824
    %2882 = vst.msk [vmem:[#allocation5 + $0x8] sm:$0xff] %vm101, %v2852
    %2883 = vst.msk [vmem:[#allocation5 + $0x10] sm:$0xff] %vm101, %v2880
    // Predicated region
    $region74: #{tpu_custom_call.1} parent=1 // pred_check
      _
    $region75: #{tpu_custom_call.1} parent=1 // pred_check_branch
      %2885 = sbr.rel (0) target = $region77
    $region76: #{tpu_custom_call.1} parent=1 // pred_region
      %s2887 = ssub.s32 384, 384
      %2888 = vsyncadd [#allocation4], %s2887
      %s2889 = sshll.u32 [#allocation5], 4
      %s2890 = int_to_ptr.vmem [resolvable:$true] %s2889
      %2895 = dma.vmem_to_hbm [thread:$0]  %s2890, 384, %s17, [#allocation4], 128, 128, 8
    $region77: #{tpu_custom_call.1} parent=1 // pred_fallthru
      _
    // Predicated region
    $region78: #{tpu_custom_call.1} parent=1 // pred_check
      _
    $region79: #{tpu_custom_call.1} parent=1 // pred_check_branch
      %2897 = sbr.rel (0) target = $region81
    $region80: #{tpu_custom_call.1} parent=1 // pred_region
      %2898 = dma.done [#allocation4], 384
    $region81: #{tpu_custom_call.1} parent=1 // pred_fallthru
      _
    %2899 = vsyncpa [#allocation3], 1
    %2900 = vsyncpa [#allocation4], 1

</llo_original>
